<compile_context>
chip_gen: v7x
topology: tpu7x:2x2x1
jax: 0.10.0
libtpu: 0.0.40
codegen_flags: <defaults>
</compile_context>

<pallas_src>
import math
import functools

import jax
import jax.numpy as jnp
from jax.experimental import pallas as pl
from jax.experimental.pallas import tpu as pltpu

EPS = 1e-5  # layer_norm_eps used everywhere in the torch module


# ---------------------------------------------------------------- helpers ----
def _layernorm(x, gamma, beta):
    mu = jnp.mean(x, axis=-1, keepdims=True)
    var = jnp.mean(jnp.square(x - mu), axis=-1, keepdims=True)
    return (x - mu) * jax.lax.rsqrt(var + EPS) * gamma + beta


def _gelu(x):
    # TODO(synk): torch nn.GELU defaults to the exact erf formulation; using the
    # tanh approximation in-kernel since erf lowering on Mosaic is not guaranteed.
    c = 0.7978845608028654  # sqrt(2/pi)
    return 0.5 * x * (1.0 + jnp.tanh(c * (x + 0.044715 * x * x * x)))


# ------------------------------------------------------------ fused kernel ----
def adapter_kernel(q_ref, amp_ref, pha_ref,
                   wa_ref, wp_ref, ib_ref, ig_ref, ibe_ref,
                   cg_ref, cbe_ref,
                   wq_ref, bq_ref, wkv_ref, bkv_ref, wo_ref, bo_ref,
                   fg_ref, fbe_ref, w1_ref, b1_ref, w2_ref, b2_ref,
                   o_ref, *, num_heads, head_dim, d_model):
    f32 = jnp.float32

    # ---- stage 1: in_proj = Linear(cat(amp, pha)) -> LayerNorm -> GELU ----------
    # (the concat is eliminated: two partial matmuls share one f32 accumulator)
    kv = (jnp.dot(amp_ref[0], wa_ref[...], preferred_element_type=f32)
          + jnp.dot(pha_ref[0], wp_ref[...], preferred_element_type=f32)
          + ib_ref[...])
    kv = _gelu(_layernorm(kv, ig_ref[...], ibe_ref[...]))           # (Lkv, D)

    # ---- stage 2: Cross_Attn_Block (norm_first): q + MHA(LN(q), LN(kv), LN(kv)) --
    q_in = q_ref[0].astype(f32)                                     # (Lq, D)
    qn = _layernorm(q_in, cg_ref[...], cbe_ref[...])
    kn = _layernorm(kv, cg_ref[...], cbe_ref[...])                  # shared LN, k == v

    # q projection (scale 1/sqrt(head_dim) already folded into wq / bq)
    q = jnp.dot(qn, wq_ref[...], preferred_element_type=f32) + bq_ref[...]
    # fused K/V projection: one (D, 2D) matmul, lane-aligned split
    kvp = jnp.dot(kn, wkv_ref[...], preferred_element_type=f32) + bkv_ref[...]
    k = kvp[:, :d_model]
    v = kvp[:, d_model:]

    lq = q.shape[0]
    lkv = k.shape[0]
    # head-batched attention: (L, H*hd) -> (H, L, hd), two batched matmuls
    q3 = jnp.swapaxes(q.reshape(lq, num_heads, head_dim), 0, 1)     # (H, Lq, hd)
    k3 = jnp.swapaxes(k.reshape(lkv, num_heads, head_dim), 0, 1)    # (H, Lkv, hd)
    v3 = jnp.swapaxes(v.reshape(lkv, num_heads, head_dim), 0, 1)    # (H, Lkv, hd)

    s = jnp.einsum('hqd,hkd->hqk', q3, k3, preferred_element_type=f32)
    s = s - jnp.max(s, axis=-1, keepdims=True)
    p = jnp.exp(s)
    p = p * pl.reciprocal(jnp.sum(p, axis=-1, keepdims=True), approx=True)
    ctx = jnp.einsum('hqk,hkd->hqd', p, v3, preferred_element_type=f32)  # (H, Lq, hd)
    ctx = jnp.swapaxes(ctx, 0, 1).reshape(lq, num_heads * head_dim)      # (Lq, D)

    attn = jnp.dot(ctx, wo_ref[...], preferred_element_type=f32) + bo_ref[...]
    x = q_in + attn                                                  # (Lq, D)

    # ---- stage 3: FF_Block (norm_first): x + linear2(GELU(linear1(LN(x)))) ------
    y = _layernorm(x, fg_ref[...], fbe_ref[...])
    h = _gelu(jnp.dot(y, w1_ref[...], preferred_element_type=f32) + b1_ref[...])
    ff = jnp.dot(h, w2_ref[...], preferred_element_type=f32) + b2_ref[...]
    o_ref[0] = (x + ff).astype(o_ref.dtype)


# ----------------------------------------------------------------- wrapper ----
def adapter_block_forward(Q, amp, pha, params, num_heads=8):
    B, Lq, D = Q.shape
    _, Lkv, Ca = amp.shape
    Cp = pha.shape[2]
    Dff = params["ff_w1"].shape[1]
    head_dim = D // num_heads
    scale = 1.0 / math.sqrt(head_dim)

    # wrapper-time (amortized) weight preprocessing:
    wa = params["inp_w"][:Ca]                 # split in_proj weight -> no runtime concat
    wp = params["inp_w"][Ca:]
    wq_s = params["wq"] * scale               # fold attention scale into q projection
    bq_s = params["bq"] * scale
    wkv = jnp.concatenate([params["wk"], params["wv"]], axis=1)     # (D, 2D)
    bkv = jnp.concatenate([params["bk"], params["bv"]], axis=1)     # (1, 2D)

    kern = functools.partial(adapter_kernel, num_heads=num_heads,
                             head_dim=head_dim, d_model=D)

    # Constant-index_map weight blocks: working set here is < 1 MiB so default
    # double-buffering is harmless; revisit (pl.Buffered(1) / bf16) at production
    # d_model to respect v7x's 64 MiB VMEM.
    def cmat(r, c):
        return pl.BlockSpec((r, c), lambda i: (0, 0))

    return pl.pallas_call(
        kern,
        out_shape=jax.ShapeDtypeStruct((B, Lq, D), Q.dtype),
        grid=(B,),
        in_specs=[
            pl.BlockSpec((1, Lq, D), lambda i: (i, 0, 0)),
            pl.BlockSpec((1, Lkv, Ca), lambda i: (i, 0, 0)),
            pl.BlockSpec((1, Lkv, Cp), lambda i: (i, 0, 0)),
            # in_proj
            cmat(Ca, D), cmat(Cp, D), cmat(1, D), cmat(1, D), cmat(1, D),
            # cross-attention
            cmat(1, D), cmat(1, D),
            cmat(D, D), cmat(1, D), cmat(D, 2 * D), cmat(1, 2 * D),
            cmat(D, D), cmat(1, D),
            # FF block
            cmat(1, D), cmat(1, D), cmat(D, Dff), cmat(1, Dff),
            cmat(Dff, D), cmat(1, D),
        ],
        out_specs=pl.BlockSpec((1, Lq, D), lambda i: (i, 0, 0)),
        compiler_params=pltpu.CompilerParams(
            dimension_semantics=("parallel",),   # lets v7x shard batches over 2 TCs
        ),
    )(Q, amp, pha,
      wa, wp, params["inp_b"], params["inp_ln_g"], params["inp_ln_b"],
      params["ca_ln_g"], params["ca_ln_b"],
      wq_s, bq_s, wkv, bkv, params["wo"], params["bo"],
      params["ff_ln_g"], params["ff_ln_b"],
      params["ff_w1"], params["ff_b1"], params["ff_w2"], params["ff_b2"])


# ------------------------------------------------------------------ params ----
def init_params(key, in_channels, d_model, dim_ff):
    ks = jax.random.split(key, 8)
    s = 0.02
    f32 = jnp.float32
    ones = lambda n: jnp.ones((1, n), f32)
    zeros = lambda n: jnp.zeros((1, n), f32)
    return {
        # in_proj: Linear(in_channels, d_model) + LayerNorm(d_model)
        "inp_w": s * jax.random.normal(ks[0], (in_channels, d_model), f32),
        "inp_b": zeros(d_model),
        "inp_ln_g": ones(d_model), "inp_ln_b": zeros(d_model),
        # Cross_Attn_Block: shared LayerNorm + MultiheadAttention(d_model, 8)
        "ca_ln_g": ones(d_model), "ca_ln_b": zeros(d_model),
        "wq": s * jax.random.normal(ks[1], (d_model, d_model), f32), "bq": zeros(d_model),
        "wk": s * jax.random.normal(ks[2], (d_model, d_model), f32), "bk": zeros(d_model),
        "wv": s * jax.random.normal(ks[3], (d_model, d_model), f32), "bv": zeros(d_model),
        "wo": s * jax.random.normal(ks[4], (d_model, d_model), f32), "bo": zeros(d_model),
        # FF_Block: LayerNorm + Linear(d, dff) + Linear(dff, d)
        "ff_ln_g": ones(d_model), "ff_ln_b": zeros(d_model),
        "ff_w1": s * jax.random.normal(ks[5], (d_model, dim_ff), f32), "ff_b1": zeros(dim_ff),
        "ff_w2": s * jax.random.normal(ks[6], (dim_ff, d_model), f32), "ff_b2": zeros(d_model),
    }


# -------------------------------------------------------------------- main ----
if __name__ == "__main__":
    # Small shapes consistent with the module (in_channels = 2 * amp/pha channels,
    # d_model divisible by nhead=8).
    B, Lq, Lkv = 2, 8, 16
    half_c = 128          # amp/pha feature size -> in_channels = 256
    d_model = 128
    dim_ff = 256
    nhead = 8

    key = jax.random.PRNGKey(0)
    kQ, kA, kP, kW = jax.random.split(key, 4)
    Q = jax.random.normal(kQ, (B, Lq, d_model), jnp.float32)
    amp = jax.random.normal(kA, (B, Lkv, half_c), jnp.float32)
    pha = jax.random.normal(kP, (B, Lkv, half_c), jnp.float32)

    params = init_params(kW, 2 * half_c, d_model, dim_ff)

    out = adapter_block_forward(Q, amp, pha, params, num_heads=nhead)
    out = jax.block_until_ready(out)
    assert out.shape == (B, Lq, d_model)
    print("KERNEL_OK")
</pallas_src>

<mosaic_0001>
module attributes {stable_mosaic.version = 11 : i64} {
  func.func @adapter_kernel(%arg0: i32, %arg1: memref<1x8x128xf32, #tpu.memory_space<vmem>>, %arg2: memref<1x16x128xf32, #tpu.memory_space<vmem>>, %arg3: memref<1x16x128xf32, #tpu.memory_space<vmem>>, %arg4: memref<128x128xf32, #tpu.memory_space<vmem>>, %arg5: memref<128x128xf32, #tpu.memory_space<vmem>>, %arg6: memref<1x128xf32, #tpu.memory_space<vmem>>, %arg7: memref<1x128xf32, #tpu.memory_space<vmem>>, %arg8: memref<1x128xf32, #tpu.memory_space<vmem>>, %arg9: memref<1x128xf32, #tpu.memory_space<vmem>>, %arg10: memref<1x128xf32, #tpu.memory_space<vmem>>, %arg11: memref<128x128xf32, #tpu.memory_space<vmem>>, %arg12: memref<1x128xf32, #tpu.memory_space<vmem>>, %arg13: memref<128x256xf32, #tpu.memory_space<vmem>>, %arg14: memref<1x256xf32, #tpu.memory_space<vmem>>, %arg15: memref<128x128xf32, #tpu.memory_space<vmem>>, %arg16: memref<1x128xf32, #tpu.memory_space<vmem>>, %arg17: memref<1x128xf32, #tpu.memory_space<vmem>>, %arg18: memref<1x128xf32, #tpu.memory_space<vmem>>, %arg19: memref<128x256xf32, #tpu.memory_space<vmem>>, %arg20: memref<1x256xf32, #tpu.memory_space<vmem>>, %arg21: memref<256x128xf32, #tpu.memory_space<vmem>>, %arg22: memref<1x128xf32, #tpu.memory_space<vmem>>, %arg23: memref<1x8x128xf32, #tpu.memory_space<vmem>>) attributes {dimension_semantics = [#tpu.dimension_semantics<parallel>], iteration_bounds = array<i64: 2>, scalar_prefetch = 0 : i64, scratch_operands = 0 : i64, tpu.core_type = #tpu.core_type<tc>, window_params = [{transform_indices = @transform_0, window_bounds = array<i64: 1, 8, 128>}, {transform_indices = @transform_1, window_bounds = array<i64: 1, 16, 128>}, {transform_indices = @transform_2, window_bounds = array<i64: 1, 16, 128>}, {pipeline_mode = #tpu.pipeline_mode<synchronous>, transform_indices = @transform_3, window_bounds = array<i64: 128, 128>}, {pipeline_mode = #tpu.pipeline_mode<synchronous>, transform_indices = @transform_4, window_bounds = array<i64: 128, 128>}, {pipeline_mode = #tpu.pipeline_mode<synchronous>, transform_indices = @transform_5, window_bounds = array<i64: 1, 128>}, {pipeline_mode = #tpu.pipeline_mode<synchronous>, transform_indices = @transform_6, window_bounds = array<i64: 1, 128>}, {pipeline_mode = #tpu.pipeline_mode<synchronous>, transform_indices = @transform_7, window_bounds = array<i64: 1, 128>}, {pipeline_mode = #tpu.pipeline_mode<synchronous>, transform_indices = @transform_8, window_bounds = array<i64: 1, 128>}, {pipeline_mode = #tpu.pipeline_mode<synchronous>, transform_indices = @transform_9, window_bounds = array<i64: 1, 128>}, {pipeline_mode = #tpu.pipeline_mode<synchronous>, transform_indices = @transform_10, window_bounds = array<i64: 128, 128>}, {pipeline_mode = #tpu.pipeline_mode<synchronous>, transform_indices = @transform_11, window_bounds = array<i64: 1, 128>}, {pipeline_mode = #tpu.pipeline_mode<synchronous>, transform_indices = @transform_12, window_bounds = array<i64: 128, 256>}, {pipeline_mode = #tpu.pipeline_mode<synchronous>, transform_indices = @transform_13, window_bounds = array<i64: 1, 256>}, {pipeline_mode = #tpu.pipeline_mode<synchronous>, transform_indices = @transform_14, window_bounds = array<i64: 128, 128>}, {pipeline_mode = #tpu.pipeline_mode<synchronous>, transform_indices = @transform_15, window_bounds = array<i64: 1, 128>}, {pipeline_mode = #tpu.pipeline_mode<synchronous>, transform_indices = @transform_16, window_bounds = array<i64: 1, 128>}, {pipeline_mode = #tpu.pipeline_mode<synchronous>, transform_indices = @transform_17, window_bounds = array<i64: 1, 128>}, {pipeline_mode = #tpu.pipeline_mode<synchronous>, transform_indices = @transform_18, window_bounds = array<i64: 128, 256>}, {pipeline_mode = #tpu.pipeline_mode<synchronous>, transform_indices = @transform_19, window_bounds = array<i64: 1, 256>}, {pipeline_mode = #tpu.pipeline_mode<synchronous>, transform_indices = @transform_20, window_bounds = array<i64: 256, 128>}, {pipeline_mode = #tpu.pipeline_mode<synchronous>, transform_indices = @transform_21, window_bounds = array<i64: 1, 128>}, {transform_indices = @transform_22, window_bounds = array<i64: 1, 8, 128>}]} {
    %c0 = arith.constant 0 : index
    %c0_0 = arith.constant 0 : index
    %c0_1 = arith.constant 0 : index
    %0 = vector.load %arg2[%c0, %c0_0, %c0_1] : memref<1x16x128xf32, #tpu.memory_space<vmem>>, vector<1x16x128xf32>
    %1 = vector.shape_cast %0 : vector<1x16x128xf32> to vector<16x128xf32>
    %c0_2 = arith.constant 0 : index
    %c0_3 = arith.constant 0 : index
    %2 = vector.load %arg4[%c0_2, %c0_3] : memref<128x128xf32, #tpu.memory_space<vmem>>, vector<128x128xf32>
    %cst = arith.constant dense<0.000000e+00> : vector<16x128xf32>
    %3 = tpu.matmul %1, %2, %cst {dimension_numbers = #tpu.dot_dimension_numbers<[1], [0], [0], [1], [0, 0, 1, 1], [], []>} : vector<16x128xf32>, vector<128x128xf32>, vector<16x128xf32> -> vector<16x128xf32>
    %c0_4 = arith.constant 0 : index
    %c0_5 = arith.constant 0 : index
    %c0_6 = arith.constant 0 : index
    %4 = vector.load %arg3[%c0_4, %c0_5, %c0_6] : memref<1x16x128xf32, #tpu.memory_space<vmem>>, vector<1x16x128xf32>
    %5 = vector.shape_cast %4 : vector<1x16x128xf32> to vector<16x128xf32>
    %c0_7 = arith.constant 0 : index
    %c0_8 = arith.constant 0 : index
    %6 = vector.load %arg5[%c0_7, %c0_8] : memref<128x128xf32, #tpu.memory_space<vmem>>, vector<128x128xf32>
    %cst_9 = arith.constant dense<0.000000e+00> : vector<16x128xf32>
    %7 = tpu.matmul %5, %6, %cst_9 {dimension_numbers = #tpu.dot_dimension_numbers<[1], [0], [0], [1], [0, 0, 1, 1], [], []>} : vector<16x128xf32>, vector<128x128xf32>, vector<16x128xf32> -> vector<16x128xf32>
    %8 = arith.addf %3, %7 : vector<16x128xf32>
    %c0_10 = arith.constant 0 : index
    %c0_11 = arith.constant 0 : index
    %9 = vector.load %arg6[%c0_10, %c0_11] : memref<1x128xf32, #tpu.memory_space<vmem>>, vector<1x128xf32>
    %10 = vector.broadcast %9 : vector<1x128xf32> to vector<16x128xf32>
    %11 = arith.addf %8, %10 : vector<16x128xf32>
    %c0_12 = arith.constant 0 : index
    %c0_13 = arith.constant 0 : index
    %12 = vector.load %arg7[%c0_12, %c0_13] : memref<1x128xf32, #tpu.memory_space<vmem>>, vector<1x128xf32>
    %c0_14 = arith.constant 0 : index
    %c0_15 = arith.constant 0 : index
    %13 = vector.load %arg8[%c0_14, %c0_15] : memref<1x128xf32, #tpu.memory_space<vmem>>, vector<1x128xf32>
    %cst_16 = arith.constant dense<0.000000e+00> : vector<16xf32>
    %14 = vector.multi_reduction <add>, %11, %cst_16 [1] : vector<16x128xf32> to vector<16xf32>
    %15 = vector.shape_cast %14 : vector<16xf32> to vector<16x1xf32>
    %cst_17 = arith.constant 1.280000e+02 : f32
    %16 = vector.broadcast %cst_17 : f32 to vector<16x1xf32>
    %17 = arith.divf %15, %16 : vector<16x1xf32>
    %18 = vector.broadcast %17 : vector<16x1xf32> to vector<16x128xf32>
    %19 = arith.subf %11, %18 : vector<16x128xf32>
    %20 = arith.mulf %19, %19 : vector<16x128xf32>
    %cst_18 = arith.constant dense<0.000000e+00> : vector<16xf32>
    %21 = vector.multi_reduction <add>, %20, %cst_18 [1] : vector<16x128xf32> to vector<16xf32>
    %22 = vector.shape_cast %21 : vector<16xf32> to vector<16x1xf32>
    %cst_19 = arith.constant 1.280000e+02 : f32
    %23 = vector.broadcast %cst_19 : f32 to vector<16x1xf32>
    %24 = arith.divf %22, %23 : vector<16x1xf32>
    %25 = vector.broadcast %17 : vector<16x1xf32> to vector<16x128xf32>
    %26 = arith.subf %11, %25 : vector<16x128xf32>
    %cst_20 = arith.constant 9.99999974E-6 : f32
    %27 = vector.broadcast %cst_20 : f32 to vector<16x1xf32>
    %28 = arith.addf %24, %27 : vector<16x1xf32>
    %29 = math.rsqrt %28 : vector<16x1xf32>
    %30 = vector.broadcast %29 : vector<16x1xf32> to vector<16x128xf32>
    %31 = arith.mulf %26, %30 : vector<16x128xf32>
    %32 = vector.broadcast %12 : vector<1x128xf32> to vector<16x128xf32>
    %33 = arith.mulf %31, %32 : vector<16x128xf32>
    %34 = vector.broadcast %13 : vector<1x128xf32> to vector<16x128xf32>
    %35 = arith.addf %33, %34 : vector<16x128xf32>
    %cst_21 = arith.constant 5.000000e-01 : f32
    %36 = vector.broadcast %cst_21 : f32 to vector<16x128xf32>
    %37 = arith.mulf %36, %35 : vector<16x128xf32>
    %cst_22 = arith.constant 4.471500e-02 : f32
    %38 = vector.broadcast %cst_22 : f32 to vector<16x128xf32>
    %39 = arith.mulf %38, %35 : vector<16x128xf32>
    %40 = arith.mulf %39, %35 : vector<16x128xf32>
    %41 = arith.mulf %40, %35 : vector<16x128xf32>
    %42 = arith.addf %35, %41 : vector<16x128xf32>
    %cst_23 = arith.constant 0.797884583 : f32
    %43 = vector.broadcast %cst_23 : f32 to vector<16x128xf32>
    %44 = arith.mulf %43, %42 : vector<16x128xf32>
    %45 = math.tanh %44 : vector<16x128xf32>
    %cst_24 = arith.constant 1.000000e+00 : f32
    %46 = vector.broadcast %cst_24 : f32 to vector<16x128xf32>
    %47 = arith.addf %46, %45 : vector<16x128xf32>
    %48 = arith.mulf %37, %47 : vector<16x128xf32>
    %c0_25 = arith.constant 0 : index
    %c0_26 = arith.constant 0 : index
    %c0_27 = arith.constant 0 : index
    %49 = vector.load %arg1[%c0_25, %c0_26, %c0_27] : memref<1x8x128xf32, #tpu.memory_space<vmem>>, vector<1x8x128xf32>
    %50 = vector.shape_cast %49 : vector<1x8x128xf32> to vector<8x128xf32>
    %c0_28 = arith.constant 0 : index
    %c0_29 = arith.constant 0 : index
    %51 = vector.load %arg9[%c0_28, %c0_29] : memref<1x128xf32, #tpu.memory_space<vmem>>, vector<1x128xf32>
    %c0_30 = arith.constant 0 : index
    %c0_31 = arith.constant 0 : index
    %52 = vector.load %arg10[%c0_30, %c0_31] : memref<1x128xf32, #tpu.memory_space<vmem>>, vector<1x128xf32>
    %cst_32 = arith.constant dense<0.000000e+00> : vector<8xf32>
    %53 = vector.multi_reduction <add>, %50, %cst_32 [1] : vector<8x128xf32> to vector<8xf32>
    %54 = vector.shape_cast %53 : vector<8xf32> to vector<8x1xf32>
    %cst_33 = arith.constant 1.280000e+02 : f32
    %55 = vector.broadcast %cst_33 : f32 to vector<8x1xf32>
    %56 = arith.divf %54, %55 : vector<8x1xf32>
    %57 = vector.broadcast %56 : vector<8x1xf32> to vector<8x128xf32>
    %58 = arith.subf %50, %57 : vector<8x128xf32>
    %59 = arith.mulf %58, %58 : vector<8x128xf32>
    %cst_34 = arith.constant dense<0.000000e+00> : vector<8xf32>
    %60 = vector.multi_reduction <add>, %59, %cst_34 [1] : vector<8x128xf32> to vector<8xf32>
    %61 = vector.shape_cast %60 : vector<8xf32> to vector<8x1xf32>
    %cst_35 = arith.constant 1.280000e+02 : f32
    %62 = vector.broadcast %cst_35 : f32 to vector<8x1xf32>
    %63 = arith.divf %61, %62 : vector<8x1xf32>
    %64 = vector.broadcast %56 : vector<8x1xf32> to vector<8x128xf32>
    %65 = arith.subf %50, %64 : vector<8x128xf32>
    %cst_36 = arith.constant 9.99999974E-6 : f32
    %66 = vector.broadcast %cst_36 : f32 to vector<8x1xf32>
    %67 = arith.addf %63, %66 : vector<8x1xf32>
    %68 = math.rsqrt %67 : vector<8x1xf32>
    %69 = vector.broadcast %68 : vector<8x1xf32> to vector<8x128xf32>
    %70 = arith.mulf %65, %69 : vector<8x128xf32>
    %71 = vector.broadcast %51 : vector<1x128xf32> to vector<8x128xf32>
    %72 = arith.mulf %70, %71 : vector<8x128xf32>
    %73 = vector.broadcast %52 : vector<1x128xf32> to vector<8x128xf32>
    %74 = arith.addf %72, %73 : vector<8x128xf32>
    %c0_37 = arith.constant 0 : index
    %c0_38 = arith.constant 0 : index
    %75 = vector.load %arg9[%c0_37, %c0_38] : memref<1x128xf32, #tpu.memory_space<vmem>>, vector<1x128xf32>
    %c0_39 = arith.constant 0 : index
    %c0_40 = arith.constant 0 : index
    %76 = vector.load %arg10[%c0_39, %c0_40] : memref<1x128xf32, #tpu.memory_space<vmem>>, vector<1x128xf32>
    %cst_41 = arith.constant dense<0.000000e+00> : vector<16xf32>
    %77 = vector.multi_reduction <add>, %48, %cst_41 [1] : vector<16x128xf32> to vector<16xf32>
    %78 = vector.shape_cast %77 : vector<16xf32> to vector<16x1xf32>
    %cst_42 = arith.constant 1.280000e+02 : f32
    %79 = vector.broadcast %cst_42 : f32 to vector<16x1xf32>
    %80 = arith.divf %78, %79 : vector<16x1xf32>
    %81 = vector.broadcast %80 : vector<16x1xf32> to vector<16x128xf32>
    %82 = arith.subf %48, %81 : vector<16x128xf32>
    %83 = arith.mulf %82, %82 : vector<16x128xf32>
    %cst_43 = arith.constant dense<0.000000e+00> : vector<16xf32>
    %84 = vector.multi_reduction <add>, %83, %cst_43 [1] : vector<16x128xf32> to vector<16xf32>
    %85 = vector.shape_cast %84 : vector<16xf32> to vector<16x1xf32>
    %cst_44 = arith.constant 1.280000e+02 : f32
    %86 = vector.broadcast %cst_44 : f32 to vector<16x1xf32>
    %87 = arith.divf %85, %86 : vector<16x1xf32>
    %88 = vector.broadcast %80 : vector<16x1xf32> to vector<16x128xf32>
    %89 = arith.subf %48, %88 : vector<16x128xf32>
    %cst_45 = arith.constant 9.99999974E-6 : f32
    %90 = vector.broadcast %cst_45 : f32 to vector<16x1xf32>
    %91 = arith.addf %87, %90 : vector<16x1xf32>
    %92 = math.rsqrt %91 : vector<16x1xf32>
    %93 = vector.broadcast %92 : vector<16x1xf32> to vector<16x128xf32>
    %94 = arith.mulf %89, %93 : vector<16x128xf32>
    %95 = vector.broadcast %75 : vector<1x128xf32> to vector<16x128xf32>
    %96 = arith.mulf %94, %95 : vector<16x128xf32>
    %97 = vector.broadcast %76 : vector<1x128xf32> to vector<16x128xf32>
    %98 = arith.addf %96, %97 : vector<16x128xf32>
    %c0_46 = arith.constant 0 : index
    %c0_47 = arith.constant 0 : index
    %99 = vector.load %arg11[%c0_46, %c0_47] : memref<128x128xf32, #tpu.memory_space<vmem>>, vector<128x128xf32>
    %cst_48 = arith.constant dense<0.000000e+00> : vector<8x128xf32>
    %100 = tpu.matmul %74, %99, %cst_48 {dimension_numbers = #tpu.dot_dimension_numbers<[1], [0], [0], [1], [0, 0, 1, 1], [], []>} : vector<8x128xf32>, vector<128x128xf32>, vector<8x128xf32> -> vector<8x128xf32>
    %c0_49 = arith.constant 0 : index
    %c0_50 = arith.constant 0 : index
    %101 = vector.load %arg12[%c0_49, %c0_50] : memref<1x128xf32, #tpu.memory_space<vmem>>, vector<1x128xf32>
    %102 = vector.broadcast %101 : vector<1x128xf32> to vector<8x128xf32>
    %103 = arith.addf %100, %102 : vector<8x128xf32>
    %c0_51 = arith.constant 0 : index
    %c0_52 = arith.constant 0 : index
    %104 = vector.load %arg13[%c0_51, %c0_52] : memref<128x256xf32, #tpu.memory_space<vmem>>, vector<128x256xf32>
    %cst_53 = arith.constant dense<0.000000e+00> : vector<16x256xf32>
    %105 = tpu.matmul %98, %104, %cst_53 {dimension_numbers = #tpu.dot_dimension_numbers<[1], [0], [0], [1], [0, 0, 1, 1], [], []>} : vector<16x128xf32>, vector<128x256xf32>, vector<16x256xf32> -> vector<16x256xf32>
    %c0_54 = arith.constant 0 : index
    %c0_55 = arith.constant 0 : index
    %106 = vector.load %arg14[%c0_54, %c0_55] : memref<1x256xf32, #tpu.memory_space<vmem>>, vector<1x256xf32>
    %107 = vector.broadcast %106 : vector<1x256xf32> to vector<16x256xf32>
    %108 = arith.addf %105, %107 : vector<16x256xf32>
    %109 = vector.extract_strided_slice %108 {offsets = [0, 0], sizes = [16, 128], strides = [1, 1]} : vector<16x256xf32> to vector<16x128xf32>
    %110 = vector.extract_strided_slice %108 {offsets = [0, 128], sizes = [16, 128], strides = [1, 1]} : vector<16x256xf32> to vector<16x128xf32>
    %111 = vector.shape_cast %103 : vector<8x128xf32> to vector<8x8x16xf32>
    %112 = tpu.transpose %111, [1, 0, 2] : vector<8x8x16xf32> -> vector<8x8x16xf32>
    %113 = vector.shape_cast %109 : vector<16x128xf32> to vector<16x8x16xf32>
    %114 = tpu.transpose %113, [1, 0, 2] : vector<16x8x16xf32> -> vector<8x16x16xf32>
    %115 = vector.shape_cast %110 : vector<16x128xf32> to vector<16x8x16xf32>
    %116 = tpu.transpose %115, [1, 0, 2] : vector<16x8x16xf32> -> vector<8x16x16xf32>
    "tpu.trace_start"() <{level = 10 : i32, message = "hqd,hkd->hqk"}> : () -> ()
    %cst_56 = arith.constant dense<0.000000e+00> : vector<8x8x16xf32>
    %117 = tpu.matmul %112, %114, %cst_56 {dimension_numbers = #tpu.dot_dimension_numbers<[2], [2], [1], [1], [0, 0, 0, 1, 1, 1], [0], [0]>} : vector<8x8x16xf32>, vector<8x16x16xf32>, vector<8x8x16xf32> -> vector<8x8x16xf32>
    "tpu.trace_stop"() : () -> ()
    %cst_57 = arith.constant dense<0xFF800000> : vector<8x8xf32>
    %118 = vector.multi_reduction <maximumf>, %117, %cst_57 [2] : vector<8x8x16xf32> to vector<8x8xf32>
    %119 = vector.shape_cast %118 : vector<8x8xf32> to vector<8x8x1xf32>
    %120 = vector.broadcast %119 : vector<8x8x1xf32> to vector<8x8x16xf32>
    %121 = arith.subf %117, %120 : vector<8x8x16xf32>
    %122 = math.exp %121 : vector<8x8x16xf32>
    %cst_58 = arith.constant dense<0.000000e+00> : vector<8x8xf32>
    %123 = vector.multi_reduction <add>, %122, %cst_58 [2] : vector<8x8x16xf32> to vector<8x8xf32>
    %124 = vector.shape_cast %123 : vector<8x8xf32> to vector<8x8x1xf32>
    %125 = tpu.reciprocal %124 {approx = true} : vector<8x8x1xf32> -> vector<8x8x1xf32>
    %126 = vector.broadcast %125 : vector<8x8x1xf32> to vector<8x8x16xf32>
    %127 = arith.mulf %122, %126 : vector<8x8x16xf32>
    "tpu.trace_start"() <{level = 10 : i32, message = "hqk,hkd->hqd"}> : () -> ()
    %cst_59 = arith.constant dense<0.000000e+00> : vector<8x8x16xf32>
    %128 = tpu.matmul %127, %116, %cst_59 {dimension_numbers = #tpu.dot_dimension_numbers<[2], [1], [1], [2], [0, 0, 0, 1, 1, 2], [0], [0]>} : vector<8x8x16xf32>, vector<8x16x16xf32>, vector<8x8x16xf32> -> vector<8x8x16xf32>
    "tpu.trace_stop"() : () -> ()
    %129 = tpu.transpose %128, [1, 0, 2] : vector<8x8x16xf32> -> vector<8x8x16xf32>
    %130 = vector.shape_cast %129 : vector<8x8x16xf32> to vector<8x128xf32>
    %c0_60 = arith.constant 0 : index
    %c0_61 = arith.constant 0 : index
    %131 = vector.load %arg15[%c0_60, %c0_61] : memref<128x128xf32, #tpu.memory_space<vmem>>, vector<128x128xf32>
    %cst_62 = arith.constant dense<0.000000e+00> : vector<8x128xf32>
    %132 = tpu.matmul %130, %131, %cst_62 {dimension_numbers = #tpu.dot_dimension_numbers<[1], [0], [0], [1], [0, 0, 1, 1], [], []>} : vector<8x128xf32>, vector<128x128xf32>, vector<8x128xf32> -> vector<8x128xf32>
    %c0_63 = arith.constant 0 : index
    %c0_64 = arith.constant 0 : index
    %133 = vector.load %arg16[%c0_63, %c0_64] : memref<1x128xf32, #tpu.memory_space<vmem>>, vector<1x128xf32>
    %134 = vector.broadcast %133 : vector<1x128xf32> to vector<8x128xf32>
    %135 = arith.addf %132, %134 : vector<8x128xf32>
    %136 = arith.addf %50, %135 : vector<8x128xf32>
    %c0_65 = arith.constant 0 : index
    %c0_66 = arith.constant 0 : index
    %137 = vector.load %arg17[%c0_65, %c0_66] : memref<1x128xf32, #tpu.memory_space<vmem>>, vector<1x128xf32>
    %c0_67 = arith.constant 0 : index
    %c0_68 = arith.constant 0 : index
    %138 = vector.load %arg18[%c0_67, %c0_68] : memref<1x128xf32, #tpu.memory_space<vmem>>, vector<1x128xf32>
    %cst_69 = arith.constant dense<0.000000e+00> : vector<8xf32>
    %139 = vector.multi_reduction <add>, %136, %cst_69 [1] : vector<8x128xf32> to vector<8xf32>
    %140 = vector.shape_cast %139 : vector<8xf32> to vector<8x1xf32>
    %cst_70 = arith.constant 1.280000e+02 : f32
    %141 = vector.broadcast %cst_70 : f32 to vector<8x1xf32>
    %142 = arith.divf %140, %141 : vector<8x1xf32>
    %143 = vector.broadcast %142 : vector<8x1xf32> to vector<8x128xf32>
    %144 = arith.subf %136, %143 : vector<8x128xf32>
    %145 = arith.mulf %144, %144 : vector<8x128xf32>
    %cst_71 = arith.constant dense<0.000000e+00> : vector<8xf32>
    %146 = vector.multi_reduction <add>, %145, %cst_71 [1] : vector<8x128xf32> to vector<8xf32>
    %147 = vector.shape_cast %146 : vector<8xf32> to vector<8x1xf32>
    %cst_72 = arith.constant 1.280000e+02 : f32
    %148 = vector.broadcast %cst_72 : f32 to vector<8x1xf32>
    %149 = arith.divf %147, %148 : vector<8x1xf32>
    %150 = vector.broadcast %142 : vector<8x1xf32> to vector<8x128xf32>
    %151 = arith.subf %136, %150 : vector<8x128xf32>
    %cst_73 = arith.constant 9.99999974E-6 : f32
    %152 = vector.broadcast %cst_73 : f32 to vector<8x1xf32>
    %153 = arith.addf %149, %152 : vector<8x1xf32>
    %154 = math.rsqrt %153 : vector<8x1xf32>
    %155 = vector.broadcast %154 : vector<8x1xf32> to vector<8x128xf32>
    %156 = arith.mulf %151, %155 : vector<8x128xf32>
    %157 = vector.broadcast %137 : vector<1x128xf32> to vector<8x128xf32>
    %158 = arith.mulf %156, %157 : vector<8x128xf32>
    %159 = vector.broadcast %138 : vector<1x128xf32> to vector<8x128xf32>
    %160 = arith.addf %158, %159 : vector<8x128xf32>
    %c0_74 = arith.constant 0 : index
    %c0_75 = arith.constant 0 : index
    %161 = vector.load %arg19[%c0_74, %c0_75] : memref<128x256xf32, #tpu.memory_space<vmem>>, vector<128x256xf32>
    %cst_76 = arith.constant dense<0.000000e+00> : vector<8x256xf32>
    %162 = tpu.matmul %160, %161, %cst_76 {dimension_numbers = #tpu.dot_dimension_numbers<[1], [0], [0], [1], [0, 0, 1, 1], [], []>} : vector<8x128xf32>, vector<128x256xf32>, vector<8x256xf32> -> vector<8x256xf32>
    %c0_77 = arith.constant 0 : index
    %c0_78 = arith.constant 0 : index
    %163 = vector.load %arg20[%c0_77, %c0_78] : memref<1x256xf32, #tpu.memory_space<vmem>>, vector<1x256xf32>
    %164 = vector.broadcast %163 : vector<1x256xf32> to vector<8x256xf32>
    %165 = arith.addf %162, %164 : vector<8x256xf32>
    %cst_79 = arith.constant 5.000000e-01 : f32
    %166 = vector.broadcast %cst_79 : f32 to vector<8x256xf32>
    %167 = arith.mulf %166, %165 : vector<8x256xf32>
    %cst_80 = arith.constant 4.471500e-02 : f32
    %168 = vector.broadcast %cst_80 : f32 to vector<8x256xf32>
    %169 = arith.mulf %168, %165 : vector<8x256xf32>
    %170 = arith.mulf %169, %165 : vector<8x256xf32>
    %171 = arith.mulf %170, %165 : vector<8x256xf32>
    %172 = arith.addf %165, %171 : vector<8x256xf32>
    %cst_81 = arith.constant 0.797884583 : f32
    %173 = vector.broadcast %cst_81 : f32 to vector<8x256xf32>
    %174 = arith.mulf %173, %172 : vector<8x256xf32>
    %175 = math.tanh %174 : vector<8x256xf32>
    %cst_82 = arith.constant 1.000000e+00 : f32
    %176 = vector.broadcast %cst_82 : f32 to vector<8x256xf32>
    %177 = arith.addf %176, %175 : vector<8x256xf32>
    %178 = arith.mulf %167, %177 : vector<8x256xf32>
    %c0_83 = arith.constant 0 : index
    %c0_84 = arith.constant 0 : index
    %179 = vector.load %arg21[%c0_83, %c0_84] : memref<256x128xf32, #tpu.memory_space<vmem>>, vector<256x128xf32>
    %cst_85 = arith.constant dense<0.000000e+00> : vector<8x128xf32>
    %180 = tpu.matmul %178, %179, %cst_85 {dimension_numbers = #tpu.dot_dimension_numbers<[1], [0], [0], [1], [0, 0, 1, 1], [], []>} : vector<8x256xf32>, vector<256x128xf32>, vector<8x128xf32> -> vector<8x128xf32>
    %c0_86 = arith.constant 0 : index
    %c0_87 = arith.constant 0 : index
    %181 = vector.load %arg22[%c0_86, %c0_87] : memref<1x128xf32, #tpu.memory_space<vmem>>, vector<1x128xf32>
    %182 = vector.broadcast %181 : vector<1x128xf32> to vector<8x128xf32>
    %183 = arith.addf %180, %182 : vector<8x128xf32>
    %184 = arith.addf %136, %183 : vector<8x128xf32>
    %c0_88 = arith.constant 0 : index
    %c0_89 = arith.constant 0 : index
    %c0_90 = arith.constant 0 : index
    %185 = vector.load %arg23[%c0_88, %c0_89, %c0_90] : memref<1x8x128xf32, #tpu.memory_space<vmem>>, vector<1x8x128xf32>
    %186 = vector.shape_cast %185 : vector<1x8x128xf32> to vector<8x128xf32>
    %187 = vector.shape_cast %184 : vector<8x128xf32> to vector<1x8x128xf32>
    tpu.vector_store %arg23[%c0_88, %c0_89, %c0_90], %187 {strides = array<i32>} : memref<1x8x128xf32, #tpu.memory_space<vmem>>, vector<1x8x128xf32>,
    return
  }
  func.func @transform_0(%arg0: i32) -> (i32, i32, i32) {
    %c0_i32 = arith.constant 0 : i32
    %c0_i32_0 = arith.constant 0 : i32
    %c0_i32_1 = arith.constant 0 : i32
    return %arg0, %c0_i32, %c0_i32_0 : i32, i32, i32
  }
  func.func @transform_1(%arg0: i32) -> (i32, i32, i32) {
    %c0_i32 = arith.constant 0 : i32
    %c0_i32_0 = arith.constant 0 : i32
    %c0_i32_1 = arith.constant 0 : i32
    return %arg0, %c0_i32, %c0_i32_0 : i32, i32, i32
  }
  func.func @transform_2(%arg0: i32) -> (i32, i32, i32) {
    %c0_i32 = arith.constant 0 : i32
    %c0_i32_0 = arith.constant 0 : i32
    %c0_i32_1 = arith.constant 0 : i32
    return %arg0, %c0_i32, %c0_i32_0 : i32, i32, i32
  }
  func.func @transform_3(%arg0: i32) -> (i32, i32) {
    %c0_i32 = arith.constant 0 : i32
    %c0_i32_0 = arith.constant 0 : i32
    %c0_i32_1 = arith.constant 0 : i32
    return %c0_i32, %c0_i32_0 : i32, i32
  }
  func.func @transform_4(%arg0: i32) -> (i32, i32) {
    %c0_i32 = arith.constant 0 : i32
    %c0_i32_0 = arith.constant 0 : i32
    %c0_i32_1 = arith.constant 0 : i32
    return %c0_i32, %c0_i32_0 : i32, i32
  }
  func.func @transform_5(%arg0: i32) -> (i32, i32) {
    %c0_i32 = arith.constant 0 : i32
    %c0_i32_0 = arith.constant 0 : i32
    %c0_i32_1 = arith.constant 0 : i32
    return %c0_i32, %c0_i32_0 : i32, i32
  }
  func.func @transform_6(%arg0: i32) -> (i32, i32) {
    %c0_i32 = arith.constant 0 : i32
    %c0_i32_0 = arith.constant 0 : i32
    %c0_i32_1 = arith.constant 0 : i32
    return %c0_i32, %c0_i32_0 : i32, i32
  }
  func.func @transform_7(%arg0: i32) -> (i32, i32) {
    %c0_i32 = arith.constant 0 : i32
    %c0_i32_0 = arith.constant 0 : i32
    %c0_i32_1 = arith.constant 0 : i32
    return %c0_i32, %c0_i32_0 : i32, i32
  }
  func.func @transform_8(%arg0: i32) -> (i32, i32) {
    %c0_i32 = arith.constant 0 : i32
    %c0_i32_0 = arith.constant 0 : i32
    %c0_i32_1 = arith.constant 0 : i32
    return %c0_i32, %c0_i32_0 : i32, i32
  }
  func.func @transform_9(%arg0: i32) -> (i32, i32) {
    %c0_i32 = arith.constant 0 : i32
    %c0_i32_0 = arith.constant 0 : i32
    %c0_i32_1 = arith.constant 0 : i32
    return %c0_i32, %c0_i32_0 : i32, i32
  }
  func.func @transform_10(%arg0: i32) -> (i32, i32) {
    %c0_i32 = arith.constant 0 : i32
    %c0_i32_0 = arith.constant 0 : i32
    %c0_i32_1 = arith.constant 0 : i32
    return %c0_i32, %c0_i32_0 : i32, i32
  }
  func.func @transform_11(%arg0: i32) -> (i32, i32) {
    %c0_i32 = arith.constant 0 : i32
    %c0_i32_0 = arith.constant 0 : i32
    %c0_i32_1 = arith.constant 0 : i32
    return %c0_i32, %c0_i32_0 : i32, i32
  }
  func.func @transform_12(%arg0: i32) -> (i32, i32) {
    %c0_i32 = arith.constant 0 : i32
    %c0_i32_0 = arith.constant 0 : i32
    %c0_i32_1 = arith.constant 0 : i32
    return %c0_i32, %c0_i32_0 : i32, i32
  }
  func.func @transform_13(%arg0: i32) -> (i32, i32) {
    %c0_i32 = arith.constant 0 : i32
    %c0_i32_0 = arith.constant 0 : i32
    %c0_i32_1 = arith.constant 0 : i32
    return %c0_i32, %c0_i32_0 : i32, i32
  }
  func.func @transform_14(%arg0: i32) -> (i32, i32) {
    %c0_i32 = arith.constant 0 : i32
    %c0_i32_0 = arith.constant 0 : i32
    %c0_i32_1 = arith.constant 0 : i32
    return %c0_i32, %c0_i32_0 : i32, i32
  }
  func.func @transform_15(%arg0: i32) -> (i32, i32) {
    %c0_i32 = arith.constant 0 : i32
    %c0_i32_0 = arith.constant 0 : i32
    %c0_i32_1 = arith.constant 0 : i32
    return %c0_i32, %c0_i32_0 : i32, i32
  }
  func.func @transform_16(%arg0: i32) -> (i32, i32) {
    %c0_i32 = arith.constant 0 : i32
    %c0_i32_0 = arith.constant 0 : i32
    %c0_i32_1 = arith.constant 0 : i32
    return %c0_i32, %c0_i32_0 : i32, i32
  }
  func.func @transform_17(%arg0: i32) -> (i32, i32) {
    %c0_i32 = arith.constant 0 : i32
    %c0_i32_0 = arith.constant 0 : i32
    %c0_i32_1 = arith.constant 0 : i32
    return %c0_i32, %c0_i32_0 : i32, i32
  }
  func.func @transform_18(%arg0: i32) -> (i32, i32) {
    %c0_i32 = arith.constant 0 : i32
    %c0_i32_0 = arith.constant 0 : i32
    %c0_i32_1 = arith.constant 0 : i32
    return %c0_i32, %c0_i32_0 : i32, i32
  }
  func.func @transform_19(%arg0: i32) -> (i32, i32) {
    %c0_i32 = arith.constant 0 : i32
    %c0_i32_0 = arith.constant 0 : i32
    %c0_i32_1 = arith.constant 0 : i32
    return %c0_i32, %c0_i32_0 : i32, i32
  }
  func.func @transform_20(%arg0: i32) -> (i32, i32) {
    %c0_i32 = arith.constant 0 : i32
    %c0_i32_0 = arith.constant 0 : i32
    %c0_i32_1 = arith.constant 0 : i32
    return %c0_i32, %c0_i32_0 : i32, i32
  }
  func.func @transform_21(%arg0: i32) -> (i32, i32) {
    %c0_i32 = arith.constant 0 : i32
    %c0_i32_0 = arith.constant 0 : i32
    %c0_i32_1 = arith.constant 0 : i32
    return %c0_i32, %c0_i32_0 : i32, i32
  }
  func.func @transform_22(%arg0: i32) -> (i32, i32, i32) {
    %c0_i32 = arith.constant 0 : i32
    %c0_i32_0 = arith.constant 0 : i32
    %c0_i32_1 = arith.constant 0 : i32
    return %arg0, %c0_i32, %c0_i32_0 : i32, i32, i32
  }
}

</mosaic_0001>

<llo_original>
// kernel: tpu_custom_call.1
$region0: #{tpu_custom_call.1}
  #allocation0 [shape = 'u32[]', space=smem, size = 0x4, offset = 0x4, fixed_abs, tag = 'smem constant byte address 0x4 - core index']
  #allocation1 [shape = 'u32[144,128]{1,0:T(1,128)}', space=vmem, size = 0x12000, scoped, tag = 'internal scratch']
  %s0 = inlined_call_operand.hbm [shape: f32[2,8,128], index: 0, kind: input, shape index: {}]
  %s1 = inlined_call_operand.hbm [shape: f32[2,16,128], index: 1, kind: input, shape index: {}]
  %s2 = inlined_call_operand.hbm [shape: f32[2,16,128], index: 2, kind: input, shape index: {}]
  %s3 = inlined_call_operand.hbm [shape: f32[128,128], index: 3, kind: input, shape index: {}]
  %s4 = inlined_call_operand.hbm [shape: f32[128,128], index: 4, kind: input, shape index: {}]
  %s5 = inlined_call_operand.vmem [shape: f32[1,128], index: 5, kind: input, shape index: {}]
  %s6 = inlined_call_operand.vmem [shape: f32[1,128], index: 6, kind: input, shape index: {}]
  %s7 = inlined_call_operand.vmem [shape: f32[1,128], index: 7, kind: input, shape index: {}]
  %s8 = inlined_call_operand.vmem [shape: f32[1,128], index: 8, kind: input, shape index: {}]
  %s9 = inlined_call_operand.vmem [shape: f32[1,128], index: 9, kind: input, shape index: {}]
  %s10 = inlined_call_operand.hbm [shape: f32[128,128], index: 10, kind: input, shape index: {}]
  %s11 = inlined_call_operand.vmem [shape: f32[1,128], index: 11, kind: input, shape index: {}]
  %s12 = inlined_call_operand.hbm [shape: f32[128,256], index: 12, kind: input, shape index: {}]
  %s13 = inlined_call_operand.vmem [shape: f32[1,256], index: 13, kind: input, shape index: {}]
  %s14 = inlined_call_operand.hbm [shape: f32[128,128], index: 14, kind: input, shape index: {}]
  %s15 = inlined_call_operand.vmem [shape: f32[1,128], index: 15, kind: input, shape index: {}]
  %s16 = inlined_call_operand.vmem [shape: f32[1,128], index: 16, kind: input, shape index: {}]
  %s17 = inlined_call_operand.vmem [shape: f32[1,128], index: 17, kind: input, shape index: {}]
  %s18 = inlined_call_operand.hbm [shape: f32[128,256], index: 18, kind: input, shape index: {}]
  %s19 = inlined_call_operand.vmem [shape: f32[1,256], index: 19, kind: input, shape index: {}]
  %s20 = inlined_call_operand.hbm [shape: f32[256,128], index: 20, kind: input, shape index: {}]
  %s21 = inlined_call_operand.vmem [shape: f32[1,128], index: 21, kind: input, shape index: {}]
  %s22 = inlined_call_operand.hbm [shape: f32[2,8,128], index: 22, kind: output, shape index: {}]
  %s23 = sld [smem:[#allocation0]]
  $region161: #{tpu_custom_call.1} parent=0
    _
  %s25 = ssub.s32 1, %s23
  %s26 = scalar_select 0, %s25, %s23
  $region1: #{tpu_custom_call.1} parent=0
    #allocation2 [shape = 'u8[8192]{0}', space=vmem, size = 0x2000, scoped, tag = 'input window, operand 0']
    #allocation3 [shape = 's32[2]{0}', space=sflag, size = 0x8, scoped, tag = 'scoped memory for tpu_custom_call.1']
    #allocation4 [shape = 's32[2]{0}', space=sflag, size = 0x8, scoped, tag = 'scoped memory for tpu_custom_call.1']
    #allocation5 [shape = 'u8[16384]{0}', space=vmem, size = 0x4000, scoped, tag = 'input window, operand 1']
    #allocation6 [shape = 's32[2]{0}', space=sflag, size = 0x8, scoped, tag = 'scoped memory for tpu_custom_call.1']
    #allocation7 [shape = 'u8[16384]{0}', space=vmem, size = 0x4000, scoped, tag = 'input window, operand 2']
    #allocation8 [shape = 'u8[65536]{0}', space=vmem, size = 0x10000, scoped, tag = 'input window, operand 3, single buffered']
    #allocation9 [shape = 's32[1]{0}', space=sflag, size = 0x4, scoped, tag = 'scoped memory for tpu_custom_call.1']
    #allocation10 [shape = 'u8[65536]{0}', space=vmem, size = 0x10000, scoped, tag = 'input window, operand 4, single buffered']
    #allocation11 [shape = 'u8[65536]{0}', space=vmem, size = 0x10000, scoped, tag = 'input window, operand 10, single buffered']
    #allocation12 [shape = 's32[1]{0}', space=sflag, size = 0x4, scoped, tag = 'scoped memory for tpu_custom_call.1']
    #allocation13 [shape = 'u8[131072]{0}', space=vmem, size = 0x20000, scoped, tag = 'input window, operand 12, single buffered']
    #allocation14 [shape = 'u8[65536]{0}', space=vmem, size = 0x10000, scoped, tag = 'input window, operand 14, single buffered']
    #allocation15 [shape = 's32[1]{0}', space=sflag, size = 0x4, scoped, tag = 'scoped memory for tpu_custom_call.1']
    #allocation16 [shape = 'u8[131072]{0}', space=vmem, size = 0x20000, scoped, tag = 'input window, operand 18, single buffered']
    #allocation17 [shape = 'u8[131072]{0}', space=vmem, size = 0x20000, scoped, tag = 'input window, operand 20, single buffered']
    #allocation18 [shape = 's32[1]{0}', space=sflag, size = 0x4, scoped, tag = 'scoped memory for tpu_custom_call.1']
    #allocation19 [shape = 'u8[8192]{0}', space=vmem, size = 0x2000, scoped, tag = 'output window, operand 0']
    %27 = vsyncpa [#allocation3], 0
    %s28 = scalar_lea.sflag [#allocation3], 1
    %29 = vsyncpa %s28, 0
    %30 = vsyncpa [#allocation6], 0
    %s31 = scalar_lea.sflag [#allocation6], 1
    %32 = vsyncpa %s31, 0
    %33 = vsyncpa [#allocation9], 0
    %34 = vsyncpa [#allocation12], 0
    %35 = vsyncpa [#allocation15], 0
    %36 = vsyncpa [#allocation18], 0
    %37 = vsyncpa [#allocation4], 0
    %s38 = scalar_lea.sflag [#allocation4], 1
    %39 = vsyncpa %s38, 0
    loop: start=0, step=1, limit=4
    $region2: #{tpu_custom_call.1} parent=1 // loop_pre_header
      _
    $region3: #{tpu_custom_call.1} parent=1 // loop_header
      %s41 = sphi 0, %s45
      %p42 = scmp.ge.s32.totalorder %s41, 4
      %s51 = sphi 0, %s53
      %s54 = sphi 0, %s51
      %s55 = sphi 0, %s54
      %s71 = sphi 0, %s55
      %s77 = sphi 0, %s79
      %s80 = sphi 0, %s77
      %s81 = sphi 0, %s80
      %s97 = sphi 0, %s81
      %s103 = sphi 0, %s105
      %s106 = sphi 0, %s103
      %s107 = sphi 0, %s106
      %s123 = sphi 0, %s107
      %s127 = sphi 0, %s127
      %s129 = sphi 0, %s127
      %s130 = sphi 0, %s129
      %s144 = sphi 0, %s130
      %s148 = sphi 0, %s148
      %s150 = sphi 0, %s148
      %s151 = sphi 0, %s150
      %s165 = sphi 0, %s151
      %s169 = sphi 0, %s169
      %s171 = sphi 0, %s169
      %s172 = sphi 0, %s171
      %s186 = sphi 0, %s172
      %s190 = sphi 0, %s190
      %s192 = sphi 0, %s190
      %s193 = sphi 0, %s192
      %s207 = sphi 0, %s193
      %s211 = sphi 0, %s211
      %s213 = sphi 0, %s211
      %s214 = sphi 0, %s213
      %s228 = sphi 0, %s214
      %s232 = sphi 0, %s232
      %s234 = sphi 0, %s232
      %s235 = sphi 0, %s234
      %s249 = sphi 0, %s235
      %s253 = sphi 0, %s253
      %s255 = sphi 0, %s253
      %s256 = sphi 0, %s255
      %s270 = sphi 0, %s256
      %s274 = sphi 0, %s274
      %s276 = sphi 0, %s274
      %s277 = sphi 0, %s276
      %s291 = sphi 0, %s277
      %s295 = sphi 0, %s295
      %s297 = sphi 0, %s295
      %s298 = sphi 0, %s297
      %s312 = sphi 0, %s298
      %s316 = sphi 0, %s316
      %s318 = sphi 0, %s316
      %s319 = sphi 0, %s318
      %s333 = sphi 0, %s319
      %s337 = sphi 0, %s337
      %s339 = sphi 0, %s337
      %s340 = sphi 0, %s339
      %s354 = sphi 0, %s340
      %s358 = sphi 0, %s358
      %s360 = sphi 0, %s358
      %s361 = sphi 0, %s360
      %s375 = sphi 0, %s361
      %s379 = sphi 0, %s379
      %s381 = sphi 0, %s379
      %s382 = sphi 0, %s381
      %s396 = sphi 0, %s382
      %s400 = sphi 0, %s400
      %s402 = sphi 0, %s400
      %s403 = sphi 0, %s402
      %s417 = sphi 0, %s403
      %s421 = sphi 0, %s421
      %s423 = sphi 0, %s421
      %s424 = sphi 0, %s423
      %s438 = sphi 0, %s424
      %s442 = sphi 0, %s442
      %s444 = sphi 0, %s442
      %s445 = sphi 0, %s444
      %s459 = sphi 0, %s445
      %s463 = sphi 0, %s463
      %s465 = sphi 0, %s463
      %s466 = sphi 0, %s465
      %s480 = sphi 0, %s466
      %s484 = sphi 0, %s484
      %s486 = sphi 0, %s484
      %s487 = sphi 0, %s486
      %s501 = sphi 0, %s487
      %s505 = sphi 0, %s505
      %s507 = sphi 0, %s505
      %s508 = sphi 0, %s507
      %s522 = sphi 0, %s508
      %s528 = sphi 0, %s530
      %s531 = sphi 0, %s528
      %s532 = sphi 0, %s531
      %s548 = sphi 0, %s532
    $region4: #{tpu_custom_call.1} parent=1 // loop_header_branch
      %44 = sbr.rel (%p42) target = $region8
    $region5: #{tpu_custom_call.1} parent=1 // loop_body
      %s46 = ssub.s32 %s41, 1
      %s47 = ssub.s32 %s41, 2
      %s48 = sadd.s32 %s41, 1
      %s49 = ssub.s32 %s41, %s48
      %p50 = scmp.eq.s32.totalorder %s49, 0
      %s52 = sadd.s32 %s51, 1
      %s53 = scalar_select %p50, %s51, %s52
      %p56 = pneg %p50
      %p57 = scmp.eq.s32.totalorder %s41, 1
      %p58 = por %p56, %p57
      %p59 = scmp.ne.s32.totalorder %s51, %s54
      %p60 = scmp.eq.s32.totalorder %s41, 0
      %p61 = por %p59, %p60
      %p62 = scmp.ne.s32.totalorder %s51, %s54
      %p63 = scmp.eq.s32.totalorder %s46, 1
      %p64 = por %p62, %p63
      %p65 = scmp.ne.s32.totalorder %s54, %s55
      %p66 = scmp.eq.s32.totalorder %s46, 0
      %p67 = por %p65, %p66
      %p68 = scmp.ne.s32.totalorder %s54, %s55
      %p69 = scmp.eq.s32.totalorder %s47, 1
      %p70 = por %p68, %p69
      %p72 = scmp.ne.s32.totalorder %s55, %s71
      %p73 = scmp.eq.s32.totalorder %s47, 0
      %p74 = por %p72, %p73
      %s75 = ssub.s32 %s41, %s48
      %p76 = scmp.eq.s32.totalorder %s75, 0
      %s78 = sadd.s32 %s77, 1
      %s79 = scalar_select %p76, %s77, %s78
      %p82 = pneg %p76
      %p83 = scmp.eq.s32.totalorder %s41, 1
      %p84 = por %p82, %p83
      %p85 = scmp.ne.s32.totalorder %s77, %s80
      %p86 = scmp.eq.s32.totalorder %s41, 0
      %p87 = por %p85, %p86
      %p88 = scmp.ne.s32.totalorder %s77, %s80
      %p89 = scmp.eq.s32.totalorder %s46, 1
      %p90 = por %p88, %p89
      %p91 = scmp.ne.s32.totalorder %s80, %s81
      %p92 = scmp.eq.s32.totalorder %s46, 0
      %p93 = por %p91, %p92
      %p94 = scmp.ne.s32.totalorder %s80, %s81
      %p95 = scmp.eq.s32.totalorder %s47, 1
      %p96 = por %p94, %p95
      %p98 = scmp.ne.s32.totalorder %s81, %s97
      %p99 = scmp.eq.s32.totalorder %s47, 0
      %p100 = por %p98, %p99
      %s101 = ssub.s32 %s41, %s48
      %p102 = scmp.eq.s32.totalorder %s101, 0
      %s104 = sadd.s32 %s103, 1
      %s105 = scalar_select %p102, %s103, %s104
      %p108 = pneg %p102
      %p109 = scmp.eq.s32.totalorder %s41, 1
      %p110 = por %p108, %p109
      %p111 = scmp.ne.s32.totalorder %s103, %s106
      %p112 = scmp.eq.s32.totalorder %s41, 0
      %p113 = por %p111, %p112
      %p114 = scmp.ne.s32.totalorder %s103, %s106
      %p115 = scmp.eq.s32.totalorder %s46, 1
      %p116 = por %p114, %p115
      %p117 = scmp.ne.s32.totalorder %s106, %s107
      %p118 = scmp.eq.s32.totalorder %s46, 0
      %p119 = por %p117, %p118
      %p120 = scmp.ne.s32.totalorder %s106, %s107
      %p121 = scmp.eq.s32.totalorder %s47, 1
      %p122 = por %p120, %p121
      %p124 = scmp.ne.s32.totalorder %s107, %s123
      %p125 = scmp.eq.s32.totalorder %s47, 0
      %p126 = por %p124, %p125
      %s128 = sadd.s32 %s127, 1
      %p131 = scmp.eq.s32.totalorder %s41, 1
      %p132 = scmp.ne.s32.totalorder %s127, %s129
      %p133 = scmp.eq.s32.totalorder %s41, 0
      %p134 = por %p132, %p133
      %p135 = scmp.ne.s32.totalorder %s127, %s129
      %p136 = scmp.eq.s32.totalorder %s46, 1
      %p137 = por %p135, %p136
      %p138 = scmp.ne.s32.totalorder %s129, %s130
      %p139 = scmp.eq.s32.totalorder %s46, 0
      %p140 = por %p138, %p139
      %p141 = scmp.ne.s32.totalorder %s129, %s130
      %p142 = scmp.eq.s32.totalorder %s47, 1
      %p143 = por %p141, %p142
      %p145 = scmp.ne.s32.totalorder %s130, %s144
      %p146 = scmp.eq.s32.totalorder %s47, 0
      %p147 = por %p145, %p146
      %s149 = sadd.s32 %s148, 1
      %p152 = scmp.eq.s32.totalorder %s41, 1
      %p153 = scmp.ne.s32.totalorder %s148, %s150
      %p154 = scmp.eq.s32.totalorder %s41, 0
      %p155 = por %p153, %p154
      %p156 = scmp.ne.s32.totalorder %s148, %s150
      %p157 = scmp.eq.s32.totalorder %s46, 1
      %p158 = por %p156, %p157
      %p159 = scmp.ne.s32.totalorder %s150, %s151
      %p160 = scmp.eq.s32.totalorder %s46, 0
      %p161 = por %p159, %p160
      %p162 = scmp.ne.s32.totalorder %s150, %s151
      %p163 = scmp.eq.s32.totalorder %s47, 1
      %p164 = por %p162, %p163
      %p166 = scmp.ne.s32.totalorder %s151, %s165
      %p167 = scmp.eq.s32.totalorder %s47, 0
      %p168 = por %p166, %p167
      %s170 = sadd.s32 %s169, 1
      %p173 = scmp.eq.s32.totalorder %s41, 1
      %p174 = scmp.ne.s32.totalorder %s169, %s171
      %p175 = scmp.eq.s32.totalorder %s41, 0
      %p176 = por %p174, %p175
      %p177 = scmp.ne.s32.totalorder %s169, %s171
      %p178 = scmp.eq.s32.totalorder %s46, 1
      %p179 = por %p177, %p178
      %p180 = scmp.ne.s32.totalorder %s171, %s172
      %p181 = scmp.eq.s32.totalorder %s46, 0
      %p182 = por %p180, %p181
      %p183 = scmp.ne.s32.totalorder %s171, %s172
      %p184 = scmp.eq.s32.totalorder %s47, 1
      %p185 = por %p183, %p184
      %p187 = scmp.ne.s32.totalorder %s172, %s186
      %p188 = scmp.eq.s32.totalorder %s47, 0
      %p189 = por %p187, %p188
      %s191 = sadd.s32 %s190, 1
      %p194 = scmp.eq.s32.totalorder %s41, 1
      %p195 = scmp.ne.s32.totalorder %s190, %s192
      %p196 = scmp.eq.s32.totalorder %s41, 0
      %p197 = por %p195, %p196
      %p198 = scmp.ne.s32.totalorder %s190, %s192
      %p199 = scmp.eq.s32.totalorder %s46, 1
      %p200 = por %p198, %p199
      %p201 = scmp.ne.s32.totalorder %s192, %s193
      %p202 = scmp.eq.s32.totalorder %s46, 0
      %p203 = por %p201, %p202
      %p204 = scmp.ne.s32.totalorder %s192, %s193
      %p205 = scmp.eq.s32.totalorder %s47, 1
      %p206 = por %p204, %p205
      %p208 = scmp.ne.s32.totalorder %s193, %s207
      %p209 = scmp.eq.s32.totalorder %s47, 0
      %p210 = por %p208, %p209
      %s212 = sadd.s32 %s211, 1
      %p215 = scmp.eq.s32.totalorder %s41, 1
      %p216 = scmp.ne.s32.totalorder %s211, %s213
      %p217 = scmp.eq.s32.totalorder %s41, 0
      %p218 = por %p216, %p217
      %p219 = scmp.ne.s32.totalorder %s211, %s213
      %p220 = scmp.eq.s32.totalorder %s46, 1
      %p221 = por %p219, %p220
      %p222 = scmp.ne.s32.totalorder %s213, %s214
      %p223 = scmp.eq.s32.totalorder %s46, 0
      %p224 = por %p222, %p223
      %p225 = scmp.ne.s32.totalorder %s213, %s214
      %p226 = scmp.eq.s32.totalorder %s47, 1
      %p227 = por %p225, %p226
      %p229 = scmp.ne.s32.totalorder %s214, %s228
      %p230 = scmp.eq.s32.totalorder %s47, 0
      %p231 = por %p229, %p230
      %s233 = sadd.s32 %s232, 1
      %p236 = scmp.eq.s32.totalorder %s41, 1
      %p237 = scmp.ne.s32.totalorder %s232, %s234
      %p238 = scmp.eq.s32.totalorder %s41, 0
      %p239 = por %p237, %p238
      %p240 = scmp.ne.s32.totalorder %s232, %s234
      %p241 = scmp.eq.s32.totalorder %s46, 1
      %p242 = por %p240, %p241
      %p243 = scmp.ne.s32.totalorder %s234, %s235
      %p244 = scmp.eq.s32.totalorder %s46, 0
      %p245 = por %p243, %p244
      %p246 = scmp.ne.s32.totalorder %s234, %s235
      %p247 = scmp.eq.s32.totalorder %s47, 1
      %p248 = por %p246, %p247
      %p250 = scmp.ne.s32.totalorder %s235, %s249
      %p251 = scmp.eq.s32.totalorder %s47, 0
      %p252 = por %p250, %p251
      %s254 = sadd.s32 %s253, 1
      %p257 = scmp.eq.s32.totalorder %s41, 1
      %p258 = scmp.ne.s32.totalorder %s253, %s255
      %p259 = scmp.eq.s32.totalorder %s41, 0
      %p260 = por %p258, %p259
      %p261 = scmp.ne.s32.totalorder %s253, %s255
      %p262 = scmp.eq.s32.totalorder %s46, 1
      %p263 = por %p261, %p262
      %p264 = scmp.ne.s32.totalorder %s255, %s256
      %p265 = scmp.eq.s32.totalorder %s46, 0
      %p266 = por %p264, %p265
      %p267 = scmp.ne.s32.totalorder %s255, %s256
      %p268 = scmp.eq.s32.totalorder %s47, 1
      %p269 = por %p267, %p268
      %p271 = scmp.ne.s32.totalorder %s256, %s270
      %p272 = scmp.eq.s32.totalorder %s47, 0
      %p273 = por %p271, %p272
      %s275 = sadd.s32 %s274, 1
      %p278 = scmp.eq.s32.totalorder %s41, 1
      %p279 = scmp.ne.s32.totalorder %s274, %s276
      %p280 = scmp.eq.s32.totalorder %s41, 0
      %p281 = por %p279, %p280
      %p282 = scmp.ne.s32.totalorder %s274, %s276
      %p283 = scmp.eq.s32.totalorder %s46, 1
      %p284 = por %p282, %p283
      %p285 = scmp.ne.s32.totalorder %s276, %s277
      %p286 = scmp.eq.s32.totalorder %s46, 0
      %p287 = por %p285, %p286
      %p288 = scmp.ne.s32.totalorder %s276, %s277
      %p289 = scmp.eq.s32.totalorder %s47, 1
      %p290 = por %p288, %p289
      %p292 = scmp.ne.s32.totalorder %s277, %s291
      %p293 = scmp.eq.s32.totalorder %s47, 0
      %p294 = por %p292, %p293
      %s296 = sadd.s32 %s295, 1
      %p299 = scmp.eq.s32.totalorder %s41, 1
      %p300 = scmp.ne.s32.totalorder %s295, %s297
      %p301 = scmp.eq.s32.totalorder %s41, 0
      %p302 = por %p300, %p301
      %p303 = scmp.ne.s32.totalorder %s295, %s297
      %p304 = scmp.eq.s32.totalorder %s46, 1
      %p305 = por %p303, %p304
      %p306 = scmp.ne.s32.totalorder %s297, %s298
      %p307 = scmp.eq.s32.totalorder %s46, 0
      %p308 = por %p306, %p307
      %p309 = scmp.ne.s32.totalorder %s297, %s298
      %p310 = scmp.eq.s32.totalorder %s47, 1
      %p311 = por %p309, %p310
      %p313 = scmp.ne.s32.totalorder %s298, %s312
      %p314 = scmp.eq.s32.totalorder %s47, 0
      %p315 = por %p313, %p314
      %s317 = sadd.s32 %s316, 1
      %p320 = scmp.eq.s32.totalorder %s41, 1
      %p321 = scmp.ne.s32.totalorder %s316, %s318
      %p322 = scmp.eq.s32.totalorder %s41, 0
      %p323 = por %p321, %p322
      %p324 = scmp.ne.s32.totalorder %s316, %s318
      %p325 = scmp.eq.s32.totalorder %s46, 1
      %p326 = por %p324, %p325
      %p327 = scmp.ne.s32.totalorder %s318, %s319
      %p328 = scmp.eq.s32.totalorder %s46, 0
      %p329 = por %p327, %p328
      %p330 = scmp.ne.s32.totalorder %s318, %s319
      %p331 = scmp.eq.s32.totalorder %s47, 1
      %p332 = por %p330, %p331
      %p334 = scmp.ne.s32.totalorder %s319, %s333
      %p335 = scmp.eq.s32.totalorder %s47, 0
      %p336 = por %p334, %p335
      %s338 = sadd.s32 %s337, 1
      %p341 = scmp.eq.s32.totalorder %s41, 1
      %p342 = scmp.ne.s32.totalorder %s337, %s339
      %p343 = scmp.eq.s32.totalorder %s41, 0
      %p344 = por %p342, %p343
      %p345 = scmp.ne.s32.totalorder %s337, %s339
      %p346 = scmp.eq.s32.totalorder %s46, 1
      %p347 = por %p345, %p346
      %p348 = scmp.ne.s32.totalorder %s339, %s340
      %p349 = scmp.eq.s32.totalorder %s46, 0
      %p350 = por %p348, %p349
      %p351 = scmp.ne.s32.totalorder %s339, %s340
      %p352 = scmp.eq.s32.totalorder %s47, 1
      %p353 = por %p351, %p352
      %p355 = scmp.ne.s32.totalorder %s340, %s354
      %p356 = scmp.eq.s32.totalorder %s47, 0
      %p357 = por %p355, %p356
      %s359 = sadd.s32 %s358, 1
      %p362 = scmp.eq.s32.totalorder %s41, 1
      %p363 = scmp.ne.s32.totalorder %s358, %s360
      %p364 = scmp.eq.s32.totalorder %s41, 0
      %p365 = por %p363, %p364
      %p366 = scmp.ne.s32.totalorder %s358, %s360
      %p367 = scmp.eq.s32.totalorder %s46, 1
      %p368 = por %p366, %p367
      %p369 = scmp.ne.s32.totalorder %s360, %s361
      %p370 = scmp.eq.s32.totalorder %s46, 0
      %p371 = por %p369, %p370
      %p372 = scmp.ne.s32.totalorder %s360, %s361
      %p373 = scmp.eq.s32.totalorder %s47, 1
      %p374 = por %p372, %p373
      %p376 = scmp.ne.s32.totalorder %s361, %s375
      %p377 = scmp.eq.s32.totalorder %s47, 0
      %p378 = por %p376, %p377
      %s380 = sadd.s32 %s379, 1
      %p383 = scmp.eq.s32.totalorder %s41, 1
      %p384 = scmp.ne.s32.totalorder %s379, %s381
      %p385 = scmp.eq.s32.totalorder %s41, 0
      %p386 = por %p384, %p385
      %p387 = scmp.ne.s32.totalorder %s379, %s381
      %p388 = scmp.eq.s32.totalorder %s46, 1
      %p389 = por %p387, %p388
      %p390 = scmp.ne.s32.totalorder %s381, %s382
      %p391 = scmp.eq.s32.totalorder %s46, 0
      %p392 = por %p390, %p391
      %p393 = scmp.ne.s32.totalorder %s381, %s382
      %p394 = scmp.eq.s32.totalorder %s47, 1
      %p395 = por %p393, %p394
      %p397 = scmp.ne.s32.totalorder %s382, %s396
      %p398 = scmp.eq.s32.totalorder %s47, 0
      %p399 = por %p397, %p398
      %s401 = sadd.s32 %s400, 1
      %p404 = scmp.eq.s32.totalorder %s41, 1
      %p405 = scmp.ne.s32.totalorder %s400, %s402
      %p406 = scmp.eq.s32.totalorder %s41, 0
      %p407 = por %p405, %p406
      %p408 = scmp.ne.s32.totalorder %s400, %s402
      %p409 = scmp.eq.s32.totalorder %s46, 1
      %p410 = por %p408, %p409
      %p411 = scmp.ne.s32.totalorder %s402, %s403
      %p412 = scmp.eq.s32.totalorder %s46, 0
      %p413 = por %p411, %p412
      %p414 = scmp.ne.s32.totalorder %s402, %s403
      %p415 = scmp.eq.s32.totalorder %s47, 1
      %p416 = por %p414, %p415
      %p418 = scmp.ne.s32.totalorder %s403, %s417
      %p419 = scmp.eq.s32.totalorder %s47, 0
      %p420 = por %p418, %p419
      %s422 = sadd.s32 %s421, 1
      %p425 = scmp.eq.s32.totalorder %s41, 1
      %p426 = scmp.ne.s32.totalorder %s421, %s423
      %p427 = scmp.eq.s32.totalorder %s41, 0
      %p428 = por %p426, %p427
      %p429 = scmp.ne.s32.totalorder %s421, %s423
      %p430 = scmp.eq.s32.totalorder %s46, 1
      %p431 = por %p429, %p430
      %p432 = scmp.ne.s32.totalorder %s423, %s424
      %p433 = scmp.eq.s32.totalorder %s46, 0
      %p434 = por %p432, %p433
      %p435 = scmp.ne.s32.totalorder %s423, %s424
      %p436 = scmp.eq.s32.totalorder %s47, 1
      %p437 = por %p435, %p436
      %p439 = scmp.ne.s32.totalorder %s424, %s438
      %p440 = scmp.eq.s32.totalorder %s47, 0
      %p441 = por %p439, %p440
      %s443 = sadd.s32 %s442, 1
      %p446 = scmp.eq.s32.totalorder %s41, 1
      %p447 = scmp.ne.s32.totalorder %s442, %s444
      %p448 = scmp.eq.s32.totalorder %s41, 0
      %p449 = por %p447, %p448
      %p450 = scmp.ne.s32.totalorder %s442, %s444
      %p451 = scmp.eq.s32.totalorder %s46, 1
      %p452 = por %p450, %p451
      %p453 = scmp.ne.s32.totalorder %s444, %s445
      %p454 = scmp.eq.s32.totalorder %s46, 0
      %p455 = por %p453, %p454
      %p456 = scmp.ne.s32.totalorder %s444, %s445
      %p457 = scmp.eq.s32.totalorder %s47, 1
      %p458 = por %p456, %p457
      %p460 = scmp.ne.s32.totalorder %s445, %s459
      %p461 = scmp.eq.s32.totalorder %s47, 0
      %p462 = por %p460, %p461
      %s464 = sadd.s32 %s463, 1
      %p467 = scmp.eq.s32.totalorder %s41, 1
      %p468 = scmp.ne.s32.totalorder %s463, %s465
      %p469 = scmp.eq.s32.totalorder %s41, 0
      %p470 = por %p468, %p469
      %p471 = scmp.ne.s32.totalorder %s463, %s465
      %p472 = scmp.eq.s32.totalorder %s46, 1
      %p473 = por %p471, %p472
      %p474 = scmp.ne.s32.totalorder %s465, %s466
      %p475 = scmp.eq.s32.totalorder %s46, 0
      %p476 = por %p474, %p475
      %p477 = scmp.ne.s32.totalorder %s465, %s466
      %p478 = scmp.eq.s32.totalorder %s47, 1
      %p479 = por %p477, %p478
      %p481 = scmp.ne.s32.totalorder %s466, %s480
      %p482 = scmp.eq.s32.totalorder %s47, 0
      %p483 = por %p481, %p482
      %s485 = sadd.s32 %s484, 1
      %p488 = scmp.eq.s32.totalorder %s41, 1
      %p489 = scmp.ne.s32.totalorder %s484, %s486
      %p490 = scmp.eq.s32.totalorder %s41, 0
      %p491 = por %p489, %p490
      %p492 = scmp.ne.s32.totalorder %s484, %s486
      %p493 = scmp.eq.s32.totalorder %s46, 1
      %p494 = por %p492, %p493
      %p495 = scmp.ne.s32.totalorder %s486, %s487
      %p496 = scmp.eq.s32.totalorder %s46, 0
      %p497 = por %p495, %p496
      %p498 = scmp.ne.s32.totalorder %s486, %s487
      %p499 = scmp.eq.s32.totalorder %s47, 1
      %p500 = por %p498, %p499
      %p502 = scmp.ne.s32.totalorder %s487, %s501
      %p503 = scmp.eq.s32.totalorder %s47, 0
      %p504 = por %p502, %p503
      %s506 = sadd.s32 %s505, 1
      %p509 = scmp.eq.s32.totalorder %s41, 1
      %p510 = scmp.ne.s32.totalorder %s505, %s507
      %p511 = scmp.eq.s32.totalorder %s41, 0
      %p512 = por %p510, %p511
      %p513 = scmp.ne.s32.totalorder %s505, %s507
      %p514 = scmp.eq.s32.totalorder %s46, 1
      %p515 = por %p513, %p514
      %p516 = scmp.ne.s32.totalorder %s507, %s508
      %p517 = scmp.eq.s32.totalorder %s46, 0
      %p518 = por %p516, %p517
      %p519 = scmp.ne.s32.totalorder %s507, %s508
      %p520 = scmp.eq.s32.totalorder %s47, 1
      %p521 = por %p519, %p520
      %p523 = scmp.ne.s32.totalorder %s508, %s522
      %p524 = scmp.eq.s32.totalorder %s47, 0
      %p525 = por %p523, %p524
      %s526 = ssub.s32 %s41, %s48
      %p527 = scmp.eq.s32.totalorder %s526, 0
      %s529 = sadd.s32 %s528, 1
      %s530 = scalar_select %p527, %s528, %s529
      %p533 = pneg %p527
      %p534 = scmp.eq.s32.totalorder %s41, 1
      %p535 = por %p533, %p534
      %p536 = scmp.ne.s32.totalorder %s528, %s531
      %p537 = scmp.eq.s32.totalorder %s41, 0
      %p538 = por %p536, %p537
      %p539 = scmp.ne.s32.totalorder %s528, %s531
      %p540 = scmp.eq.s32.totalorder %s46, 1
      %p541 = por %p539, %p540
      %p542 = scmp.ne.s32.totalorder %s531, %s532
      %p543 = scmp.eq.s32.totalorder %s46, 0
      %p544 = por %p542, %p543
      %p545 = scmp.ne.s32.totalorder %s531, %s532
      %p546 = scmp.eq.s32.totalorder %s47, 1
      %p547 = por %p545, %p546
      %p549 = scmp.ne.s32.totalorder %s532, %s548
      %p550 = scmp.eq.s32.totalorder %s47, 0
      %p551 = por %p549, %p550
      %p552 = scmp.le.s32.totalorder 1, %s41
      %p553 = scmp.lt.s32.totalorder %s41, 3
      %p554 = pnand %p552, %p553
      %p555 = pneg %p554
      // Predicated region
      $region9: #{tpu_custom_call.1} parent=5 // pred_check
        _
      $region10: #{tpu_custom_call.1} parent=5 // pred_check_branch
        %557 = sbr.rel (%p554) target = $region12
      $region11: #{tpu_custom_call.1} parent=5 // pred_region
        %s558 = ssub.s32 %s41, 1
        // Predicated region
        $region13: #{tpu_custom_call.1} parent=11 // pred_check
          %p559 = pneg %p140
        $region14: #{tpu_custom_call.1} parent=11 // pred_check_branch
          %561 = sbr.rel (%p559) target = $region16
        $region15: #{tpu_custom_call.1} parent=11 // pred_region
          %s563 = ssub.s32 2048, 2048
          %564 = vsyncadd [#allocation9], %s563
          %s565 = sshll.u32 [#allocation8], 4
          %s566 = int_to_ptr.vmem [resolvable:$true] %s565
          %571 = dma.hbm_to_vmem [thread:$0]  %s3, 2048, %s566, [#allocation9], 128, 128, 8
        $region16: #{tpu_custom_call.1} parent=11 // pred_fallthru
          _
        // Predicated region
        $region17: #{tpu_custom_call.1} parent=11 // pred_check
          %p572 = pneg %p161
        $region18: #{tpu_custom_call.1} parent=11 // pred_check_branch
          %574 = sbr.rel (%p572) target = $region20
        $region19: #{tpu_custom_call.1} parent=11 // pred_region
          %s576 = ssub.s32 2048, 2048
          %577 = vsyncadd [#allocation9], %s576
          %s578 = sshll.u32 [#allocation10], 4
          %s579 = int_to_ptr.vmem [resolvable:$true] %s578
          %584 = dma.hbm_to_vmem [thread:$0]  %s4, 2048, %s579, [#allocation9], 128, 128, 8
        $region20: #{tpu_custom_call.1} parent=11 // pred_fallthru
          _
        // Predicated region
        $region21: #{tpu_custom_call.1} parent=11 // pred_check
          %p585 = pneg %p182
        $region22: #{tpu_custom_call.1} parent=11 // pred_check_branch
          %587 = sbr.rel (%p585) target = $region24
        $region23: #{tpu_custom_call.1} parent=11 // pred_region
          _
        $region24: #{tpu_custom_call.1} parent=11 // pred_fallthru
          _
        // Predicated region
        $region25: #{tpu_custom_call.1} parent=11 // pred_check
          %p588 = pneg %p203
        $region26: #{tpu_custom_call.1} parent=11 // pred_check_branch
          %590 = sbr.rel (%p588) target = $region28
        $region27: #{tpu_custom_call.1} parent=11 // pred_region
          _
        $region28: #{tpu_custom_call.1} parent=11 // pred_fallthru
          _
        // Predicated region
        $region29: #{tpu_custom_call.1} parent=11 // pred_check
          %p591 = pneg %p224
        $region30: #{tpu_custom_call.1} parent=11 // pred_check_branch
          %593 = sbr.rel (%p591) target = $region32
        $region31: #{tpu_custom_call.1} parent=11 // pred_region
          _
        $region32: #{tpu_custom_call.1} parent=11 // pred_fallthru
          _
        // Predicated region
        $region33: #{tpu_custom_call.1} parent=11 // pred_check
          %p594 = pneg %p245
        $region34: #{tpu_custom_call.1} parent=11 // pred_check_branch
          %596 = sbr.rel (%p594) target = $region36
        $region35: #{tpu_custom_call.1} parent=11 // pred_region
          _
        $region36: #{tpu_custom_call.1} parent=11 // pred_fallthru
          _
        // Predicated region
        $region37: #{tpu_custom_call.1} parent=11 // pred_check
          %p597 = pneg %p266
        $region38: #{tpu_custom_call.1} parent=11 // pred_check_branch
          %599 = sbr.rel (%p597) target = $region40
        $region39: #{tpu_custom_call.1} parent=11 // pred_region
          _
        $region40: #{tpu_custom_call.1} parent=11 // pred_fallthru
          _
        // Predicated region
        $region41: #{tpu_custom_call.1} parent=11 // pred_check
          %p600 = pneg %p287
        $region42: #{tpu_custom_call.1} parent=11 // pred_check_branch
          %602 = sbr.rel (%p600) target = $region44
        $region43: #{tpu_custom_call.1} parent=11 // pred_region
          %s604 = ssub.s32 2048, 2048
          %605 = vsyncadd [#allocation12], %s604
          %s606 = sshll.u32 [#allocation11], 4
          %s607 = int_to_ptr.vmem [resolvable:$true] %s606
          %612 = dma.hbm_to_vmem [thread:$0]  %s10, 2048, %s607, [#allocation12], 128, 128, 8
        $region44: #{tpu_custom_call.1} parent=11 // pred_fallthru
          _
        // Predicated region
        $region45: #{tpu_custom_call.1} parent=11 // pred_check
          %p613 = pneg %p308
        $region46: #{tpu_custom_call.1} parent=11 // pred_check_branch
          %615 = sbr.rel (%p613) target = $region48
        $region47: #{tpu_custom_call.1} parent=11 // pred_region
          _
        $region48: #{tpu_custom_call.1} parent=11 // pred_fallthru
          _
        // Predicated region
        $region49: #{tpu_custom_call.1} parent=11 // pred_check
          %p616 = pneg %p329
        $region50: #{tpu_custom_call.1} parent=11 // pred_check_branch
          %618 = sbr.rel (%p616) target = $region52
        $region51: #{tpu_custom_call.1} parent=11 // pred_region
          %s620 = ssub.s32 4096, 4096
          %621 = vsyncadd [#allocation12], %s620
          %s622 = sshll.u32 [#allocation13], 4
          %s623 = int_to_ptr.vmem [resolvable:$true] %s622
          %628 = dma.hbm_to_vmem [thread:$0]  %s12, 4096, %s623, [#allocation12], 256, 256, 16
        $region52: #{tpu_custom_call.1} parent=11 // pred_fallthru
          _
        // Predicated region
        $region53: #{tpu_custom_call.1} parent=11 // pred_check
          %p629 = pneg %p350
        $region54: #{tpu_custom_call.1} parent=11 // pred_check_branch
          %631 = sbr.rel (%p629) target = $region56
        $region55: #{tpu_custom_call.1} parent=11 // pred_region
          _
        $region56: #{tpu_custom_call.1} parent=11 // pred_fallthru
          _
        // Predicated region
        $region57: #{tpu_custom_call.1} parent=11 // pred_check
          %p632 = pneg %p371
        $region58: #{tpu_custom_call.1} parent=11 // pred_check_branch
          %634 = sbr.rel (%p632) target = $region60
        $region59: #{tpu_custom_call.1} parent=11 // pred_region
          %s636 = ssub.s32 2048, 2048
          %637 = vsyncadd [#allocation15], %s636
          %s638 = sshll.u32 [#allocation14], 4
          %s639 = int_to_ptr.vmem [resolvable:$true] %s638
          %644 = dma.hbm_to_vmem [thread:$0]  %s14, 2048, %s639, [#allocation15], 128, 128, 8
        $region60: #{tpu_custom_call.1} parent=11 // pred_fallthru
          _
        // Predicated region
        $region61: #{tpu_custom_call.1} parent=11 // pred_check
          %p645 = pneg %p392
        $region62: #{tpu_custom_call.1} parent=11 // pred_check_branch
          %647 = sbr.rel (%p645) target = $region64
        $region63: #{tpu_custom_call.1} parent=11 // pred_region
          _
        $region64: #{tpu_custom_call.1} parent=11 // pred_fallthru
          _
        // Predicated region
        $region65: #{tpu_custom_call.1} parent=11 // pred_check
          %p648 = pneg %p413
        $region66: #{tpu_custom_call.1} parent=11 // pred_check_branch
          %650 = sbr.rel (%p648) target = $region68
        $region67: #{tpu_custom_call.1} parent=11 // pred_region
          _
        $region68: #{tpu_custom_call.1} parent=11 // pred_fallthru
          _
        // Predicated region
        $region69: #{tpu_custom_call.1} parent=11 // pred_check
          %p651 = pneg %p434
        $region70: #{tpu_custom_call.1} parent=11 // pred_check_branch
          %653 = sbr.rel (%p651) target = $region72
        $region71: #{tpu_custom_call.1} parent=11 // pred_region
          _
        $region72: #{tpu_custom_call.1} parent=11 // pred_fallthru
          _
        // Predicated region
        $region73: #{tpu_custom_call.1} parent=11 // pred_check
          %p654 = pneg %p455
        $region74: #{tpu_custom_call.1} parent=11 // pred_check_branch
          %656 = sbr.rel (%p654) target = $region76
        $region75: #{tpu_custom_call.1} parent=11 // pred_region
          %s658 = ssub.s32 4096, 4096
          %659 = vsyncadd [#allocation15], %s658
          %s660 = sshll.u32 [#allocation16], 4
          %s661 = int_to_ptr.vmem [resolvable:$true] %s660
          %666 = dma.hbm_to_vmem [thread:$0]  %s18, 4096, %s661, [#allocation15], 256, 256, 16
        $region76: #{tpu_custom_call.1} parent=11 // pred_fallthru
          _
        // Predicated region
        $region77: #{tpu_custom_call.1} parent=11 // pred_check
          %p667 = pneg %p476
        $region78: #{tpu_custom_call.1} parent=11 // pred_check_branch
          %669 = sbr.rel (%p667) target = $region80
        $region79: #{tpu_custom_call.1} parent=11 // pred_region
          _
        $region80: #{tpu_custom_call.1} parent=11 // pred_fallthru
          _
        // Predicated region
        $region81: #{tpu_custom_call.1} parent=11 // pred_check
          %p670 = pneg %p497
        $region82: #{tpu_custom_call.1} parent=11 // pred_check_branch
          %672 = sbr.rel (%p670) target = $region84
        $region83: #{tpu_custom_call.1} parent=11 // pred_region
          %s674 = ssub.s32 4096, 4096
          %675 = vsyncadd [#allocation18], %s674
          %s676 = sshll.u32 [#allocation17], 4
          %s677 = int_to_ptr.vmem [resolvable:$true] %s676
          %682 = dma.hbm_to_vmem [thread:$0]  %s20, 4096, %s677, [#allocation18], 128, 128, 8
        $region84: #{tpu_custom_call.1} parent=11 // pred_fallthru
          _
        // Predicated region
        $region85: #{tpu_custom_call.1} parent=11 // pred_check
          %p683 = pneg %p518
        $region86: #{tpu_custom_call.1} parent=11 // pred_check_branch
          %685 = sbr.rel (%p683) target = $region88
        $region87: #{tpu_custom_call.1} parent=11 // pred_region
          _
        $region88: #{tpu_custom_call.1} parent=11 // pred_fallthru
          _
      $region12: #{tpu_custom_call.1} parent=5 // pred_fallthru
        _
      %p686 = scmp.lt.s32.totalorder %s41, 2
      // Predicated region
      $region89: #{tpu_custom_call.1} parent=5 // pred_check
        %p687 = pneg %p686
      $region90: #{tpu_custom_call.1} parent=5 // pred_check_branch
        %689 = sbr.rel (%p687) target = $region92
      $region91: #{tpu_custom_call.1} parent=5 // pred_region
        // Predicated region
        $region93: #{tpu_custom_call.1} parent=91 // pred_check
          %p690 = pneg %p61
        $region94: #{tpu_custom_call.1} parent=91 // pred_check_branch
          %692 = sbr.rel (%p690) target = $region96
        $region95: #{tpu_custom_call.1} parent=91 // pred_region
          %s693 = sand.u32 %s51, 1
          %s694 = scalar_lea.sflag [#allocation3], %s693
          %s695 = sand.u32 %s51, 1
          %s696 = smul.addr %s695, 8
          %s697 = scalar_lea.vmem [#allocation2], %s696
          %s699 = ssub.s32 128, 128
          %700 = vsyncadd %s694, %s699
          %s701 = smul.addr %s41, 128
          %s702 = scalar_lea.hbm %s0, %s701
          %s704 = sshll.u32 %s697, 4
          %s705 = int_to_ptr.vmem [resolvable:$true] %s704
          %707 = dma.hbm_to_vmem [thread:$0]  %s702, 128, %s705, %s694
        $region96: #{tpu_custom_call.1} parent=91 // pred_fallthru
          _
        // Predicated region
        $region97: #{tpu_custom_call.1} parent=91 // pred_check
          %p708 = pneg %p87
        $region98: #{tpu_custom_call.1} parent=91 // pred_check_branch
          %710 = sbr.rel (%p708) target = $region100
        $region99: #{tpu_custom_call.1} parent=91 // pred_region
          %s711 = sand.u32 %s41, 1
          %s712 = scalar_lea.sflag [#allocation6], %s711
          %s713 = sand.u32 %s77, 1
          %s714 = smul.addr %s713, 16
          %s715 = scalar_lea.vmem [#allocation5], %s714
          %s717 = ssub.s32 256, 256
          %718 = vsyncadd %s712, %s717
          %s719 = smul.addr %s41, 2
          %s720 = smul.addr %s719, 128
          %s721 = scalar_lea.hbm %s1, %s720
          %s722 = sshll.u32 %s715, 4
          %s723 = int_to_ptr.vmem [resolvable:$true] %s722
          %728 = dma.hbm_to_vmem [thread:$0]  %s721, 256, %s723, %s712, 128, 128, 8
        $region100: #{tpu_custom_call.1} parent=91 // pred_fallthru
          _
        // Predicated region
        $region101: #{tpu_custom_call.1} parent=91 // pred_check
          %p729 = pneg %p113
        $region102: #{tpu_custom_call.1} parent=91 // pred_check_branch
          %731 = sbr.rel (%p729) target = $region104
        $region103: #{tpu_custom_call.1} parent=91 // pred_region
          %s732 = sand.u32 %s41, 1
          %s733 = scalar_lea.sflag [#allocation6], %s732
          %s734 = sand.u32 %s103, 1
          %s735 = smul.addr %s734, 16
          %s736 = scalar_lea.vmem [#allocation7], %s735
          %s738 = ssub.s32 256, 256
          %739 = vsyncadd %s733, %s738
          %s740 = smul.addr %s41, 2
          %s741 = smul.addr %s740, 128
          %s742 = scalar_lea.hbm %s2, %s741
          %s743 = sshll.u32 %s736, 4
          %s744 = int_to_ptr.vmem [resolvable:$true] %s743
          %749 = dma.hbm_to_vmem [thread:$0]  %s742, 256, %s744, %s733, 128, 128, 8
        $region104: #{tpu_custom_call.1} parent=91 // pred_fallthru
          _
      $region92: #{tpu_custom_call.1} parent=5 // pred_fallthru
        _
      %p750 = scmp.le.s32.totalorder 1, %s41
      %p751 = scmp.lt.s32.totalorder %s41, 3
      %p752 = pnand %p750, %p751
      %p753 = pneg %p752
      // Predicated region
      $region105: #{tpu_custom_call.1} parent=5 // pred_check
        _
      $region106: #{tpu_custom_call.1} parent=5 // pred_check_branch
        %755 = sbr.rel (%p752) target = $region108
      $region107: #{tpu_custom_call.1} parent=5 // pred_region
        %s756 = ssub.s32 %s41, 1
        %s757 = sand.u32 %s54, 1
        %s758 = scalar_lea.sflag [#allocation3], %s757
        %s759 = sand.u32 %s54, 1
        %s760 = smul.addr %s759, 8
        %s761 = scalar_lea.vmem [#allocation2], %s760
        // Predicated region
        $region109: #{tpu_custom_call.1} parent=107 // pred_check
          %p762 = pneg %p67
        $region110: #{tpu_custom_call.1} parent=107 // pred_check_branch
          %764 = sbr.rel (%p762) target = $region112
        $region111: #{tpu_custom_call.1} parent=107 // pred_region
          %765 = dma.done %s758, 128
        $region112: #{tpu_custom_call.1} parent=107 // pred_fallthru
          _
        %s766 = sand.u32 %s46, 1
        %s767 = scalar_lea.sflag [#allocation6], %s766
        %s768 = sand.u32 %s80, 1
        %s769 = smul.addr %s768, 16
        %s770 = scalar_lea.vmem [#allocation5], %s769
        // Predicated region
        $region113: #{tpu_custom_call.1} parent=107 // pred_check
          %p771 = pneg %p93
        $region114: #{tpu_custom_call.1} parent=107 // pred_check_branch
          %773 = sbr.rel (%p771) target = $region116
        $region115: #{tpu_custom_call.1} parent=107 // pred_region
          %774 = dma.done %s767, 256
        $region116: #{tpu_custom_call.1} parent=107 // pred_fallthru
          _
        %s775 = sand.u32 %s46, 1
        %s776 = scalar_lea.sflag [#allocation6], %s775
        %s777 = sand.u32 %s106, 1
        %s778 = smul.addr %s777, 16
        %s779 = scalar_lea.vmem [#allocation7], %s778
        // Predicated region
        $region117: #{tpu_custom_call.1} parent=107 // pred_check
          %p780 = pneg %p119
        $region118: #{tpu_custom_call.1} parent=107 // pred_check_branch
          %782 = sbr.rel (%p780) target = $region120
        $region119: #{tpu_custom_call.1} parent=107 // pred_region
          %783 = dma.done %s776, 256
        $region120: #{tpu_custom_call.1} parent=107 // pred_fallthru
          _
        // Predicated region
        $region121: #{tpu_custom_call.1} parent=107 // pred_check
          %p784 = pneg %p140
        $region122: #{tpu_custom_call.1} parent=107 // pred_check_branch
          %786 = sbr.rel (%p784) target = $region124
        $region123: #{tpu_custom_call.1} parent=107 // pred_region
          %787 = dma.done [#allocation9], 2048
        $region124: #{tpu_custom_call.1} parent=107 // pred_fallthru
          _
        // Predicated region
        $region125: #{tpu_custom_call.1} parent=107 // pred_check
          %p788 = pneg %p161
        $region126: #{tpu_custom_call.1} parent=107 // pred_check_branch
          %790 = sbr.rel (%p788) target = $region128
        $region127: #{tpu_custom_call.1} parent=107 // pred_region
          %791 = dma.done [#allocation9], 2048
        $region128: #{tpu_custom_call.1} parent=107 // pred_fallthru
          _
        // Predicated region
        $region129: #{tpu_custom_call.1} parent=107 // pred_check
          %p792 = pneg %p287
        $region130: #{tpu_custom_call.1} parent=107 // pred_check_branch
          %794 = sbr.rel (%p792) target = $region132
        $region131: #{tpu_custom_call.1} parent=107 // pred_region
          %795 = dma.done [#allocation12], 2048
        $region132: #{tpu_custom_call.1} parent=107 // pred_fallthru
          _
        // Predicated region
        $region133: #{tpu_custom_call.1} parent=107 // pred_check
          %p796 = pneg %p329
        $region134: #{tpu_custom_call.1} parent=107 // pred_check_branch
          %798 = sbr.rel (%p796) target = $region136
        $region135: #{tpu_custom_call.1} parent=107 // pred_region
          %799 = dma.done [#allocation12], 4096
        $region136: #{tpu_custom_call.1} parent=107 // pred_fallthru
          _
        // Predicated region
        $region137: #{tpu_custom_call.1} parent=107 // pred_check
          %p800 = pneg %p371
        $region138: #{tpu_custom_call.1} parent=107 // pred_check_branch
          %802 = sbr.rel (%p800) target = $region140
        $region139: #{tpu_custom_call.1} parent=107 // pred_region
          %803 = dma.done [#allocation15], 2048
        $region140: #{tpu_custom_call.1} parent=107 // pred_fallthru
          _
        // Predicated region
        $region141: #{tpu_custom_call.1} parent=107 // pred_check
          %p804 = pneg %p455
        $region142: #{tpu_custom_call.1} parent=107 // pred_check_branch
          %806 = sbr.rel (%p804) target = $region144
        $region143: #{tpu_custom_call.1} parent=107 // pred_region
          %807 = dma.done [#allocation15], 4096
        $region144: #{tpu_custom_call.1} parent=107 // pred_fallthru
          _
        // Predicated region
        $region145: #{tpu_custom_call.1} parent=107 // pred_check
          %p808 = pneg %p497
        $region146: #{tpu_custom_call.1} parent=107 // pred_check_branch
          %810 = sbr.rel (%p808) target = $region148
        $region147: #{tpu_custom_call.1} parent=107 // pred_region
          %811 = dma.done [#allocation18], 4096
        $region148: #{tpu_custom_call.1} parent=107 // pred_fallthru
          _
        %s812 = sand.u32 %s54, 1
        %s813 = scalar_lea.sflag [#allocation3], %s812
        %s814 = sand.u32 %s54, 1
        %s815 = smul.addr %s814, 8
        %s816 = scalar_lea.vmem [#allocation2], %s815
        %p817 = pneg %p67
        %p818 = pneg %p64
        %s819 = sand.u32 %s46, 1
        %s820 = scalar_lea.sflag [#allocation6], %s819
        %s821 = sand.u32 %s80, 1
        %s822 = smul.addr %s821, 16
        %s823 = scalar_lea.vmem [#allocation5], %s822
        %p824 = pneg %p93
        %p825 = pneg %p90
        %s826 = sand.u32 %s46, 1
        %s827 = scalar_lea.sflag [#allocation6], %s826
        %s828 = sand.u32 %s106, 1
        %s829 = smul.addr %s828, 16
        %s830 = scalar_lea.vmem [#allocation7], %s829
        %p831 = pneg %p119
        %p832 = pneg %p116
        %p833 = pneg %p140
        %p834 = pneg %p137
        %p835 = pneg %p161
        %p836 = pneg %p158
        %p837 = pneg %p182
        %p838 = pneg %p179
        %p839 = pneg %p203
        %p840 = pneg %p200
        %p841 = pneg %p224
        %p842 = pneg %p221
        %p843 = pneg %p245
        %p844 = pneg %p242
        %p845 = pneg %p266
        %p846 = pneg %p263
        %p847 = pneg %p287
        %p848 = pneg %p284
        %p849 = pneg %p308
        %p850 = pneg %p305
        %p851 = pneg %p329
        %p852 = pneg %p326
        %p853 = pneg %p350
        %p854 = pneg %p347
        %p855 = pneg %p371
        %p856 = pneg %p368
        %p857 = pneg %p392
        %p858 = pneg %p389
        %p859 = pneg %p413
        %p860 = pneg %p410
        %p861 = pneg %p434
        %p862 = pneg %p431
        %p863 = pneg %p455
        %p864 = pneg %p452
        %p865 = pneg %p476
        %p866 = pneg %p473
        %p867 = pneg %p497
        %p868 = pneg %p494
        %p869 = pneg %p518
        %p870 = pneg %p515
        %p871 = pneg %p544
        %p872 = pneg %p541
        %s873 = sand.u32 %s531, 1
        %s874 = scalar_lea.sflag [#allocation4], %s873
        %s875 = sand.u32 %s531, 1
        %s876 = smul.addr %s875, 8
        %s877 = scalar_lea.vmem [#allocation19], %s876
        %v878 = vld [vmem:[%s770] sm:$0xff]
        %v879 = vld [vmem:[%s770 + $0x8] sm:$0xff]
        %v880 = vld [vmem:[#allocation8] sm:$0xff]
        %v881 = vld [vmem:[#allocation8 + $0x8] sm:$0xff]
        %v882 = vld [vmem:[#allocation8 + $0x10] sm:$0xff]
        %v883 = vld [vmem:[#allocation8 + $0x18] sm:$0xff]
        %v884 = vld [vmem:[#allocation8 + $0x20] sm:$0xff]
        %v885 = vld [vmem:[#allocation8 + $0x28] sm:$0xff]
        %v886 = vld [vmem:[#allocation8 + $0x30] sm:$0xff]
        %v887 = vld [vmem:[#allocation8 + $0x38] sm:$0xff]
        %v888 = vld [vmem:[#allocation8 + $0x40] sm:$0xff]
        %v889 = vld [vmem:[#allocation8 + $0x48] sm:$0xff]
        %v890 = vld [vmem:[#allocation8 + $0x50] sm:$0xff]
        %v891 = vld [vmem:[#allocation8 + $0x58] sm:$0xff]
        %v892 = vld [vmem:[#allocation8 + $0x60] sm:$0xff]
        %v893 = vld [vmem:[#allocation8 + $0x68] sm:$0xff]
        %v894 = vld [vmem:[#allocation8 + $0x70] sm:$0xff]
        %v895 = vld [vmem:[#allocation8 + $0x78] sm:$0xff]
        %v896 = vld [vmem:[%s779] sm:$0xff]
        %v897 = vld [vmem:[%s779 + $0x8] sm:$0xff]
        %v898 = vld [vmem:[#allocation10] sm:$0xff]
        %v899 = vld [vmem:[#allocation10 + $0x8] sm:$0xff]
        %v900 = vld [vmem:[#allocation10 + $0x10] sm:$0xff]
        %v901 = vld [vmem:[#allocation10 + $0x18] sm:$0xff]
        %v902 = vld [vmem:[#allocation10 + $0x20] sm:$0xff]
        %v903 = vld [vmem:[#allocation10 + $0x28] sm:$0xff]
        %v904 = vld [vmem:[#allocation10 + $0x30] sm:$0xff]
        %v905 = vld [vmem:[#allocation10 + $0x38] sm:$0xff]
        %v906 = vld [vmem:[#allocation10 + $0x40] sm:$0xff]
        %v907 = vld [vmem:[#allocation10 + $0x48] sm:$0xff]
        %v908 = vld [vmem:[#allocation10 + $0x50] sm:$0xff]
        %v909 = vld [vmem:[#allocation10 + $0x58] sm:$0xff]
        %v910 = vld [vmem:[#allocation10 + $0x60] sm:$0xff]
        %v911 = vld [vmem:[#allocation10 + $0x68] sm:$0xff]
        %v912 = vld [vmem:[#allocation10 + $0x70] sm:$0xff]
        %v913 = vld [vmem:[#allocation10 + $0x78] sm:$0xff]
        %914 = vmatprep.subr.mxu0 0.0
        %915 = vmatpush1.msra.mxu0 %v898
        %916 = vmatprep.subr.mxu0 0.0
        %917 = vmatpush1.msra.mxu0 %v899
        %918 = vmatprep.subr.mxu0 0.0
        %919 = vmatpush1.msra.mxu0 %v900
        %920 = vmatprep.subr.mxu0 0.0
        %921 = vmatpush1.msra.mxu0 %v901
        %922 = vmatprep.subr.mxu0 0.0
        %923 = vmatpush1.msra.mxu0 %v902
        %924 = vmatprep.subr.mxu0 0.0
        %925 = vmatpush1.msra.mxu0 %v903
        %926 = vmatprep.subr.mxu0 0.0
        %927 = vmatpush1.msra.mxu0 %v904
        %928 = vmatprep.subr.mxu0 0.0
        %929 = vmatpush1.msra.mxu0 %v905
        %930 = vmatprep.subr.mxu0 0.0
        %931 = vmatpush1.msra.mxu0 %v906
        %932 = vmatprep.subr.mxu0 0.0
        %933 = vmatpush1.msra.mxu0 %v907
        %934 = vmatprep.subr.mxu0 0.0
        %935 = vmatpush1.msra.mxu0 %v908
        %936 = vmatprep.subr.mxu0 0.0
        %937 = vmatpush1.msra.mxu0 %v909
        %938 = vmatprep.subr.mxu0 0.0
        %939 = vmatpush1.msra.mxu0 %v910
        %940 = vmatprep.subr.mxu0 0.0
        %941 = vmatpush1.msra.mxu0 %v911
        %942 = vmatprep.subr.mxu0 0.0
        %943 = vmatpush1.msra.mxu0 %v912
        %944 = vmatprep.subr.mxu0 0.0
        %945 = vmatpush1.msra.mxu0 %v913
        %946 = vmatprep.subr.mxu0 0.0
        %947 = vmatpush1.msra.mxu0 0.0
        %948 = vmatprep.subr.mxu0 0.0
        %949 = vmatpush1.msra.mxu0 0.0
        %950 = vmatprep.subr.mxu0 0.0
        %951 = vmatpush1.msra.mxu0 0.0
        %952 = vmatprep.subr.mxu0 0.0
        %953 = vmatpush1.msra.mxu0 0.0
        %954 = vmatprep.subr.mxu0 0.0
        %955 = vmatpush1.msra.mxu0 0.0
        %956 = vmatprep.subr.mxu0 0.0
        %957 = vmatpush1.msra.mxu0 0.0
        %958 = vmatprep.subr.mxu0 0.0
        %959 = vmatpush1.msra.mxu0 0.0
        %960 = vmatprep.subr.mxu0 0.0
        %961 = vmatpush1.msra.mxu0 0.0
        %962 = vmatprep.subr.mxu0 0.0
        %963 = vmatpush1.msra.mxu0 0.0
        %964 = vmatprep.subr.mxu0 0.0
        %965 = vmatpush1.msra.mxu0 0.0
        %966 = vmatprep.subr.mxu0 0.0
        %967 = vmatpush1.msra.mxu0 0.0
        %968 = vmatprep.subr.mxu0 0.0
        %969 = vmatpush1.msra.mxu0 0.0
        %970 = vmatprep.subr.mxu0 0.0
        %971 = vmatpush1.msra.mxu0 0.0
        %972 = vmatprep.subr.mxu0 0.0
        %973 = vmatpush1.msra.mxu0 0.0
        %974 = vmatprep.subr.mxu0 0.0
        %975 = vmatpush1.msra.mxu0 0.0
        %976 = vmatprep.subr.mxu0 0.0
        %977 = vmatpush1.msra.mxu0 0.0
        %978 = vmatprep.mubr.f32.mxu0 0.0
        %979 = vmatmul.mubr.f32.gmra.mrb[0].mxu0 %v896
        %v980 = vpop.f32.mrb[0].mxu0
        %v981 = vadd.f32 0.0, %v980
        %v982 = vpop.f32.mrb[0].mxu0
        %983 = vmatprep.mubr.f32.mxu0 0.0
        %984 = vmatmul.mubr.f32.gmra.mrb[0].mxu0 %v897
        %v985 = vpop.f32.mrb[0].mxu0
        %v986 = vadd.f32 0.0, %v985
        %v987 = vpop.f32.mrb[0].mxu0
        %988 = vdwg.mxu0
        %989 = vmatprep.subr.mxu0 0.0
        %990 = vmatpush1.msra.mxu0 %v880
        %991 = vmatprep.subr.mxu0 0.0
        %992 = vmatpush1.msra.mxu0 %v881
        %993 = vmatprep.subr.mxu0 0.0
        %994 = vmatpush1.msra.mxu0 %v882
        %995 = vmatprep.subr.mxu0 0.0
        %996 = vmatpush1.msra.mxu0 %v883
        %997 = vmatprep.subr.mxu0 0.0
        %998 = vmatpush1.msra.mxu0 %v884
        %999 = vmatprep.subr.mxu0 0.0
        %1000 = vmatpush1.msra.mxu0 %v885
        %1001 = vmatprep.subr.mxu0 0.0
        %1002 = vmatpush1.msra.mxu0 %v886
        %1003 = vmatprep.subr.mxu0 0.0
        %1004 = vmatpush1.msra.mxu0 %v887
        %1005 = vmatprep.subr.mxu0 0.0
        %1006 = vmatpush1.msra.mxu0 %v888
        %1007 = vmatprep.subr.mxu0 0.0
        %1008 = vmatpush1.msra.mxu0 %v889
        %1009 = vmatprep.subr.mxu0 0.0
        %1010 = vmatpush1.msra.mxu0 %v890
        %1011 = vmatprep.subr.mxu0 0.0
        %1012 = vmatpush1.msra.mxu0 %v891
        %1013 = vmatprep.subr.mxu0 0.0
        %1014 = vmatpush1.msra.mxu0 %v892
        %1015 = vmatprep.subr.mxu0 0.0
        %1016 = vmatpush1.msra.mxu0 %v893
        %1017 = vmatprep.subr.mxu0 0.0
        %1018 = vmatpush1.msra.mxu0 %v894
        %1019 = vmatprep.subr.mxu0 0.0
        %1020 = vmatpush1.msra.mxu0 %v895
        %1021 = vmatprep.subr.mxu0 0.0
        %1022 = vmatpush1.msra.mxu0 0.0
        %1023 = vmatprep.subr.mxu0 0.0
        %1024 = vmatpush1.msra.mxu0 0.0
        %1025 = vmatprep.subr.mxu0 0.0
        %1026 = vmatpush1.msra.mxu0 0.0
        %1027 = vmatprep.subr.mxu0 0.0
        %1028 = vmatpush1.msra.mxu0 0.0
        %1029 = vmatprep.subr.mxu0 0.0
        %1030 = vmatpush1.msra.mxu0 0.0
        %1031 = vmatprep.subr.mxu0 0.0
        %1032 = vmatpush1.msra.mxu0 0.0
        %1033 = vmatprep.subr.mxu0 0.0
        %1034 = vmatpush1.msra.mxu0 0.0
        %1035 = vmatprep.subr.mxu0 0.0
        %1036 = vmatpush1.msra.mxu0 0.0
        %1037 = vmatprep.subr.mxu0 0.0
        %1038 = vmatpush1.msra.mxu0 0.0
        %1039 = vmatprep.subr.mxu0 0.0
        %1040 = vmatpush1.msra.mxu0 0.0
        %1041 = vmatprep.subr.mxu0 0.0
        %1042 = vmatpush1.msra.mxu0 0.0
        %1043 = vmatprep.subr.mxu0 0.0
        %1044 = vmatpush1.msra.mxu0 0.0
        %1045 = vmatprep.subr.mxu0 0.0
        %1046 = vmatpush1.msra.mxu0 0.0
        %1047 = vmatprep.subr.mxu0 0.0
        %1048 = vmatpush1.msra.mxu0 0.0
        %1049 = vmatprep.subr.mxu0 0.0
        %1050 = vmatpush1.msra.mxu0 0.0
        %1051 = vmatprep.subr.mxu0 0.0
        %1052 = vmatpush1.msra.mxu0 0.0
        %1053 = vmatprep.mubr.f32.mxu0 0.0
        %1054 = vmatmul.mubr.f32.gmra.mrb[0].mxu0 %v878
        %v1055 = vpop.f32.mrb[0].mxu0
        %v1056 = vadd.f32 %v981, %v1055
        %v1057 = vpop.f32.mrb[0].mxu0
        %1058 = vmatprep.mubr.f32.mxu0 0.0
        %1059 = vmatmul.mubr.f32.gmra.mrb[0].mxu0 %v879
        %v1060 = vpop.f32.mrb[0].mxu0
        %v1061 = vadd.f32 %v986, %v1060
        %v1062 = vpop.f32.mrb[0].mxu0
        %1063 = vdwg.mxu0
        %v1064 = vld [vmem:[%s5] sm:$0x1]
        %v1066 = vlaneseq
        %v1067 = vshrl.u32 %v1066, 7
        %v1068 = vsub.s32 0, %v1067
        %v1069 = vrot.slane %v1064, %v1068
        %v1071 = vadd.f32 %v1056, %v1069
        %v1072 = vadd.f32 %v1061, %v1069
        %v1073 = vld [vmem:[%s6] sm:$0x1]
        %v1074 = vld [vmem:[%s7] sm:$0x1]
        %1075 = vadd.xlane.f32.xlu0 %v1071
        %v1076 = vpop.xlane.xlu0 %1075
        %1077 = vadd.xlane.f32.xlu0 %v1072
        %v1078 = vpop.xlane.xlu0 %1077
        %v1079 = vrcp.pop 128.0
        %v1080 = vmul.f32 %v1076, %v1079
        %v1081 = vmul.f32 %v1078, %v1079
        %v1082 = vsub.f32 %v1071, %v1080
        %v1083 = vsub.f32 %v1072, %v1081
        %v1084 = vmul.f32 %v1082, %v1082
        %v1085 = vmul.f32 %v1083, %v1083
        %1086 = vadd.xlane.f32.xlu0 %v1084
        %v1087 = vpop.xlane.xlu0 %1086
        %1088 = vadd.xlane.f32.xlu0 %v1085
        %v1089 = vpop.xlane.xlu0 %1088
        %v1090 = vmul.f32 %v1087, %v1079
        %v1091 = vmul.f32 %v1089, %v1079
        %v1092 = vadd.f32 %v1090, 1e-05
        %v1093 = vadd.f32 %v1091, 1e-05
        %v1094 = vrsqrt.pop %v1092
        %v1095 = vrsqrt.pop %v1093
        %v1096 = vmul.f32 %v1082, %v1094
        %v1097 = vmul.f32 %v1083, %v1095
        %v1099 = vlaneseq
        %v1100 = vshrl.u32 %v1099, 7
        %v1101 = vsub.s32 0, %v1100
        %v1102 = vrot.slane %v1073, %v1101
        %v1104 = vmul.f32 %v1096, %v1102
        %v1105 = vmul.f32 %v1097, %v1102
        %v1107 = vlaneseq
        %v1108 = vshrl.u32 %v1107, 7
        %v1109 = vsub.s32 0, %v1108
        %v1110 = vrot.slane %v1074, %v1109
        %v1112 = vadd.f32 %v1104, %v1110
        %v1113 = vadd.f32 %v1105, %v1110
        %v1114 = vmul.f32 %v1112, 0.5
        %v1115 = vmul.f32 %v1113, 0.5
        %v1116 = vmul.f32 %v1112, 0.044715
        %v1117 = vmul.f32 %v1113, 0.044715
        %v1118 = vmul.f32 %v1116, %v1112
        %v1119 = vmul.f32 %v1117, %v1113
        %v1120 = vmul.f32 %v1118, %v1112
        %v1121 = vmul.f32 %v1119, %v1113
        %v1122 = vadd.f32 %v1112, %v1120
        %v1123 = vadd.f32 %v1113, %v1121
        %v1124 = vmul.f32 %v1122, 0.7978846
        %v1125 = vmul.f32 %v1123, 0.7978846
        %v1126 = vtanh.pop %v1124
        %v1127 = vtanh.pop %v1125
        %v1128 = vadd.f32 %v1126, 1.0
        %v1129 = vadd.f32 %v1127, 1.0
        %v1130 = vmul.f32 %v1114, %v1128
        %v1131 = vmul.f32 %v1115, %v1129
        %v1132 = vld [vmem:[%s761] sm:$0xff]
        %v1133 = vld [vmem:[%s8] sm:$0x1]
        %v1134 = vld [vmem:[%s9] sm:$0x1]
        %1135 = vadd.xlane.f32.xlu0 %v1132
        %v1136 = vpop.xlane.xlu0 %1135
        %v1137 = vmul.f32 %v1136, %v1079
        %v1138 = vsub.f32 %v1132, %v1137
        %v1139 = vmul.f32 %v1138, %v1138
        %1140 = vadd.xlane.f32.xlu0 %v1139
        %v1141 = vpop.xlane.xlu0 %1140
        %v1142 = vmul.f32 %v1141, %v1079
        %v1143 = vadd.f32 %v1142, 1e-05
        %v1144 = vrsqrt.pop %v1143
        %v1145 = vmul.f32 %v1138, %v1144
        %v1147 = vlaneseq
        %v1148 = vshrl.u32 %v1147, 7
        %v1149 = vsub.s32 0, %v1148
        %v1150 = vrot.slane %v1133, %v1149
        %v1152 = vmul.f32 %v1145, %v1150
        %v1154 = vlaneseq
        %v1155 = vshrl.u32 %v1154, 7
        %v1156 = vsub.s32 0, %v1155
        %v1157 = vrot.slane %v1134, %v1156
        %v1159 = vadd.f32 %v1152, %v1157
        %1160 = vadd.xlane.f32.xlu0 %v1130
        %v1161 = vpop.xlane.xlu0 %1160
        %1162 = vadd.xlane.f32.xlu0 %v1131
        %v1163 = vpop.xlane.xlu0 %1162
        %v1164 = vmul.f32 %v1161, %v1079
        %v1165 = vmul.f32 %v1163, %v1079
        %v1166 = vsub.f32 %v1130, %v1164
        %v1167 = vsub.f32 %v1131, %v1165
        %v1168 = vmul.f32 %v1166, %v1166
        %v1169 = vmul.f32 %v1167, %v1167
        %1170 = vadd.xlane.f32.xlu0 %v1168
        %v1171 = vpop.xlane.xlu0 %1170
        %1172 = vadd.xlane.f32.xlu0 %v1169
        %v1173 = vpop.xlane.xlu0 %1172
        %v1174 = vmul.f32 %v1171, %v1079
        %v1175 = vmul.f32 %v1173, %v1079
        %v1176 = vadd.f32 %v1174, 1e-05
        %v1177 = vadd.f32 %v1175, 1e-05
        %v1178 = vrsqrt.pop %v1176
        %v1179 = vrsqrt.pop %v1177
        %v1180 = vmul.f32 %v1166, %v1178
        %v1181 = vmul.f32 %v1167, %v1179
        %v1182 = vmul.f32 %v1180, %v1150
        %v1183 = vmul.f32 %v1181, %v1150
        %v1184 = vadd.f32 %v1182, %v1157
        %v1185 = vadd.f32 %v1183, %v1157
        %v1186 = vld [vmem:[#allocation11] sm:$0xff]
        %v1187 = vld [vmem:[#allocation11 + $0x8] sm:$0xff]
        %v1188 = vld [vmem:[#allocation11 + $0x10] sm:$0xff]
        %v1189 = vld [vmem:[#allocation11 + $0x18] sm:$0xff]
        %v1190 = vld [vmem:[#allocation11 + $0x20] sm:$0xff]
        %v1191 = vld [vmem:[#allocation11 + $0x28] sm:$0xff]
        %v1192 = vld [vmem:[#allocation11 + $0x30] sm:$0xff]
        %v1193 = vld [vmem:[#allocation11 + $0x38] sm:$0xff]
        %v1194 = vld [vmem:[#allocation11 + $0x40] sm:$0xff]
        %v1195 = vld [vmem:[#allocation11 + $0x48] sm:$0xff]
        %v1196 = vld [vmem:[#allocation11 + $0x50] sm:$0xff]
        %v1197 = vld [vmem:[#allocation11 + $0x58] sm:$0xff]
        %v1198 = vld [vmem:[#allocation11 + $0x60] sm:$0xff]
        %v1199 = vld [vmem:[#allocation11 + $0x68] sm:$0xff]
        %v1200 = vld [vmem:[#allocation11 + $0x70] sm:$0xff]
        %v1201 = vld [vmem:[#allocation11 + $0x78] sm:$0xff]
        %v1202 = vld [vmem:[%s11] sm:$0x1]
        %v1204 = vlaneseq
        %v1205 = vshrl.u32 %v1204, 7
        %v1206 = vsub.s32 0, %v1205
        %v1207 = vrot.slane %v1202, %v1206
        %1209 = vmatprep.subr.mxu0 0.0
        %1210 = vmatpush1.msra.mxu0 %v1186
        %1211 = vmatprep.subr.mxu0 0.0
        %1212 = vmatpush1.msra.mxu0 %v1187
        %1213 = vmatprep.subr.mxu0 0.0
        %1214 = vmatpush1.msra.mxu0 %v1188
        %1215 = vmatprep.subr.mxu0 0.0
        %1216 = vmatpush1.msra.mxu0 %v1189
        %1217 = vmatprep.subr.mxu0 0.0
        %1218 = vmatpush1.msra.mxu0 %v1190
        %1219 = vmatprep.subr.mxu0 0.0
        %1220 = vmatpush1.msra.mxu0 %v1191
        %1221 = vmatprep.subr.mxu0 0.0
        %1222 = vmatpush1.msra.mxu0 %v1192
        %1223 = vmatprep.subr.mxu0 0.0
        %1224 = vmatpush1.msra.mxu0 %v1193
        %1225 = vmatprep.subr.mxu0 0.0
        %1226 = vmatpush1.msra.mxu0 %v1194
        %1227 = vmatprep.subr.mxu0 0.0
        %1228 = vmatpush1.msra.mxu0 %v1195
        %1229 = vmatprep.subr.mxu0 0.0
        %1230 = vmatpush1.msra.mxu0 %v1196
        %1231 = vmatprep.subr.mxu0 0.0
        %1232 = vmatpush1.msra.mxu0 %v1197
        %1233 = vmatprep.subr.mxu0 0.0
        %1234 = vmatpush1.msra.mxu0 %v1198
        %1235 = vmatprep.subr.mxu0 0.0
        %1236 = vmatpush1.msra.mxu0 %v1199
        %1237 = vmatprep.subr.mxu0 0.0
        %1238 = vmatpush1.msra.mxu0 %v1200
        %1239 = vmatprep.subr.mxu0 0.0
        %1240 = vmatpush1.msra.mxu0 %v1201
        %1241 = vmatprep.subr.mxu0 0.0
        %1242 = vmatpush1.msra.mxu0 0.0
        %1243 = vmatprep.subr.mxu0 0.0
        %1244 = vmatpush1.msra.mxu0 0.0
        %1245 = vmatprep.subr.mxu0 0.0
        %1246 = vmatpush1.msra.mxu0 0.0
        %1247 = vmatprep.subr.mxu0 0.0
        %1248 = vmatpush1.msra.mxu0 0.0
        %1249 = vmatprep.subr.mxu0 0.0
        %1250 = vmatpush1.msra.mxu0 0.0
        %1251 = vmatprep.subr.mxu0 0.0
        %1252 = vmatpush1.msra.mxu0 0.0
        %1253 = vmatprep.subr.mxu0 0.0
        %1254 = vmatpush1.msra.mxu0 0.0
        %1255 = vmatprep.subr.mxu0 0.0
        %1256 = vmatpush1.msra.mxu0 0.0
        %1257 = vmatprep.subr.mxu0 0.0
        %1258 = vmatpush1.msra.mxu0 0.0
        %1259 = vmatprep.subr.mxu0 0.0
        %1260 = vmatpush1.msra.mxu0 0.0
        %1261 = vmatprep.subr.mxu0 0.0
        %1262 = vmatpush1.msra.mxu0 0.0
        %1263 = vmatprep.subr.mxu0 0.0
        %1264 = vmatpush1.msra.mxu0 0.0
        %1265 = vmatprep.subr.mxu0 0.0
        %1266 = vmatpush1.msra.mxu0 0.0
        %1267 = vmatprep.subr.mxu0 0.0
        %1268 = vmatpush1.msra.mxu0 0.0
        %1269 = vmatprep.subr.mxu0 0.0
        %1270 = vmatpush1.msra.mxu0 0.0
        %1271 = vmatprep.subr.mxu0 0.0
        %1272 = vmatpush1.msra.mxu0 0.0
        %1273 = vmatprep.mubr.f32.mxu0 0.0
        %1274 = vmatmul.mubr.f32.gmra.mrb[0].mxu0 %v1159
        %v1275 = vpop.f32.mrb[0].mxu0
        %v1276 = vadd.f32 %v1207, %v1275
        %v1277 = vpop.f32.mrb[0].mxu0
        %1278 = vdwg.mxu0
        %v1279 = vld [vmem:[#allocation13] sm:$0xff]
        %v1280 = vld [vmem:[#allocation13 + $0x8] sm:$0xff]
        %v1281 = vld [vmem:[#allocation13 + $0x10] sm:$0xff]
        %v1282 = vld [vmem:[#allocation13 + $0x18] sm:$0xff]
        %v1283 = vld [vmem:[#allocation13 + $0x20] sm:$0xff]
        %v1284 = vld [vmem:[#allocation13 + $0x28] sm:$0xff]
        %v1285 = vld [vmem:[#allocation13 + $0x30] sm:$0xff]
        %v1286 = vld [vmem:[#allocation13 + $0x38] sm:$0xff]
        %v1287 = vld [vmem:[#allocation13 + $0x40] sm:$0xff]
        %v1288 = vld [vmem:[#allocation13 + $0x48] sm:$0xff]
        %v1289 = vld [vmem:[#allocation13 + $0x50] sm:$0xff]
        %v1290 = vld [vmem:[#allocation13 + $0x58] sm:$0xff]
        %v1291 = vld [vmem:[#allocation13 + $0x60] sm:$0xff]
        %v1292 = vld [vmem:[#allocation13 + $0x68] sm:$0xff]
        %v1293 = vld [vmem:[#allocation13 + $0x70] sm:$0xff]
        %v1294 = vld [vmem:[#allocation13 + $0x78] sm:$0xff]
        %v1295 = vld [vmem:[#allocation13 + $0x80] sm:$0xff]
        %v1296 = vld [vmem:[#allocation13 + $0x88] sm:$0xff]
        %v1297 = vld [vmem:[#allocation13 + $0x90] sm:$0xff]
        %v1298 = vld [vmem:[#allocation13 + $0x98] sm:$0xff]
        %v1299 = vld [vmem:[#allocation13 + $0xa0] sm:$0xff]
        %v1300 = vld [vmem:[#allocation13 + $0xa8] sm:$0xff]
        %v1301 = vld [vmem:[#allocation13 + $0xb0] sm:$0xff]
        %v1302 = vld [vmem:[#allocation13 + $0xb8] sm:$0xff]
        %v1303 = vld [vmem:[#allocation13 + $0xc0] sm:$0xff]
        %v1304 = vld [vmem:[#allocation13 + $0xc8] sm:$0xff]
        %v1305 = vld [vmem:[#allocation13 + $0xd0] sm:$0xff]
        %v1306 = vld [vmem:[#allocation13 + $0xd8] sm:$0xff]
        %v1307 = vld [vmem:[#allocation13 + $0xe0] sm:$0xff]
        %v1308 = vld [vmem:[#allocation13 + $0xe8] sm:$0xff]
        %v1309 = vld [vmem:[#allocation13 + $0xf0] sm:$0xff]
        %v1310 = vld [vmem:[#allocation13 + $0xf8] sm:$0xff]
        %v1311 = vld [vmem:[%s13] sm:$0x3]
        %v1313 = vlaneseq
        %v1314 = vshrl.u32 %v1313, 7
        %v1315 = vsub.s32 0, %v1314
        %v1316 = vrot.slane %v1311, %v1315
        %v1317 = vlaneseq
        %v1318 = vshrl.u32 %v1317, 7
        %v1319 = vsub.s32 1, %v1318
        %v1320 = vrot.slane %v1311, %v1319
        %1323 = vmatprep.subr.mxu0 %v1280
        %1324 = vmatpush1.msra.mxu0 %v1279
        %1325 = vmatprep.subr.mxu0 %v1282
        %1326 = vmatpush1.msra.mxu0 %v1281
        %1327 = vmatprep.subr.mxu0 %v1284
        %1328 = vmatpush1.msra.mxu0 %v1283
        %1329 = vmatprep.subr.mxu0 %v1286
        %1330 = vmatpush1.msra.mxu0 %v1285
        %1331 = vmatprep.subr.mxu0 %v1288
        %1332 = vmatpush1.msra.mxu0 %v1287
        %1333 = vmatprep.subr.mxu0 %v1290
        %1334 = vmatpush1.msra.mxu0 %v1289
        %1335 = vmatprep.subr.mxu0 %v1292
        %1336 = vmatpush1.msra.mxu0 %v1291
        %1337 = vmatprep.subr.mxu0 %v1294
        %1338 = vmatpush1.msra.mxu0 %v1293
        %1339 = vmatprep.subr.mxu0 %v1296
        %1340 = vmatpush1.msra.mxu0 %v1295
        %1341 = vmatprep.subr.mxu0 %v1298
        %1342 = vmatpush1.msra.mxu0 %v1297
        %1343 = vmatprep.subr.mxu0 %v1300
        %1344 = vmatpush1.msra.mxu0 %v1299
        %1345 = vmatprep.subr.mxu0 %v1302
        %1346 = vmatpush1.msra.mxu0 %v1301
        %1347 = vmatprep.subr.mxu0 %v1304
        %1348 = vmatpush1.msra.mxu0 %v1303
        %1349 = vmatprep.subr.mxu0 %v1306
        %1350 = vmatpush1.msra.mxu0 %v1305
        %1351 = vmatprep.subr.mxu0 %v1308
        %1352 = vmatpush1.msra.mxu0 %v1307
        %1353 = vmatprep.subr.mxu0 %v1310
        %1354 = vmatpush1.msra.mxu0 %v1309
        %1355 = vmatprep.subr.mxu0 0.0
        %1356 = vmatpush1.msra.mxu0 0.0
        %1357 = vmatprep.subr.mxu0 0.0
        %1358 = vmatpush1.msra.mxu0 0.0
        %1359 = vmatprep.subr.mxu0 0.0
        %1360 = vmatpush1.msra.mxu0 0.0
        %1361 = vmatprep.subr.mxu0 0.0
        %1362 = vmatpush1.msra.mxu0 0.0
        %1363 = vmatprep.subr.mxu0 0.0
        %1364 = vmatpush1.msra.mxu0 0.0
        %1365 = vmatprep.subr.mxu0 0.0
        %1366 = vmatpush1.msra.mxu0 0.0
        %1367 = vmatprep.subr.mxu0 0.0
        %1368 = vmatpush1.msra.mxu0 0.0
        %1369 = vmatprep.subr.mxu0 0.0
        %1370 = vmatpush1.msra.mxu0 0.0
        %1371 = vmatprep.subr.mxu0 0.0
        %1372 = vmatpush1.msra.mxu0 0.0
        %1373 = vmatprep.subr.mxu0 0.0
        %1374 = vmatpush1.msra.mxu0 0.0
        %1375 = vmatprep.subr.mxu0 0.0
        %1376 = vmatpush1.msra.mxu0 0.0
        %1377 = vmatprep.subr.mxu0 0.0
        %1378 = vmatpush1.msra.mxu0 0.0
        %1379 = vmatprep.subr.mxu0 0.0
        %1380 = vmatpush1.msra.mxu0 0.0
        %1381 = vmatprep.subr.mxu0 0.0
        %1382 = vmatpush1.msra.mxu0 0.0
        %1383 = vmatprep.subr.mxu0 0.0
        %1384 = vmatpush1.msra.mxu0 0.0
        %1385 = vmatprep.subr.mxu0 0.0
        %1386 = vmatpush1.msra.mxu0 0.0
        %1387 = vmatprep.mubr.f32.mxu0 0.0
        %1388 = vmatmul.mubr.f32.gmra.mrb[0].mxu0 %v1184
        %v1389 = vpop.f32.mrb[0].mxu0
        %v1390 = vadd.f32 %v1316, %v1389
        %v1391 = vpop.f32.mrb[0].mxu0
        %v1392 = vadd.f32 %v1320, %v1391
        %1393 = vmatprep.mubr.f32.mxu0 0.0
        %1394 = vmatmul.mubr.f32.gmra.mrb[0].mxu0 %v1185
        %v1395 = vpop.f32.mrb[0].mxu0
        %v1396 = vadd.f32 %v1316, %v1395
        %v1397 = vpop.f32.mrb[0].mxu0
        %v1398 = vadd.f32 %v1320, %v1397
        %1399 = vdwg.mxu0
        %1401 = vrot.lane.b32.xlu0 %v1276, 112
        %v1402 = vpop.permute.xlu0 %1401
        %1404 = vrot.lane.b32.xlu0 %v1276, 96
        %v1405 = vpop.permute.xlu0 %1404
        %1407 = vrot.lane.b32.xlu0 %v1276, 80
        %v1408 = vpop.permute.xlu0 %1407
        %1410 = vrot.lane.b32.xlu0 %v1276, 64
        %v1411 = vpop.permute.xlu0 %1410
        %1413 = vrot.lane.b32.xlu0 %v1276, 48
        %v1414 = vpop.permute.xlu0 %1413
        %1416 = vrot.lane.b32.xlu0 %v1276, 32
        %v1417 = vpop.permute.xlu0 %1416
        %1419 = vrot.lane.b32.xlu0 %v1276, 16
        %v1420 = vpop.permute.xlu0 %1419
        %v1422 = vcombine.low %v1276, %v1405
        %v1423 = vcombine.high %v1276, %v1405
        %v1425 = vunpack.c.l.s4 1983009808
        %v1426 = vunpack.c.0.s8 %v1425
        %v1427 = vlaneseq
        %v1428 = vshrl.u32 %v1427, 7
        %v1429 = vsub.s32 %v1426, %v1428
        %v1430 = vrot.slane %v1422, %v1429
        %v1432 = vunpack.c.l.s4 1983009808
        %v1433 = vunpack.c.0.s8 %v1432
        %v1434 = vlaneseq
        %v1435 = vshrl.u32 %v1434, 7
        %v1436 = vsub.s32 %v1433, %v1435
        %v1437 = vrot.slane %v1423, %v1436
        %v1438 = vcombine.low %v1402, %v1408
        %v1439 = vcombine.high %v1402, %v1408
        %v1441 = vunpack.c.l.s4 1983009808
        %v1442 = vunpack.c.0.s8 %v1441
        %v1443 = vlaneseq
        %v1444 = vshrl.u32 %v1443, 7
        %v1445 = vsub.s32 %v1442, %v1444
        %v1446 = vrot.slane %v1438, %v1445
        %v1448 = vunpack.c.l.s4 1983009808
        %v1449 = vunpack.c.0.s8 %v1448
        %v1450 = vlaneseq
        %v1451 = vshrl.u32 %v1450, 7
        %v1452 = vsub.s32 %v1449, %v1451
        %v1453 = vrot.slane %v1439, %v1452
        %v1454 = vcombine.low %v1411, %v1417
        %v1455 = vcombine.high %v1411, %v1417
        %v1457 = vunpack.c.l.s4 1983009808
        %v1458 = vunpack.c.0.s8 %v1457
        %v1459 = vlaneseq
        %v1460 = vshrl.u32 %v1459, 7
        %v1461 = vsub.s32 %v1458, %v1460
        %v1462 = vrot.slane %v1454, %v1461
        %v1464 = vunpack.c.l.s4 1983009808
        %v1465 = vunpack.c.0.s8 %v1464
        %v1466 = vlaneseq
        %v1467 = vshrl.u32 %v1466, 7
        %v1468 = vsub.s32 %v1465, %v1467
        %v1469 = vrot.slane %v1455, %v1468
        %v1470 = vcombine.low %v1414, %v1420
        %v1471 = vcombine.high %v1414, %v1420
        %v1473 = vunpack.c.l.s4 1983009808
        %v1474 = vunpack.c.0.s8 %v1473
        %v1475 = vlaneseq
        %v1476 = vshrl.u32 %v1475, 7
        %v1477 = vsub.s32 %v1474, %v1476
        %v1478 = vrot.slane %v1470, %v1477
        %v1480 = vunpack.c.l.s4 1983009808
        %v1481 = vunpack.c.0.s8 %v1480
        %v1482 = vlaneseq
        %v1483 = vshrl.u32 %v1482, 7
        %v1484 = vsub.s32 %v1481, %v1483
        %v1485 = vrot.slane %v1471, %v1484
        %v1486 = vcombine.low %v1430, %v1446
        %v1487 = vcombine.high %v1430, %v1446
        %v1489 = vunpack.c.l.s4 1934713408
        %v1490 = vunpack.c.0.s8 %v1489
        %v1491 = vlaneseq
        %v1492 = vshrl.u32 %v1491, 7
        %v1493 = vsub.s32 %v1490, %v1492
        %v1494 = vrot.slane %v1486, %v1493
        %v1496 = vunpack.c.l.s4 1934713408
        %v1497 = vunpack.c.0.s8 %v1496
        %v1498 = vlaneseq
        %v1499 = vshrl.u32 %v1498, 7
        %v1500 = vsub.s32 %v1497, %v1499
        %v1501 = vrot.slane %v1487, %v1500
        %v1502 = vcombine.low %v1437, %v1453
        %v1503 = vcombine.high %v1437, %v1453
        %v1505 = vunpack.c.l.s4 1934713408
        %v1506 = vunpack.c.0.s8 %v1505
        %v1507 = vlaneseq
        %v1508 = vshrl.u32 %v1507, 7
        %v1509 = vsub.s32 %v1506, %v1508
        %v1510 = vrot.slane %v1502, %v1509
        %v1512 = vunpack.c.l.s4 1934713408
        %v1513 = vunpack.c.0.s8 %v1512
        %v1514 = vlaneseq
        %v1515 = vshrl.u32 %v1514, 7
        %v1516 = vsub.s32 %v1513, %v1515
        %v1517 = vrot.slane %v1503, %v1516
        %v1518 = vcombine.low %v1462, %v1478
        %v1519 = vcombine.high %v1462, %v1478
        %v1521 = vunpack.c.l.s4 1934713408
        %v1522 = vunpack.c.0.s8 %v1521
        %v1523 = vlaneseq
        %v1524 = vshrl.u32 %v1523, 7
        %v1525 = vsub.s32 %v1522, %v1524
        %v1526 = vrot.slane %v1518, %v1525
        %v1528 = vunpack.c.l.s4 1934713408
        %v1529 = vunpack.c.0.s8 %v1528
        %v1530 = vlaneseq
        %v1531 = vshrl.u32 %v1530, 7
        %v1532 = vsub.s32 %v1529, %v1531
        %v1533 = vrot.slane %v1519, %v1532
        %v1534 = vcombine.low %v1469, %v1485
        %v1535 = vcombine.high %v1469, %v1485
        %v1537 = vunpack.c.l.s4 1934713408
        %v1538 = vunpack.c.0.s8 %v1537
        %v1539 = vlaneseq
        %v1540 = vshrl.u32 %v1539, 7
        %v1541 = vsub.s32 %v1538, %v1540
        %v1542 = vrot.slane %v1534, %v1541
        %v1544 = vunpack.c.l.s4 1934713408
        %v1545 = vunpack.c.0.s8 %v1544
        %v1546 = vlaneseq
        %v1547 = vshrl.u32 %v1546, 7
        %v1548 = vsub.s32 %v1545, %v1547
        %v1549 = vrot.slane %v1535, %v1548
        %v1550 = vcombine.low %v1494, %v1526
        %v1551 = vcombine.high %v1494, %v1526
        %v1552 = vcombine.low %v1501, %v1533
        %v1553 = vcombine.high %v1501, %v1533
        %v1554 = vcombine.low %v1510, %v1542
        %v1555 = vcombine.high %v1510, %v1542
        %v1556 = vcombine.low %v1517, %v1549
        %v1557 = vcombine.high %v1517, %v1549
        %v1558 = vcombine.low %v1550, %v1552
        %v1559 = vcombine.high %v1550, %v1552
        %v1561 = vunpack.c.l.s4 1983009808
        %v1562 = vunpack.c.0.s8 %v1561
        %v1563 = vlaneseq
        %v1564 = vshrl.u32 %v1563, 7
        %v1565 = vsub.s32 %v1562, %v1564
        %v1566 = vrot.slane %v1558, %v1565
        %v1568 = vunpack.c.l.s4 1983009808
        %v1569 = vunpack.c.0.s8 %v1568
        %v1570 = vlaneseq
        %v1571 = vshrl.u32 %v1570, 7
        %v1572 = vsub.s32 %v1569, %v1571
        %v1573 = vrot.slane %v1559, %v1572
        %v1574 = vcombine.low %v1551, %v1553
        %v1575 = vcombine.high %v1551, %v1553
        %v1577 = vunpack.c.l.s4 1983009808
        %v1578 = vunpack.c.0.s8 %v1577
        %v1579 = vlaneseq
        %v1580 = vshrl.u32 %v1579, 7
        %v1581 = vsub.s32 %v1578, %v1580
        %v1582 = vrot.slane %v1574, %v1581
        %v1584 = vunpack.c.l.s4 1983009808
        %v1585 = vunpack.c.0.s8 %v1584
        %v1586 = vlaneseq
        %v1587 = vshrl.u32 %v1586, 7
        %v1588 = vsub.s32 %v1585, %v1587
        %v1589 = vrot.slane %v1575, %v1588
        %v1590 = vcombine.low %v1554, %v1556
        %v1591 = vcombine.high %v1554, %v1556
        %v1593 = vunpack.c.l.s4 1983009808
        %v1594 = vunpack.c.0.s8 %v1593
        %v1595 = vlaneseq
        %v1596 = vshrl.u32 %v1595, 7
        %v1597 = vsub.s32 %v1594, %v1596
        %v1598 = vrot.slane %v1590, %v1597
        %v1600 = vunpack.c.l.s4 1983009808
        %v1601 = vunpack.c.0.s8 %v1600
        %v1602 = vlaneseq
        %v1603 = vshrl.u32 %v1602, 7
        %v1604 = vsub.s32 %v1601, %v1603
        %v1605 = vrot.slane %v1591, %v1604
        %v1606 = vcombine.low %v1555, %v1557
        %v1607 = vcombine.high %v1555, %v1557
        %v1609 = vunpack.c.l.s4 1983009808
        %v1610 = vunpack.c.0.s8 %v1609
        %v1611 = vlaneseq
        %v1612 = vshrl.u32 %v1611, 7
        %v1613 = vsub.s32 %v1610, %v1612
        %v1614 = vrot.slane %v1606, %v1613
        %v1616 = vunpack.c.l.s4 1983009808
        %v1617 = vunpack.c.0.s8 %v1616
        %v1618 = vlaneseq
        %v1619 = vshrl.u32 %v1618, 7
        %v1620 = vsub.s32 %v1617, %v1619
        %v1621 = vrot.slane %v1607, %v1620
        %v1622 = vcombine.low %v1566, %v1582
        %v1623 = vcombine.high %v1566, %v1582
        %v1625 = vunpack.c.l.s4 1934713408
        %v1626 = vunpack.c.0.s8 %v1625
        %v1627 = vlaneseq
        %v1628 = vshrl.u32 %v1627, 7
        %v1629 = vsub.s32 %v1626, %v1628
        %v1630 = vrot.slane %v1622, %v1629
        %v1632 = vunpack.c.l.s4 1934713408
        %v1633 = vunpack.c.0.s8 %v1632
        %v1634 = vlaneseq
        %v1635 = vshrl.u32 %v1634, 7
        %v1636 = vsub.s32 %v1633, %v1635
        %v1637 = vrot.slane %v1623, %v1636
        %v1638 = vcombine.low %v1573, %v1589
        %v1639 = vcombine.high %v1573, %v1589
        %v1641 = vunpack.c.l.s4 1934713408
        %v1642 = vunpack.c.0.s8 %v1641
        %v1643 = vlaneseq
        %v1644 = vshrl.u32 %v1643, 7
        %v1645 = vsub.s32 %v1642, %v1644
        %v1646 = vrot.slane %v1638, %v1645
        %v1648 = vunpack.c.l.s4 1934713408
        %v1649 = vunpack.c.0.s8 %v1648
        %v1650 = vlaneseq
        %v1651 = vshrl.u32 %v1650, 7
        %v1652 = vsub.s32 %v1649, %v1651
        %v1653 = vrot.slane %v1639, %v1652
        %v1654 = vcombine.low %v1598, %v1614
        %v1655 = vcombine.high %v1598, %v1614
        %v1657 = vunpack.c.l.s4 1934713408
        %v1658 = vunpack.c.0.s8 %v1657
        %v1659 = vlaneseq
        %v1660 = vshrl.u32 %v1659, 7
        %v1661 = vsub.s32 %v1658, %v1660
        %v1662 = vrot.slane %v1654, %v1661
        %v1664 = vunpack.c.l.s4 1934713408
        %v1665 = vunpack.c.0.s8 %v1664
        %v1666 = vlaneseq
        %v1667 = vshrl.u32 %v1666, 7
        %v1668 = vsub.s32 %v1665, %v1667
        %v1669 = vrot.slane %v1655, %v1668
        %v1670 = vcombine.low %v1605, %v1621
        %v1671 = vcombine.high %v1605, %v1621
        %v1673 = vunpack.c.l.s4 1934713408
        %v1674 = vunpack.c.0.s8 %v1673
        %v1675 = vlaneseq
        %v1676 = vshrl.u32 %v1675, 7
        %v1677 = vsub.s32 %v1674, %v1676
        %v1678 = vrot.slane %v1670, %v1677
        %v1680 = vunpack.c.l.s4 1934713408
        %v1681 = vunpack.c.0.s8 %v1680
        %v1682 = vlaneseq
        %v1683 = vshrl.u32 %v1682, 7
        %v1684 = vsub.s32 %v1681, %v1683
        %v1685 = vrot.slane %v1671, %v1684
        %v1686 = vcombine.low %v1630, %v1662
        %v1687 = vcombine.high %v1630, %v1662
        %v1688 = vcombine.low %v1637, %v1669
        %v1689 = vcombine.high %v1637, %v1669
        %v1690 = vcombine.low %v1646, %v1678
        %v1691 = vcombine.high %v1646, %v1678
        %v1692 = vcombine.low %v1653, %v1685
        %v1693 = vcombine.high %v1653, %v1685
        %1696 = vrot.lane.b32.xlu0 %v1390, 112
        %v1697 = vpop.permute.xlu0 %1696
        %1698 = vrot.lane.b32.xlu0 %v1396, 112
        %v1699 = vpop.permute.xlu0 %1698
        %1702 = vrot.lane.b32.xlu0 %v1390, 96
        %v1703 = vpop.permute.xlu0 %1702
        %1704 = vrot.lane.b32.xlu0 %v1396, 96
        %v1705 = vpop.permute.xlu0 %1704
        %1708 = vrot.lane.b32.xlu0 %v1390, 80
        %v1709 = vpop.permute.xlu0 %1708
        %1710 = vrot.lane.b32.xlu0 %v1396, 80
        %v1711 = vpop.permute.xlu0 %1710
        %1714 = vrot.lane.b32.xlu0 %v1390, 64
        %v1715 = vpop.permute.xlu0 %1714
        %1716 = vrot.lane.b32.xlu0 %v1396, 64
        %v1717 = vpop.permute.xlu0 %1716
        %1720 = vrot.lane.b32.xlu0 %v1390, 48
        %v1721 = vpop.permute.xlu0 %1720
        %1722 = vrot.lane.b32.xlu0 %v1396, 48
        %v1723 = vpop.permute.xlu0 %1722
        %1726 = vrot.lane.b32.xlu0 %v1390, 32
        %v1727 = vpop.permute.xlu0 %1726
        %1728 = vrot.lane.b32.xlu0 %v1396, 32
        %v1729 = vpop.permute.xlu0 %1728
        %1732 = vrot.lane.b32.xlu0 %v1390, 16
        %v1733 = vpop.permute.xlu0 %1732
        %1734 = vrot.lane.b32.xlu0 %v1396, 16
        %v1735 = vpop.permute.xlu0 %1734
        %v1738 = vcombine.low %v1390, %v1703
        %v1739 = vcombine.high %v1390, %v1703
        %v1741 = vunpack.c.l.s4 1983009808
        %v1742 = vunpack.c.0.s8 %v1741
        %v1743 = vlaneseq
        %v1744 = vshrl.u32 %v1743, 7
        %v1745 = vsub.s32 %v1742, %v1744
        %v1746 = vrot.slane %v1738, %v1745
        %v1748 = vunpack.c.l.s4 1983009808
        %v1749 = vunpack.c.0.s8 %v1748
        %v1750 = vlaneseq
        %v1751 = vshrl.u32 %v1750, 7
        %v1752 = vsub.s32 %v1749, %v1751
        %v1753 = vrot.slane %v1739, %v1752
        %v1754 = vcombine.low %v1697, %v1709
        %v1755 = vcombine.high %v1697, %v1709
        %v1757 = vunpack.c.l.s4 1983009808
        %v1758 = vunpack.c.0.s8 %v1757
        %v1759 = vlaneseq
        %v1760 = vshrl.u32 %v1759, 7
        %v1761 = vsub.s32 %v1758, %v1760
        %v1762 = vrot.slane %v1754, %v1761
        %v1764 = vunpack.c.l.s4 1983009808
        %v1765 = vunpack.c.0.s8 %v1764
        %v1766 = vlaneseq
        %v1767 = vshrl.u32 %v1766, 7
        %v1768 = vsub.s32 %v1765, %v1767
        %v1769 = vrot.slane %v1755, %v1768
        %v1770 = vcombine.low %v1715, %v1727
        %v1771 = vcombine.high %v1715, %v1727
        %v1773 = vunpack.c.l.s4 1983009808
        %v1774 = vunpack.c.0.s8 %v1773
        %v1775 = vlaneseq
        %v1776 = vshrl.u32 %v1775, 7
        %v1777 = vsub.s32 %v1774, %v1776
        %v1778 = vrot.slane %v1770, %v1777
        %v1780 = vunpack.c.l.s4 1983009808
        %v1781 = vunpack.c.0.s8 %v1780
        %v1782 = vlaneseq
        %v1783 = vshrl.u32 %v1782, 7
        %v1784 = vsub.s32 %v1781, %v1783
        %v1785 = vrot.slane %v1771, %v1784
        %v1786 = vcombine.low %v1721, %v1733
        %v1787 = vcombine.high %v1721, %v1733
        %v1789 = vunpack.c.l.s4 1983009808
        %v1790 = vunpack.c.0.s8 %v1789
        %v1791 = vlaneseq
        %v1792 = vshrl.u32 %v1791, 7
        %v1793 = vsub.s32 %v1790, %v1792
        %v1794 = vrot.slane %v1786, %v1793
        %v1796 = vunpack.c.l.s4 1983009808
        %v1797 = vunpack.c.0.s8 %v1796
        %v1798 = vlaneseq
        %v1799 = vshrl.u32 %v1798, 7
        %v1800 = vsub.s32 %v1797, %v1799
        %v1801 = vrot.slane %v1787, %v1800
        %v1802 = vcombine.low %v1746, %v1762
        %v1803 = vcombine.high %v1746, %v1762
        %v1805 = vunpack.c.l.s4 1934713408
        %v1806 = vunpack.c.0.s8 %v1805
        %v1807 = vlaneseq
        %v1808 = vshrl.u32 %v1807, 7
        %v1809 = vsub.s32 %v1806, %v1808
        %v1810 = vrot.slane %v1802, %v1809
        %v1812 = vunpack.c.l.s4 1934713408
        %v1813 = vunpack.c.0.s8 %v1812
        %v1814 = vlaneseq
        %v1815 = vshrl.u32 %v1814, 7
        %v1816 = vsub.s32 %v1813, %v1815
        %v1817 = vrot.slane %v1803, %v1816
        %v1818 = vcombine.low %v1753, %v1769
        %v1819 = vcombine.high %v1753, %v1769
        %v1821 = vunpack.c.l.s4 1934713408
        %v1822 = vunpack.c.0.s8 %v1821
        %v1823 = vlaneseq
        %v1824 = vshrl.u32 %v1823, 7
        %v1825 = vsub.s32 %v1822, %v1824
        %v1826 = vrot.slane %v1818, %v1825
        %v1828 = vunpack.c.l.s4 1934713408
        %v1829 = vunpack.c.0.s8 %v1828
        %v1830 = vlaneseq
        %v1831 = vshrl.u32 %v1830, 7
        %v1832 = vsub.s32 %v1829, %v1831
        %v1833 = vrot.slane %v1819, %v1832
        %v1834 = vcombine.low %v1778, %v1794
        %v1835 = vcombine.high %v1778, %v1794
        %v1837 = vunpack.c.l.s4 1934713408
        %v1838 = vunpack.c.0.s8 %v1837
        %v1839 = vlaneseq
        %v1840 = vshrl.u32 %v1839, 7
        %v1841 = vsub.s32 %v1838, %v1840
        %v1842 = vrot.slane %v1834, %v1841
        %v1844 = vunpack.c.l.s4 1934713408
        %v1845 = vunpack.c.0.s8 %v1844
        %v1846 = vlaneseq
        %v1847 = vshrl.u32 %v1846, 7
        %v1848 = vsub.s32 %v1845, %v1847
        %v1849 = vrot.slane %v1835, %v1848
        %v1850 = vcombine.low %v1785, %v1801
        %v1851 = vcombine.high %v1785, %v1801
        %v1853 = vunpack.c.l.s4 1934713408
        %v1854 = vunpack.c.0.s8 %v1853
        %v1855 = vlaneseq
        %v1856 = vshrl.u32 %v1855, 7
        %v1857 = vsub.s32 %v1854, %v1856
        %v1858 = vrot.slane %v1850, %v1857
        %v1860 = vunpack.c.l.s4 1934713408
        %v1861 = vunpack.c.0.s8 %v1860
        %v1862 = vlaneseq
        %v1863 = vshrl.u32 %v1862, 7
        %v1864 = vsub.s32 %v1861, %v1863
        %v1865 = vrot.slane %v1851, %v1864
        %v1866 = vcombine.low %v1810, %v1842
        %v1867 = vcombine.high %v1810, %v1842
        %v1868 = vcombine.low %v1817, %v1849
        %v1869 = vcombine.high %v1817, %v1849
        %v1870 = vcombine.low %v1826, %v1858
        %v1871 = vcombine.high %v1826, %v1858
        %v1872 = vcombine.low %v1833, %v1865
        %v1873 = vcombine.high %v1833, %v1865
        %v1874 = vcombine.low %v1396, %v1705
        %v1875 = vcombine.high %v1396, %v1705
        %v1877 = vunpack.c.l.s4 1983009808
        %v1878 = vunpack.c.0.s8 %v1877
        %v1879 = vlaneseq
        %v1880 = vshrl.u32 %v1879, 7
        %v1881 = vsub.s32 %v1878, %v1880
        %v1882 = vrot.slane %v1874, %v1881
        %v1884 = vunpack.c.l.s4 1983009808
        %v1885 = vunpack.c.0.s8 %v1884
        %v1886 = vlaneseq
        %v1887 = vshrl.u32 %v1886, 7
        %v1888 = vsub.s32 %v1885, %v1887
        %v1889 = vrot.slane %v1875, %v1888
        %v1890 = vcombine.low %v1699, %v1711
        %v1891 = vcombine.high %v1699, %v1711
        %v1893 = vunpack.c.l.s4 1983009808
        %v1894 = vunpack.c.0.s8 %v1893
        %v1895 = vlaneseq
        %v1896 = vshrl.u32 %v1895, 7
        %v1897 = vsub.s32 %v1894, %v1896
        %v1898 = vrot.slane %v1890, %v1897
        %v1900 = vunpack.c.l.s4 1983009808
        %v1901 = vunpack.c.0.s8 %v1900
        %v1902 = vlaneseq
        %v1903 = vshrl.u32 %v1902, 7
        %v1904 = vsub.s32 %v1901, %v1903
        %v1905 = vrot.slane %v1891, %v1904
        %v1906 = vcombine.low %v1717, %v1729
        %v1907 = vcombine.high %v1717, %v1729
        %v1909 = vunpack.c.l.s4 1983009808
        %v1910 = vunpack.c.0.s8 %v1909
        %v1911 = vlaneseq
        %v1912 = vshrl.u32 %v1911, 7
        %v1913 = vsub.s32 %v1910, %v1912
        %v1914 = vrot.slane %v1906, %v1913
        %v1916 = vunpack.c.l.s4 1983009808
        %v1917 = vunpack.c.0.s8 %v1916
        %v1918 = vlaneseq
        %v1919 = vshrl.u32 %v1918, 7
        %v1920 = vsub.s32 %v1917, %v1919
        %v1921 = vrot.slane %v1907, %v1920
        %v1922 = vcombine.low %v1723, %v1735
        %v1923 = vcombine.high %v1723, %v1735
        %v1925 = vunpack.c.l.s4 1983009808
        %v1926 = vunpack.c.0.s8 %v1925
        %v1927 = vlaneseq
        %v1928 = vshrl.u32 %v1927, 7
        %v1929 = vsub.s32 %v1926, %v1928
        %v1930 = vrot.slane %v1922, %v1929
        %v1932 = vunpack.c.l.s4 1983009808
        %v1933 = vunpack.c.0.s8 %v1932
        %v1934 = vlaneseq
        %v1935 = vshrl.u32 %v1934, 7
        %v1936 = vsub.s32 %v1933, %v1935
        %v1937 = vrot.slane %v1923, %v1936
        %v1938 = vcombine.low %v1882, %v1898
        %v1939 = vcombine.high %v1882, %v1898
        %v1941 = vunpack.c.l.s4 1934713408
        %v1942 = vunpack.c.0.s8 %v1941
        %v1943 = vlaneseq
        %v1944 = vshrl.u32 %v1943, 7
        %v1945 = vsub.s32 %v1942, %v1944
        %v1946 = vrot.slane %v1938, %v1945
        %v1948 = vunpack.c.l.s4 1934713408
        %v1949 = vunpack.c.0.s8 %v1948
        %v1950 = vlaneseq
        %v1951 = vshrl.u32 %v1950, 7
        %v1952 = vsub.s32 %v1949, %v1951
        %v1953 = vrot.slane %v1939, %v1952
        %v1954 = vcombine.low %v1889, %v1905
        %v1955 = vcombine.high %v1889, %v1905
        %v1957 = vunpack.c.l.s4 1934713408
        %v1958 = vunpack.c.0.s8 %v1957
        %v1959 = vlaneseq
        %v1960 = vshrl.u32 %v1959, 7
        %v1961 = vsub.s32 %v1958, %v1960
        %v1962 = vrot.slane %v1954, %v1961
        %v1964 = vunpack.c.l.s4 1934713408
        %v1965 = vunpack.c.0.s8 %v1964
        %v1966 = vlaneseq
        %v1967 = vshrl.u32 %v1966, 7
        %v1968 = vsub.s32 %v1965, %v1967
        %v1969 = vrot.slane %v1955, %v1968
        %v1970 = vcombine.low %v1914, %v1930
        %v1971 = vcombine.high %v1914, %v1930
        %v1973 = vunpack.c.l.s4 1934713408
        %v1974 = vunpack.c.0.s8 %v1973
        %v1975 = vlaneseq
        %v1976 = vshrl.u32 %v1975, 7
        %v1977 = vsub.s32 %v1974, %v1976
        %v1978 = vrot.slane %v1970, %v1977
        %v1980 = vunpack.c.l.s4 1934713408
        %v1981 = vunpack.c.0.s8 %v1980
        %v1982 = vlaneseq
        %v1983 = vshrl.u32 %v1982, 7
        %v1984 = vsub.s32 %v1981, %v1983
        %v1985 = vrot.slane %v1971, %v1984
        %v1986 = vcombine.low %v1921, %v1937
        %v1987 = vcombine.high %v1921, %v1937
        %v1989 = vunpack.c.l.s4 1934713408
        %v1990 = vunpack.c.0.s8 %v1989
        %v1991 = vlaneseq
        %v1992 = vshrl.u32 %v1991, 7
        %v1993 = vsub.s32 %v1990, %v1992
        %v1994 = vrot.slane %v1986, %v1993
        %v1996 = vunpack.c.l.s4 1934713408
        %v1997 = vunpack.c.0.s8 %v1996
        %v1998 = vlaneseq
        %v1999 = vshrl.u32 %v1998, 7
        %v2000 = vsub.s32 %v1997, %v1999
        %v2001 = vrot.slane %v1987, %v2000
        %v2002 = vcombine.low %v1946, %v1978
        %v2003 = vcombine.high %v1946, %v1978
        %v2004 = vcombine.low %v1953, %v1985
        %v2005 = vcombine.high %v1953, %v1985
        %v2006 = vcombine.low %v1962, %v1994
        %v2007 = vcombine.high %v1962, %v1994
        %v2008 = vcombine.low %v1969, %v2001
        %v2009 = vcombine.high %v1969, %v2001
        %v2010 = vcombine.low %v1866, %v1868
        %v2011 = vcombine.high %v1866, %v1868
        %v2013 = vunpack.c.l.s4 1983009808
        %v2014 = vunpack.c.0.s8 %v2013
        %v2015 = vlaneseq
        %v2016 = vshrl.u32 %v2015, 7
        %v2017 = vsub.s32 %v2014, %v2016
        %v2018 = vrot.slane %v2010, %v2017
        %v2020 = vunpack.c.l.s4 1983009808
        %v2021 = vunpack.c.0.s8 %v2020
        %v2022 = vlaneseq
        %v2023 = vshrl.u32 %v2022, 7
        %v2024 = vsub.s32 %v2021, %v2023
        %v2025 = vrot.slane %v2011, %v2024
        %v2026 = vcombine.low %v1867, %v1869
        %v2027 = vcombine.high %v1867, %v1869
        %v2029 = vunpack.c.l.s4 1983009808
        %v2030 = vunpack.c.0.s8 %v2029
        %v2031 = vlaneseq
        %v2032 = vshrl.u32 %v2031, 7
        %v2033 = vsub.s32 %v2030, %v2032
        %v2034 = vrot.slane %v2026, %v2033
        %v2036 = vunpack.c.l.s4 1983009808
        %v2037 = vunpack.c.0.s8 %v2036
        %v2038 = vlaneseq
        %v2039 = vshrl.u32 %v2038, 7
        %v2040 = vsub.s32 %v2037, %v2039
        %v2041 = vrot.slane %v2027, %v2040
        %v2042 = vcombine.low %v1870, %v1872
        %v2043 = vcombine.high %v1870, %v1872
        %v2045 = vunpack.c.l.s4 1983009808
        %v2046 = vunpack.c.0.s8 %v2045
        %v2047 = vlaneseq
        %v2048 = vshrl.u32 %v2047, 7
        %v2049 = vsub.s32 %v2046, %v2048
        %v2050 = vrot.slane %v2042, %v2049
        %v2052 = vunpack.c.l.s4 1983009808
        %v2053 = vunpack.c.0.s8 %v2052
        %v2054 = vlaneseq
        %v2055 = vshrl.u32 %v2054, 7
        %v2056 = vsub.s32 %v2053, %v2055
        %v2057 = vrot.slane %v2043, %v2056
        %v2058 = vcombine.low %v1871, %v1873
        %v2059 = vcombine.high %v1871, %v1873
        %v2061 = vunpack.c.l.s4 1983009808
        %v2062 = vunpack.c.0.s8 %v2061
        %v2063 = vlaneseq
        %v2064 = vshrl.u32 %v2063, 7
        %v2065 = vsub.s32 %v2062, %v2064
        %v2066 = vrot.slane %v2058, %v2065
        %v2068 = vunpack.c.l.s4 1983009808
        %v2069 = vunpack.c.0.s8 %v2068
        %v2070 = vlaneseq
        %v2071 = vshrl.u32 %v2070, 7
        %v2072 = vsub.s32 %v2069, %v2071
        %v2073 = vrot.slane %v2059, %v2072
        %v2074 = vcombine.low %v2018, %v2034
        %v2075 = vcombine.high %v2018, %v2034
        %v2077 = vunpack.c.l.s4 1934713408
        %v2078 = vunpack.c.0.s8 %v2077
        %v2079 = vlaneseq
        %v2080 = vshrl.u32 %v2079, 7
        %v2081 = vsub.s32 %v2078, %v2080
        %v2082 = vrot.slane %v2074, %v2081
        %v2084 = vunpack.c.l.s4 1934713408
        %v2085 = vunpack.c.0.s8 %v2084
        %v2086 = vlaneseq
        %v2087 = vshrl.u32 %v2086, 7
        %v2088 = vsub.s32 %v2085, %v2087
        %v2089 = vrot.slane %v2075, %v2088
        %v2090 = vcombine.low %v2025, %v2041
        %v2091 = vcombine.high %v2025, %v2041
        %v2093 = vunpack.c.l.s4 1934713408
        %v2094 = vunpack.c.0.s8 %v2093
        %v2095 = vlaneseq
        %v2096 = vshrl.u32 %v2095, 7
        %v2097 = vsub.s32 %v2094, %v2096
        %v2098 = vrot.slane %v2090, %v2097
        %v2100 = vunpack.c.l.s4 1934713408
        %v2101 = vunpack.c.0.s8 %v2100
        %v2102 = vlaneseq
        %v2103 = vshrl.u32 %v2102, 7
        %v2104 = vsub.s32 %v2101, %v2103
        %v2105 = vrot.slane %v2091, %v2104
        %v2106 = vcombine.low %v2050, %v2066
        %v2107 = vcombine.high %v2050, %v2066
        %v2109 = vunpack.c.l.s4 1934713408
        %v2110 = vunpack.c.0.s8 %v2109
        %v2111 = vlaneseq
        %v2112 = vshrl.u32 %v2111, 7
        %v2113 = vsub.s32 %v2110, %v2112
        %v2114 = vrot.slane %v2106, %v2113
        %v2116 = vunpack.c.l.s4 1934713408
        %v2117 = vunpack.c.0.s8 %v2116
        %v2118 = vlaneseq
        %v2119 = vshrl.u32 %v2118, 7
        %v2120 = vsub.s32 %v2117, %v2119
        %v2121 = vrot.slane %v2107, %v2120
        %v2122 = vcombine.low %v2057, %v2073
        %v2123 = vcombine.high %v2057, %v2073
        %v2125 = vunpack.c.l.s4 1934713408
        %v2126 = vunpack.c.0.s8 %v2125
        %v2127 = vlaneseq
        %v2128 = vshrl.u32 %v2127, 7
        %v2129 = vsub.s32 %v2126, %v2128
        %v2130 = vrot.slane %v2122, %v2129
        %v2132 = vunpack.c.l.s4 1934713408
        %v2133 = vunpack.c.0.s8 %v2132
        %v2134 = vlaneseq
        %v2135 = vshrl.u32 %v2134, 7
        %v2136 = vsub.s32 %v2133, %v2135
        %v2137 = vrot.slane %v2123, %v2136
        %v2138 = vcombine.low %v2082, %v2114
        %v2139 = vcombine.high %v2082, %v2114
        %v2140 = vcombine.low %v2089, %v2121
        %v2141 = vcombine.high %v2089, %v2121
        %v2142 = vcombine.low %v2098, %v2130
        %v2143 = vcombine.high %v2098, %v2130
        %v2144 = vcombine.low %v2105, %v2137
        %v2145 = vcombine.high %v2105, %v2137
        %v2146 = vcombine.low %v2002, %v2004
        %v2147 = vcombine.high %v2002, %v2004
        %v2149 = vunpack.c.l.s4 1983009808
        %v2150 = vunpack.c.0.s8 %v2149
        %v2151 = vlaneseq
        %v2152 = vshrl.u32 %v2151, 7
        %v2153 = vsub.s32 %v2150, %v2152
        %v2154 = vrot.slane %v2146, %v2153
        %v2156 = vunpack.c.l.s4 1983009808
        %v2157 = vunpack.c.0.s8 %v2156
        %v2158 = vlaneseq
        %v2159 = vshrl.u32 %v2158, 7
        %v2160 = vsub.s32 %v2157, %v2159
        %v2161 = vrot.slane %v2147, %v2160
        %v2162 = vcombine.low %v2003, %v2005
        %v2163 = vcombine.high %v2003, %v2005
        %v2165 = vunpack.c.l.s4 1983009808
        %v2166 = vunpack.c.0.s8 %v2165
        %v2167 = vlaneseq
        %v2168 = vshrl.u32 %v2167, 7
        %v2169 = vsub.s32 %v2166, %v2168
        %v2170 = vrot.slane %v2162, %v2169
        %v2172 = vunpack.c.l.s4 1983009808
        %v2173 = vunpack.c.0.s8 %v2172
        %v2174 = vlaneseq
        %v2175 = vshrl.u32 %v2174, 7
        %v2176 = vsub.s32 %v2173, %v2175
        %v2177 = vrot.slane %v2163, %v2176
        %v2178 = vcombine.low %v2006, %v2008
        %v2179 = vcombine.high %v2006, %v2008
        %v2181 = vunpack.c.l.s4 1983009808
        %v2182 = vunpack.c.0.s8 %v2181
        %v2183 = vlaneseq
        %v2184 = vshrl.u32 %v2183, 7
        %v2185 = vsub.s32 %v2182, %v2184
        %v2186 = vrot.slane %v2178, %v2185
        %v2188 = vunpack.c.l.s4 1983009808
        %v2189 = vunpack.c.0.s8 %v2188
        %v2190 = vlaneseq
        %v2191 = vshrl.u32 %v2190, 7
        %v2192 = vsub.s32 %v2189, %v2191
        %v2193 = vrot.slane %v2179, %v2192
        %v2194 = vcombine.low %v2007, %v2009
        %v2195 = vcombine.high %v2007, %v2009
        %v2197 = vunpack.c.l.s4 1983009808
        %v2198 = vunpack.c.0.s8 %v2197
        %v2199 = vlaneseq
        %v2200 = vshrl.u32 %v2199, 7
        %v2201 = vsub.s32 %v2198, %v2200
        %v2202 = vrot.slane %v2194, %v2201
        %v2204 = vunpack.c.l.s4 1983009808
        %v2205 = vunpack.c.0.s8 %v2204
        %v2206 = vlaneseq
        %v2207 = vshrl.u32 %v2206, 7
        %v2208 = vsub.s32 %v2205, %v2207
        %v2209 = vrot.slane %v2195, %v2208
        %v2210 = vcombine.low %v2154, %v2170
        %v2211 = vcombine.high %v2154, %v2170
        %v2213 = vunpack.c.l.s4 1934713408
        %v2214 = vunpack.c.0.s8 %v2213
        %v2215 = vlaneseq
        %v2216 = vshrl.u32 %v2215, 7
        %v2217 = vsub.s32 %v2214, %v2216
        %v2218 = vrot.slane %v2210, %v2217
        %v2220 = vunpack.c.l.s4 1934713408
        %v2221 = vunpack.c.0.s8 %v2220
        %v2222 = vlaneseq
        %v2223 = vshrl.u32 %v2222, 7
        %v2224 = vsub.s32 %v2221, %v2223
        %v2225 = vrot.slane %v2211, %v2224
        %v2226 = vcombine.low %v2161, %v2177
        %v2227 = vcombine.high %v2161, %v2177
        %v2229 = vunpack.c.l.s4 1934713408
        %v2230 = vunpack.c.0.s8 %v2229
        %v2231 = vlaneseq
        %v2232 = vshrl.u32 %v2231, 7
        %v2233 = vsub.s32 %v2230, %v2232
        %v2234 = vrot.slane %v2226, %v2233
        %v2236 = vunpack.c.l.s4 1934713408
        %v2237 = vunpack.c.0.s8 %v2236
        %v2238 = vlaneseq
        %v2239 = vshrl.u32 %v2238, 7
        %v2240 = vsub.s32 %v2237, %v2239
        %v2241 = vrot.slane %v2227, %v2240
        %v2242 = vcombine.low %v2186, %v2202
        %v2243 = vcombine.high %v2186, %v2202
        %v2245 = vunpack.c.l.s4 1934713408
        %v2246 = vunpack.c.0.s8 %v2245
        %v2247 = vlaneseq
        %v2248 = vshrl.u32 %v2247, 7
        %v2249 = vsub.s32 %v2246, %v2248
        %v2250 = vrot.slane %v2242, %v2249
        %v2252 = vunpack.c.l.s4 1934713408
        %v2253 = vunpack.c.0.s8 %v2252
        %v2254 = vlaneseq
        %v2255 = vshrl.u32 %v2254, 7
        %v2256 = vsub.s32 %v2253, %v2255
        %v2257 = vrot.slane %v2243, %v2256
        %v2258 = vcombine.low %v2193, %v2209
        %v2259 = vcombine.high %v2193, %v2209
        %v2261 = vunpack.c.l.s4 1934713408
        %v2262 = vunpack.c.0.s8 %v2261
        %v2263 = vlaneseq
        %v2264 = vshrl.u32 %v2263, 7
        %v2265 = vsub.s32 %v2262, %v2264
        %v2266 = vrot.slane %v2258, %v2265
        %v2268 = vunpack.c.l.s4 1934713408
        %v2269 = vunpack.c.0.s8 %v2268
        %v2270 = vlaneseq
        %v2271 = vshrl.u32 %v2270, 7
        %v2272 = vsub.s32 %v2269, %v2271
        %v2273 = vrot.slane %v2259, %v2272
        %v2274 = vcombine.low %v2218, %v2250
        %v2275 = vcombine.high %v2218, %v2250
        %v2276 = vcombine.low %v2225, %v2257
        %v2277 = vcombine.high %v2225, %v2257
        %v2278 = vcombine.low %v2234, %v2266
        %v2279 = vcombine.high %v2234, %v2266
        %v2280 = vcombine.low %v2241, %v2273
        %v2281 = vcombine.high %v2241, %v2273
        %2284 = vrot.lane.b32.xlu0 %v1392, 112
        %v2285 = vpop.permute.xlu0 %2284
        %2286 = vrot.lane.b32.xlu0 %v1398, 112
        %v2287 = vpop.permute.xlu0 %2286
        %2290 = vrot.lane.b32.xlu0 %v1392, 96
        %v2291 = vpop.permute.xlu0 %2290
        %2292 = vrot.lane.b32.xlu0 %v1398, 96
        %v2293 = vpop.permute.xlu0 %2292
        %2296 = vrot.lane.b32.xlu0 %v1392, 80
        %v2297 = vpop.permute.xlu0 %2296
        %2298 = vrot.lane.b32.xlu0 %v1398, 80
        %v2299 = vpop.permute.xlu0 %2298
        %2302 = vrot.lane.b32.xlu0 %v1392, 64
        %v2303 = vpop.permute.xlu0 %2302
        %2304 = vrot.lane.b32.xlu0 %v1398, 64
        %v2305 = vpop.permute.xlu0 %2304
        %2308 = vrot.lane.b32.xlu0 %v1392, 48
        %v2309 = vpop.permute.xlu0 %2308
        %2310 = vrot.lane.b32.xlu0 %v1398, 48
        %v2311 = vpop.permute.xlu0 %2310
        %2314 = vrot.lane.b32.xlu0 %v1392, 32
        %v2315 = vpop.permute.xlu0 %2314
        %2316 = vrot.lane.b32.xlu0 %v1398, 32
        %v2317 = vpop.permute.xlu0 %2316
        %2320 = vrot.lane.b32.xlu0 %v1392, 16
        %v2321 = vpop.permute.xlu0 %2320
        %2322 = vrot.lane.b32.xlu0 %v1398, 16
        %v2323 = vpop.permute.xlu0 %2322
        %v2326 = vcombine.low %v1392, %v2291
        %v2327 = vcombine.high %v1392, %v2291
        %v2329 = vunpack.c.l.s4 1983009808
        %v2330 = vunpack.c.0.s8 %v2329
        %v2331 = vlaneseq
        %v2332 = vshrl.u32 %v2331, 7
        %v2333 = vsub.s32 %v2330, %v2332
        %v2334 = vrot.slane %v2326, %v2333
        %v2336 = vunpack.c.l.s4 1983009808
        %v2337 = vunpack.c.0.s8 %v2336
        %v2338 = vlaneseq
        %v2339 = vshrl.u32 %v2338, 7
        %v2340 = vsub.s32 %v2337, %v2339
        %v2341 = vrot.slane %v2327, %v2340
        %v2342 = vcombine.low %v2285, %v2297
        %v2343 = vcombine.high %v2285, %v2297
        %v2345 = vunpack.c.l.s4 1983009808
        %v2346 = vunpack.c.0.s8 %v2345
        %v2347 = vlaneseq
        %v2348 = vshrl.u32 %v2347, 7
        %v2349 = vsub.s32 %v2346, %v2348
        %v2350 = vrot.slane %v2342, %v2349
        %v2352 = vunpack.c.l.s4 1983009808
        %v2353 = vunpack.c.0.s8 %v2352
        %v2354 = vlaneseq
        %v2355 = vshrl.u32 %v2354, 7
        %v2356 = vsub.s32 %v2353, %v2355
        %v2357 = vrot.slane %v2343, %v2356
        %v2358 = vcombine.low %v2303, %v2315
        %v2359 = vcombine.high %v2303, %v2315
        %v2361 = vunpack.c.l.s4 1983009808
        %v2362 = vunpack.c.0.s8 %v2361
        %v2363 = vlaneseq
        %v2364 = vshrl.u32 %v2363, 7
        %v2365 = vsub.s32 %v2362, %v2364
        %v2366 = vrot.slane %v2358, %v2365
        %v2368 = vunpack.c.l.s4 1983009808
        %v2369 = vunpack.c.0.s8 %v2368
        %v2370 = vlaneseq
        %v2371 = vshrl.u32 %v2370, 7
        %v2372 = vsub.s32 %v2369, %v2371
        %v2373 = vrot.slane %v2359, %v2372
        %v2374 = vcombine.low %v2309, %v2321
        %v2375 = vcombine.high %v2309, %v2321
        %v2377 = vunpack.c.l.s4 1983009808
        %v2378 = vunpack.c.0.s8 %v2377
        %v2379 = vlaneseq
        %v2380 = vshrl.u32 %v2379, 7
        %v2381 = vsub.s32 %v2378, %v2380
        %v2382 = vrot.slane %v2374, %v2381
        %v2384 = vunpack.c.l.s4 1983009808
        %v2385 = vunpack.c.0.s8 %v2384
        %v2386 = vlaneseq
        %v2387 = vshrl.u32 %v2386, 7
        %v2388 = vsub.s32 %v2385, %v2387
        %v2389 = vrot.slane %v2375, %v2388
        %v2390 = vcombine.low %v2334, %v2350
        %v2391 = vcombine.high %v2334, %v2350
        %v2393 = vunpack.c.l.s4 1934713408
        %v2394 = vunpack.c.0.s8 %v2393
        %v2395 = vlaneseq
        %v2396 = vshrl.u32 %v2395, 7
        %v2397 = vsub.s32 %v2394, %v2396
        %v2398 = vrot.slane %v2390, %v2397
        %v2400 = vunpack.c.l.s4 1934713408
        %v2401 = vunpack.c.0.s8 %v2400
        %v2402 = vlaneseq
        %v2403 = vshrl.u32 %v2402, 7
        %v2404 = vsub.s32 %v2401, %v2403
        %v2405 = vrot.slane %v2391, %v2404
        %v2406 = vcombine.low %v2341, %v2357
        %v2407 = vcombine.high %v2341, %v2357
        %v2409 = vunpack.c.l.s4 1934713408
        %v2410 = vunpack.c.0.s8 %v2409
        %v2411 = vlaneseq
        %v2412 = vshrl.u32 %v2411, 7
        %v2413 = vsub.s32 %v2410, %v2412
        %v2414 = vrot.slane %v2406, %v2413
        %v2416 = vunpack.c.l.s4 1934713408
        %v2417 = vunpack.c.0.s8 %v2416
        %v2418 = vlaneseq
        %v2419 = vshrl.u32 %v2418, 7
        %v2420 = vsub.s32 %v2417, %v2419
        %v2421 = vrot.slane %v2407, %v2420
        %v2422 = vcombine.low %v2366, %v2382
        %v2423 = vcombine.high %v2366, %v2382
        %v2425 = vunpack.c.l.s4 1934713408
        %v2426 = vunpack.c.0.s8 %v2425
        %v2427 = vlaneseq
        %v2428 = vshrl.u32 %v2427, 7
        %v2429 = vsub.s32 %v2426, %v2428
        %v2430 = vrot.slane %v2422, %v2429
        %v2432 = vunpack.c.l.s4 1934713408
        %v2433 = vunpack.c.0.s8 %v2432
        %v2434 = vlaneseq
        %v2435 = vshrl.u32 %v2434, 7
        %v2436 = vsub.s32 %v2433, %v2435
        %v2437 = vrot.slane %v2423, %v2436
        %v2438 = vcombine.low %v2373, %v2389
        %v2439 = vcombine.high %v2373, %v2389
        %v2441 = vunpack.c.l.s4 1934713408
        %v2442 = vunpack.c.0.s8 %v2441
        %v2443 = vlaneseq
        %v2444 = vshrl.u32 %v2443, 7
        %v2445 = vsub.s32 %v2442, %v2444
        %v2446 = vrot.slane %v2438, %v2445
        %v2448 = vunpack.c.l.s4 1934713408
        %v2449 = vunpack.c.0.s8 %v2448
        %v2450 = vlaneseq
        %v2451 = vshrl.u32 %v2450, 7
        %v2452 = vsub.s32 %v2449, %v2451
        %v2453 = vrot.slane %v2439, %v2452
        %v2454 = vcombine.low %v2398, %v2430
        %v2455 = vcombine.high %v2398, %v2430
        %v2456 = vcombine.low %v2405, %v2437
        %v2457 = vcombine.high %v2405, %v2437
        %v2458 = vcombine.low %v2414, %v2446
        %v2459 = vcombine.high %v2414, %v2446
        %v2460 = vcombine.low %v2421, %v2453
        %v2461 = vcombine.high %v2421, %v2453
        %v2462 = vcombine.low %v1398, %v2293
        %v2463 = vcombine.high %v1398, %v2293
        %v2465 = vunpack.c.l.s4 1983009808
        %v2466 = vunpack.c.0.s8 %v2465
        %v2467 = vlaneseq
        %v2468 = vshrl.u32 %v2467, 7
        %v2469 = vsub.s32 %v2466, %v2468
        %v2470 = vrot.slane %v2462, %v2469
        %v2472 = vunpack.c.l.s4 1983009808
        %v2473 = vunpack.c.0.s8 %v2472
        %v2474 = vlaneseq
        %v2475 = vshrl.u32 %v2474, 7
        %v2476 = vsub.s32 %v2473, %v2475
        %v2477 = vrot.slane %v2463, %v2476
        %v2478 = vcombine.low %v2287, %v2299
        %v2479 = vcombine.high %v2287, %v2299
        %v2481 = vunpack.c.l.s4 1983009808
        %v2482 = vunpack.c.0.s8 %v2481
        %v2483 = vlaneseq
        %v2484 = vshrl.u32 %v2483, 7
        %v2485 = vsub.s32 %v2482, %v2484
        %v2486 = vrot.slane %v2478, %v2485
        %v2488 = vunpack.c.l.s4 1983009808
        %v2489 = vunpack.c.0.s8 %v2488
        %v2490 = vlaneseq
        %v2491 = vshrl.u32 %v2490, 7
        %v2492 = vsub.s32 %v2489, %v2491
        %v2493 = vrot.slane %v2479, %v2492
        %v2494 = vcombine.low %v2305, %v2317
        %v2495 = vcombine.high %v2305, %v2317
        %v2497 = vunpack.c.l.s4 1983009808
        %v2498 = vunpack.c.0.s8 %v2497
        %v2499 = vlaneseq
        %v2500 = vshrl.u32 %v2499, 7
        %v2501 = vsub.s32 %v2498, %v2500
        %v2502 = vrot.slane %v2494, %v2501
        %v2504 = vunpack.c.l.s4 1983009808
        %v2505 = vunpack.c.0.s8 %v2504
        %v2506 = vlaneseq
        %v2507 = vshrl.u32 %v2506, 7
        %v2508 = vsub.s32 %v2505, %v2507
        %v2509 = vrot.slane %v2495, %v2508
        %v2510 = vcombine.low %v2311, %v2323
        %v2511 = vcombine.high %v2311, %v2323
        %v2513 = vunpack.c.l.s4 1983009808
        %v2514 = vunpack.c.0.s8 %v2513
        %v2515 = vlaneseq
        %v2516 = vshrl.u32 %v2515, 7
        %v2517 = vsub.s32 %v2514, %v2516
        %v2518 = vrot.slane %v2510, %v2517
        %v2520 = vunpack.c.l.s4 1983009808
        %v2521 = vunpack.c.0.s8 %v2520
        %v2522 = vlaneseq
        %v2523 = vshrl.u32 %v2522, 7
        %v2524 = vsub.s32 %v2521, %v2523
        %v2525 = vrot.slane %v2511, %v2524
        %v2526 = vcombine.low %v2470, %v2486
        %v2527 = vcombine.high %v2470, %v2486
        %v2529 = vunpack.c.l.s4 1934713408
        %v2530 = vunpack.c.0.s8 %v2529
        %v2531 = vlaneseq
        %v2532 = vshrl.u32 %v2531, 7
        %v2533 = vsub.s32 %v2530, %v2532
        %v2534 = vrot.slane %v2526, %v2533
        %v2536 = vunpack.c.l.s4 1934713408
        %v2537 = vunpack.c.0.s8 %v2536
        %v2538 = vlaneseq
        %v2539 = vshrl.u32 %v2538, 7
        %v2540 = vsub.s32 %v2537, %v2539
        %v2541 = vrot.slane %v2527, %v2540
        %v2542 = vcombine.low %v2477, %v2493
        %v2543 = vcombine.high %v2477, %v2493
        %v2545 = vunpack.c.l.s4 1934713408
        %v2546 = vunpack.c.0.s8 %v2545
        %v2547 = vlaneseq
        %v2548 = vshrl.u32 %v2547, 7
        %v2549 = vsub.s32 %v2546, %v2548
        %v2550 = vrot.slane %v2542, %v2549
        %v2552 = vunpack.c.l.s4 1934713408
        %v2553 = vunpack.c.0.s8 %v2552
        %v2554 = vlaneseq
        %v2555 = vshrl.u32 %v2554, 7
        %v2556 = vsub.s32 %v2553, %v2555
        %v2557 = vrot.slane %v2543, %v2556
        %v2558 = vcombine.low %v2502, %v2518
        %v2559 = vcombine.high %v2502, %v2518
        %v2561 = vunpack.c.l.s4 1934713408
        %v2562 = vunpack.c.0.s8 %v2561
        %v2563 = vlaneseq
        %v2564 = vshrl.u32 %v2563, 7
        %v2565 = vsub.s32 %v2562, %v2564
        %v2566 = vrot.slane %v2558, %v2565
        %v2568 = vunpack.c.l.s4 1934713408
        %v2569 = vunpack.c.0.s8 %v2568
        %v2570 = vlaneseq
        %v2571 = vshrl.u32 %v2570, 7
        %v2572 = vsub.s32 %v2569, %v2571
        %v2573 = vrot.slane %v2559, %v2572
        %v2574 = vcombine.low %v2509, %v2525
        %v2575 = vcombine.high %v2509, %v2525
        %v2577 = vunpack.c.l.s4 1934713408
        %v2578 = vunpack.c.0.s8 %v2577
        %v2579 = vlaneseq
        %v2580 = vshrl.u32 %v2579, 7
        %v2581 = vsub.s32 %v2578, %v2580
        %v2582 = vrot.slane %v2574, %v2581
        %v2584 = vunpack.c.l.s4 1934713408
        %v2585 = vunpack.c.0.s8 %v2584
        %v2586 = vlaneseq
        %v2587 = vshrl.u32 %v2586, 7
        %v2588 = vsub.s32 %v2585, %v2587
        %v2589 = vrot.slane %v2575, %v2588
        %v2590 = vcombine.low %v2534, %v2566
        %v2591 = vcombine.high %v2534, %v2566
        %v2592 = vcombine.low %v2541, %v2573
        %v2593 = vcombine.high %v2541, %v2573
        %v2594 = vcombine.low %v2550, %v2582
        %v2595 = vcombine.high %v2550, %v2582
        %v2596 = vcombine.low %v2557, %v2589
        %v2597 = vcombine.high %v2557, %v2589
        %v2598 = vcombine.low %v2454, %v2456
        %v2599 = vcombine.high %v2454, %v2456
        %v2601 = vunpack.c.l.s4 1983009808
        %v2602 = vunpack.c.0.s8 %v2601
        %v2603 = vlaneseq
        %v2604 = vshrl.u32 %v2603, 7
        %v2605 = vsub.s32 %v2602, %v2604
        %v2606 = vrot.slane %v2598, %v2605
        %v2608 = vunpack.c.l.s4 1983009808
        %v2609 = vunpack.c.0.s8 %v2608
        %v2610 = vlaneseq
        %v2611 = vshrl.u32 %v2610, 7
        %v2612 = vsub.s32 %v2609, %v2611
        %v2613 = vrot.slane %v2599, %v2612
        %v2614 = vcombine.low %v2455, %v2457
        %v2615 = vcombine.high %v2455, %v2457
        %v2617 = vunpack.c.l.s4 1983009808
        %v2618 = vunpack.c.0.s8 %v2617
        %v2619 = vlaneseq
        %v2620 = vshrl.u32 %v2619, 7
        %v2621 = vsub.s32 %v2618, %v2620
        %v2622 = vrot.slane %v2614, %v2621
        %v2624 = vunpack.c.l.s4 1983009808
        %v2625 = vunpack.c.0.s8 %v2624
        %v2626 = vlaneseq
        %v2627 = vshrl.u32 %v2626, 7
        %v2628 = vsub.s32 %v2625, %v2627
        %v2629 = vrot.slane %v2615, %v2628
        %v2630 = vcombine.low %v2458, %v2460
        %v2631 = vcombine.high %v2458, %v2460
        %v2633 = vunpack.c.l.s4 1983009808
        %v2634 = vunpack.c.0.s8 %v2633
        %v2635 = vlaneseq
        %v2636 = vshrl.u32 %v2635, 7
        %v2637 = vsub.s32 %v2634, %v2636
        %v2638 = vrot.slane %v2630, %v2637
        %v2640 = vunpack.c.l.s4 1983009808
        %v2641 = vunpack.c.0.s8 %v2640
        %v2642 = vlaneseq
        %v2643 = vshrl.u32 %v2642, 7
        %v2644 = vsub.s32 %v2641, %v2643
        %v2645 = vrot.slane %v2631, %v2644
        %v2646 = vcombine.low %v2459, %v2461
        %v2647 = vcombine.high %v2459, %v2461
        %v2649 = vunpack.c.l.s4 1983009808
        %v2650 = vunpack.c.0.s8 %v2649
        %v2651 = vlaneseq
        %v2652 = vshrl.u32 %v2651, 7
        %v2653 = vsub.s32 %v2650, %v2652
        %v2654 = vrot.slane %v2646, %v2653
        %v2656 = vunpack.c.l.s4 1983009808
        %v2657 = vunpack.c.0.s8 %v2656
        %v2658 = vlaneseq
        %v2659 = vshrl.u32 %v2658, 7
        %v2660 = vsub.s32 %v2657, %v2659
        %v2661 = vrot.slane %v2647, %v2660
        %v2662 = vcombine.low %v2606, %v2622
        %v2663 = vcombine.high %v2606, %v2622
        %v2665 = vunpack.c.l.s4 1934713408
        %v2666 = vunpack.c.0.s8 %v2665
        %v2667 = vlaneseq
        %v2668 = vshrl.u32 %v2667, 7
        %v2669 = vsub.s32 %v2666, %v2668
        %v2670 = vrot.slane %v2662, %v2669
        %v2672 = vunpack.c.l.s4 1934713408
        %v2673 = vunpack.c.0.s8 %v2672
        %v2674 = vlaneseq
        %v2675 = vshrl.u32 %v2674, 7
        %v2676 = vsub.s32 %v2673, %v2675
        %v2677 = vrot.slane %v2663, %v2676
        %v2678 = vcombine.low %v2613, %v2629
        %v2679 = vcombine.high %v2613, %v2629
        %v2681 = vunpack.c.l.s4 1934713408
        %v2682 = vunpack.c.0.s8 %v2681
        %v2683 = vlaneseq
        %v2684 = vshrl.u32 %v2683, 7
        %v2685 = vsub.s32 %v2682, %v2684
        %v2686 = vrot.slane %v2678, %v2685
        %v2688 = vunpack.c.l.s4 1934713408
        %v2689 = vunpack.c.0.s8 %v2688
        %v2690 = vlaneseq
        %v2691 = vshrl.u32 %v2690, 7
        %v2692 = vsub.s32 %v2689, %v2691
        %v2693 = vrot.slane %v2679, %v2692
        %v2694 = vcombine.low %v2638, %v2654
        %v2695 = vcombine.high %v2638, %v2654
        %v2697 = vunpack.c.l.s4 1934713408
        %v2698 = vunpack.c.0.s8 %v2697
        %v2699 = vlaneseq
        %v2700 = vshrl.u32 %v2699, 7
        %v2701 = vsub.s32 %v2698, %v2700
        %v2702 = vrot.slane %v2694, %v2701
        %v2704 = vunpack.c.l.s4 1934713408
        %v2705 = vunpack.c.0.s8 %v2704
        %v2706 = vlaneseq
        %v2707 = vshrl.u32 %v2706, 7
        %v2708 = vsub.s32 %v2705, %v2707
        %v2709 = vrot.slane %v2695, %v2708
        %v2710 = vcombine.low %v2645, %v2661
        %v2711 = vcombine.high %v2645, %v2661
        %v2713 = vunpack.c.l.s4 1934713408
        %v2714 = vunpack.c.0.s8 %v2713
        %v2715 = vlaneseq
        %v2716 = vshrl.u32 %v2715, 7
        %v2717 = vsub.s32 %v2714, %v2716
        %v2718 = vrot.slane %v2710, %v2717
        %v2720 = vunpack.c.l.s4 1934713408
        %v2721 = vunpack.c.0.s8 %v2720
        %v2722 = vlaneseq
        %v2723 = vshrl.u32 %v2722, 7
        %v2724 = vsub.s32 %v2721, %v2723
        %v2725 = vrot.slane %v2711, %v2724
        %v2726 = vcombine.low %v2670, %v2702
        %v2727 = vcombine.high %v2670, %v2702
        %v2728 = vcombine.low %v2677, %v2709
        %v2729 = vcombine.high %v2677, %v2709
        %v2730 = vcombine.low %v2686, %v2718
        %v2731 = vcombine.high %v2686, %v2718
        %v2732 = vcombine.low %v2693, %v2725
        %v2733 = vcombine.high %v2693, %v2725
        %v2734 = vcombine.low %v2590, %v2592
        %v2735 = vcombine.high %v2590, %v2592
        %v2737 = vunpack.c.l.s4 1983009808
        %v2738 = vunpack.c.0.s8 %v2737
        %v2739 = vlaneseq
        %v2740 = vshrl.u32 %v2739, 7
        %v2741 = vsub.s32 %v2738, %v2740
        %v2742 = vrot.slane %v2734, %v2741
        %v2744 = vunpack.c.l.s4 1983009808
        %v2745 = vunpack.c.0.s8 %v2744
        %v2746 = vlaneseq
        %v2747 = vshrl.u32 %v2746, 7
        %v2748 = vsub.s32 %v2745, %v2747
        %v2749 = vrot.slane %v2735, %v2748
        %v2750 = vcombine.low %v2591, %v2593
        %v2751 = vcombine.high %v2591, %v2593
        %v2753 = vunpack.c.l.s4 1983009808
        %v2754 = vunpack.c.0.s8 %v2753
        %v2755 = vlaneseq
        %v2756 = vshrl.u32 %v2755, 7
        %v2757 = vsub.s32 %v2754, %v2756
        %v2758 = vrot.slane %v2750, %v2757
        %v2760 = vunpack.c.l.s4 1983009808
        %v2761 = vunpack.c.0.s8 %v2760
        %v2762 = vlaneseq
        %v2763 = vshrl.u32 %v2762, 7
        %v2764 = vsub.s32 %v2761, %v2763
        %v2765 = vrot.slane %v2751, %v2764
        %v2766 = vcombine.low %v2594, %v2596
        %v2767 = vcombine.high %v2594, %v2596
        %v2769 = vunpack.c.l.s4 1983009808
        %v2770 = vunpack.c.0.s8 %v2769
        %v2771 = vlaneseq
        %v2772 = vshrl.u32 %v2771, 7
        %v2773 = vsub.s32 %v2770, %v2772
        %v2774 = vrot.slane %v2766, %v2773
        %v2776 = vunpack.c.l.s4 1983009808
        %v2777 = vunpack.c.0.s8 %v2776
        %v2778 = vlaneseq
        %v2779 = vshrl.u32 %v2778, 7
        %v2780 = vsub.s32 %v2777, %v2779
        %v2781 = vrot.slane %v2767, %v2780
        %v2782 = vcombine.low %v2595, %v2597
        %v2783 = vcombine.high %v2595, %v2597
        %v2785 = vunpack.c.l.s4 1983009808
        %v2786 = vunpack.c.0.s8 %v2785
        %v2787 = vlaneseq
        %v2788 = vshrl.u32 %v2787, 7
        %v2789 = vsub.s32 %v2786, %v2788
        %v2790 = vrot.slane %v2782, %v2789
        %v2792 = vunpack.c.l.s4 1983009808
        %v2793 = vunpack.c.0.s8 %v2792
        %v2794 = vlaneseq
        %v2795 = vshrl.u32 %v2794, 7
        %v2796 = vsub.s32 %v2793, %v2795
        %v2797 = vrot.slane %v2783, %v2796
        %v2798 = vcombine.low %v2742, %v2758
        %v2799 = vcombine.high %v2742, %v2758
        %v2801 = vunpack.c.l.s4 1934713408
        %v2802 = vunpack.c.0.s8 %v2801
        %v2803 = vlaneseq
        %v2804 = vshrl.u32 %v2803, 7
        %v2805 = vsub.s32 %v2802, %v2804
        %v2806 = vrot.slane %v2798, %v2805
        %v2808 = vunpack.c.l.s4 1934713408
        %v2809 = vunpack.c.0.s8 %v2808
        %v2810 = vlaneseq
        %v2811 = vshrl.u32 %v2810, 7
        %v2812 = vsub.s32 %v2809, %v2811
        %v2813 = vrot.slane %v2799, %v2812
        %v2814 = vcombine.low %v2749, %v2765
        %v2815 = vcombine.high %v2749, %v2765
        %v2817 = vunpack.c.l.s4 1934713408
        %v2818 = vunpack.c.0.s8 %v2817
        %v2819 = vlaneseq
        %v2820 = vshrl.u32 %v2819, 7
        %v2821 = vsub.s32 %v2818, %v2820
        %v2822 = vrot.slane %v2814, %v2821
        %v2824 = vunpack.c.l.s4 1934713408
        %v2825 = vunpack.c.0.s8 %v2824
        %v2826 = vlaneseq
        %v2827 = vshrl.u32 %v2826, 7
        %v2828 = vsub.s32 %v2825, %v2827
        %v2829 = vrot.slane %v2815, %v2828
        %v2830 = vcombine.low %v2774, %v2790
        %v2831 = vcombine.high %v2774, %v2790
        %v2833 = vunpack.c.l.s4 1934713408
        %v2834 = vunpack.c.0.s8 %v2833
        %v2835 = vlaneseq
        %v2836 = vshrl.u32 %v2835, 7
        %v2837 = vsub.s32 %v2834, %v2836
        %v2838 = vrot.slane %v2830, %v2837
        %v2840 = vunpack.c.l.s4 1934713408
        %v2841 = vunpack.c.0.s8 %v2840
        %v2842 = vlaneseq
        %v2843 = vshrl.u32 %v2842, 7
        %v2844 = vsub.s32 %v2841, %v2843
        %v2845 = vrot.slane %v2831, %v2844
        %v2846 = vcombine.low %v2781, %v2797
        %v2847 = vcombine.high %v2781, %v2797
        %v2849 = vunpack.c.l.s4 1934713408
        %v2850 = vunpack.c.0.s8 %v2849
        %v2851 = vlaneseq
        %v2852 = vshrl.u32 %v2851, 7
        %v2853 = vsub.s32 %v2850, %v2852
        %v2854 = vrot.slane %v2846, %v2853
        %v2856 = vunpack.c.l.s4 1934713408
        %v2857 = vunpack.c.0.s8 %v2856
        %v2858 = vlaneseq
        %v2859 = vshrl.u32 %v2858, 7
        %v2860 = vsub.s32 %v2857, %v2859
        %v2861 = vrot.slane %v2847, %v2860
        %v2862 = vcombine.low %v2806, %v2838
        %v2863 = vcombine.high %v2806, %v2838
        %v2864 = vcombine.low %v2813, %v2845
        %v2865 = vcombine.high %v2813, %v2845
        %v2866 = vcombine.low %v2822, %v2854
        %v2867 = vcombine.high %v2822, %v2854
        %v2868 = vcombine.low %v2829, %v2861
        %v2869 = vcombine.high %v2829, %v2861
        %vm2870 = vcmask 130048
        %v2872 = vsel %vm2870, %v1686, 0
        %v2875 = vsel %vm2870, %v2138, 0
        %v2878 = vsel %vm2870, %v2274, 0
        %2880 = vmatprep.subr.mxu0 0.0
        %2881 = vmatpush1.xpose.msra.mxu0 %v2875
        %2882 = vmatprep.subr.mxu0 0.0
        %2883 = vmatpush1.xpose.msra.mxu0 %v2878
        %2884 = vmatprep.subr.mxu0 0.0
        %2885 = vmatpush1.xpose.msra.mxu0 0.0
        %2886 = vmatprep.subr.mxu0 0.0
        %2887 = vmatpush1.xpose.msra.mxu0 0.0
        %2888 = vmatprep.subr.mxu0 0.0
        %2889 = vmatpush1.xpose.msra.mxu0 0.0
        %2890 = vmatprep.subr.mxu0 0.0
        %2891 = vmatpush1.xpose.msra.mxu0 0.0
        %2892 = vmatprep.subr.mxu0 0.0
        %2893 = vmatpush1.xpose.msra.mxu0 0.0
        %2894 = vmatprep.subr.mxu0 0.0
        %2895 = vmatpush1.xpose.msra.mxu0 0.0
        %2896 = vmatprep.subr.mxu0 0.0
        %2897 = vmatpush1.xpose.msra.mxu0 0.0
        %2898 = vmatprep.subr.mxu0 0.0
        %2899 = vmatpush1.xpose.msra.mxu0 0.0
        %2900 = vmatprep.subr.mxu0 0.0
        %2901 = vmatpush1.xpose.msra.mxu0 0.0
        %2902 = vmatprep.subr.mxu0 0.0
        %2903 = vmatpush1.xpose.msra.mxu0 0.0
        %2904 = vmatprep.subr.mxu0 0.0
        %2905 = vmatpush1.xpose.msra.mxu0 0.0
        %2906 = vmatprep.subr.mxu0 0.0
        %2907 = vmatpush1.xpose.msra.mxu0 0.0
        %2908 = vmatprep.subr.mxu0 0.0
        %2909 = vmatpush1.xpose.msra.mxu0 0.0
        %2910 = vmatprep.subr.mxu0 0.0
        %2911 = vmatpush1.xpose.msra.mxu0 0.0
        %2912 = vmatprep.subr.mxu0 0.0
        %2913 = vmatpush1.xpose.msra.mxu0 0.0
        %2914 = vmatprep.subr.mxu0 0.0
        %2915 = vmatpush1.xpose.msra.mxu0 0.0
        %2916 = vmatprep.subr.mxu0 0.0
        %2917 = vmatpush1.xpose.msra.mxu0 0.0
        %2918 = vmatprep.subr.mxu0 0.0
        %2919 = vmatpush1.xpose.msra.mxu0 0.0
        %2920 = vmatprep.subr.mxu0 0.0
        %2921 = vmatpush1.xpose.msra.mxu0 0.0
        %2922 = vmatprep.subr.mxu0 0.0
        %2923 = vmatpush1.xpose.msra.mxu0 0.0
        %2924 = vmatprep.subr.mxu0 0.0
        %2925 = vmatpush1.xpose.msra.mxu0 0.0
        %2926 = vmatprep.subr.mxu0 0.0
        %2927 = vmatpush1.xpose.msra.mxu0 0.0
        %2928 = vmatprep.subr.mxu0 0.0
        %2929 = vmatpush1.xpose.msra.mxu0 0.0
        %2930 = vmatprep.subr.mxu0 0.0
        %2931 = vmatpush1.xpose.msra.mxu0 0.0
        %2932 = vmatprep.subr.mxu0 0.0
        %2933 = vmatpush1.xpose.msra.mxu0 0.0
        %2934 = vmatprep.subr.mxu0 0.0
        %2935 = vmatpush1.xpose.msra.mxu0 0.0
        %2936 = vmatprep.subr.mxu0 0.0
        %2937 = vmatpush1.xpose.msra.mxu0 0.0
        %2938 = vmatprep.subr.mxu0 0.0
        %2939 = vmatpush1.xpose.msra.mxu0 0.0
        %2940 = vmatprep.subr.mxu0 0.0
        %2941 = vmatpush1.xpose.msra.mxu0 0.0
        %2942 = vmatprep.subr.mxu0 0.0
        %2943 = vmatpush1.xpose.msra.mxu0 0.0
        %2944 = vmatprep.mubr.f32.mxu0 0.0
        %2945 = vmatmul.mubr.f32.gmra.mrb[0].mxu0 %v2872
        %v2946 = vpop.f32.mrb[0].mxu0
        %v2947 = vadd.f32 0.0, %v2946
        %v2948 = vpop.f32.mrb[0].mxu0
        %2949 = vdwg.mxu0
        %v2951 = vsel %vm2870, %v1687, 0
        %v2954 = vsel %vm2870, %v2139, 0
        %v2957 = vsel %vm2870, %v2275, 0
        %2959 = vmatprep.subr.mxu0 0.0
        %2960 = vmatpush1.xpose.msra.mxu0 %v2954
        %2961 = vmatprep.subr.mxu0 0.0
        %2962 = vmatpush1.xpose.msra.mxu0 %v2957
        %2963 = vmatprep.subr.mxu0 0.0
        %2964 = vmatpush1.xpose.msra.mxu0 0.0
        %2965 = vmatprep.subr.mxu0 0.0
        %2966 = vmatpush1.xpose.msra.mxu0 0.0
        %2967 = vmatprep.subr.mxu0 0.0
        %2968 = vmatpush1.xpose.msra.mxu0 0.0
        %2969 = vmatprep.subr.mxu0 0.0
        %2970 = vmatpush1.xpose.msra.mxu0 0.0
        %2971 = vmatprep.subr.mxu0 0.0
        %2972 = vmatpush1.xpose.msra.mxu0 0.0
        %2973 = vmatprep.subr.mxu0 0.0
        %2974 = vmatpush1.xpose.msra.mxu0 0.0
        %2975 = vmatprep.subr.mxu0 0.0
        %2976 = vmatpush1.xpose.msra.mxu0 0.0
        %2977 = vmatprep.subr.mxu0 0.0
        %2978 = vmatpush1.xpose.msra.mxu0 0.0
        %2979 = vmatprep.subr.mxu0 0.0
        %2980 = vmatpush1.xpose.msra.mxu0 0.0
        %2981 = vmatprep.subr.mxu0 0.0
        %2982 = vmatpush1.xpose.msra.mxu0 0.0
        %2983 = vmatprep.subr.mxu0 0.0
        %2984 = vmatpush1.xpose.msra.mxu0 0.0
        %2985 = vmatprep.subr.mxu0 0.0
        %2986 = vmatpush1.xpose.msra.mxu0 0.0
        %2987 = vmatprep.subr.mxu0 0.0
        %2988 = vmatpush1.xpose.msra.mxu0 0.0
        %2989 = vmatprep.subr.mxu0 0.0
        %2990 = vmatpush1.xpose.msra.mxu0 0.0
        %2991 = vmatprep.subr.mxu0 0.0
        %2992 = vmatpush1.xpose.msra.mxu0 0.0
        %2993 = vmatprep.subr.mxu0 0.0
        %2994 = vmatpush1.xpose.msra.mxu0 0.0
        %2995 = vmatprep.subr.mxu0 0.0
        %2996 = vmatpush1.xpose.msra.mxu0 0.0
        %2997 = vmatprep.subr.mxu0 0.0
        %2998 = vmatpush1.xpose.msra.mxu0 0.0
        %2999 = vmatprep.subr.mxu0 0.0
        %3000 = vmatpush1.xpose.msra.mxu0 0.0
        %3001 = vmatprep.subr.mxu0 0.0
        %3002 = vmatpush1.xpose.msra.mxu0 0.0
        %3003 = vmatprep.subr.mxu0 0.0
        %3004 = vmatpush1.xpose.msra.mxu0 0.0
        %3005 = vmatprep.subr.mxu0 0.0
        %3006 = vmatpush1.xpose.msra.mxu0 0.0
        %3007 = vmatprep.subr.mxu0 0.0
        %3008 = vmatpush1.xpose.msra.mxu0 0.0
        %3009 = vmatprep.subr.mxu0 0.0
        %3010 = vmatpush1.xpose.msra.mxu0 0.0
        %3011 = vmatprep.subr.mxu0 0.0
        %3012 = vmatpush1.xpose.msra.mxu0 0.0
        %3013 = vmatprep.subr.mxu0 0.0
        %3014 = vmatpush1.xpose.msra.mxu0 0.0
        %3015 = vmatprep.subr.mxu0 0.0
        %3016 = vmatpush1.xpose.msra.mxu0 0.0
        %3017 = vmatprep.subr.mxu0 0.0
        %3018 = vmatpush1.xpose.msra.mxu0 0.0
        %3019 = vmatprep.subr.mxu0 0.0
        %3020 = vmatpush1.xpose.msra.mxu0 0.0
        %3021 = vmatprep.subr.mxu0 0.0
        %3022 = vmatpush1.xpose.msra.mxu0 0.0
        %3023 = vmatprep.mubr.f32.mxu0 0.0
        %3024 = vmatmul.mubr.f32.gmra.mrb[0].mxu0 %v2951
        %v3025 = vpop.f32.mrb[0].mxu0
        %v3026 = vadd.f32 0.0, %v3025
        %v3027 = vpop.f32.mrb[0].mxu0
        %3028 = vdwg.mxu0
        %v3030 = vsel %vm2870, %v1688, 0
        %v3033 = vsel %vm2870, %v2140, 0
        %v3036 = vsel %vm2870, %v2276, 0
        %3038 = vmatprep.subr.mxu0 0.0
        %3039 = vmatpush1.xpose.msra.mxu0 %v3033
        %3040 = vmatprep.subr.mxu0 0.0
        %3041 = vmatpush1.xpose.msra.mxu0 %v3036
        %3042 = vmatprep.subr.mxu0 0.0
        %3043 = vmatpush1.xpose.msra.mxu0 0.0
        %3044 = vmatprep.subr.mxu0 0.0
        %3045 = vmatpush1.xpose.msra.mxu0 0.0
        %3046 = vmatprep.subr.mxu0 0.0
        %3047 = vmatpush1.xpose.msra.mxu0 0.0
        %3048 = vmatprep.subr.mxu0 0.0
        %3049 = vmatpush1.xpose.msra.mxu0 0.0
        %3050 = vmatprep.subr.mxu0 0.0
        %3051 = vmatpush1.xpose.msra.mxu0 0.0
        %3052 = vmatprep.subr.mxu0 0.0
        %3053 = vmatpush1.xpose.msra.mxu0 0.0
        %3054 = vmatprep.subr.mxu0 0.0
        %3055 = vmatpush1.xpose.msra.mxu0 0.0
        %3056 = vmatprep.subr.mxu0 0.0
        %3057 = vmatpush1.xpose.msra.mxu0 0.0
        %3058 = vmatprep.subr.mxu0 0.0
        %3059 = vmatpush1.xpose.msra.mxu0 0.0
        %3060 = vmatprep.subr.mxu0 0.0
        %3061 = vmatpush1.xpose.msra.mxu0 0.0
        %3062 = vmatprep.subr.mxu0 0.0
        %3063 = vmatpush1.xpose.msra.mxu0 0.0
        %3064 = vmatprep.subr.mxu0 0.0
        %3065 = vmatpush1.xpose.msra.mxu0 0.0
        %3066 = vmatprep.subr.mxu0 0.0
        %3067 = vmatpush1.xpose.msra.mxu0 0.0
        %3068 = vmatprep.subr.mxu0 0.0
        %3069 = vmatpush1.xpose.msra.mxu0 0.0
        %3070 = vmatprep.subr.mxu0 0.0
        %3071 = vmatpush1.xpose.msra.mxu0 0.0
        %3072 = vmatprep.subr.mxu0 0.0
        %3073 = vmatpush1.xpose.msra.mxu0 0.0
        %3074 = vmatprep.subr.mxu0 0.0
        %3075 = vmatpush1.xpose.msra.mxu0 0.0
        %3076 = vmatprep.subr.mxu0 0.0
        %3077 = vmatpush1.xpose.msra.mxu0 0.0
        %3078 = vmatprep.subr.mxu0 0.0
        %3079 = vmatpush1.xpose.msra.mxu0 0.0
        %3080 = vmatprep.subr.mxu0 0.0
        %3081 = vmatpush1.xpose.msra.mxu0 0.0
        %3082 = vmatprep.subr.mxu0 0.0
        %3083 = vmatpush1.xpose.msra.mxu0 0.0
        %3084 = vmatprep.subr.mxu0 0.0
        %3085 = vmatpush1.xpose.msra.mxu0 0.0
        %3086 = vmatprep.subr.mxu0 0.0
        %3087 = vmatpush1.xpose.msra.mxu0 0.0
        %3088 = vmatprep.subr.mxu0 0.0
        %3089 = vmatpush1.xpose.msra.mxu0 0.0
        %3090 = vmatprep.subr.mxu0 0.0
        %3091 = vmatpush1.xpose.msra.mxu0 0.0
        %3092 = vmatprep.subr.mxu0 0.0
        %3093 = vmatpush1.xpose.msra.mxu0 0.0
        %3094 = vmatprep.subr.mxu0 0.0
        %3095 = vmatpush1.xpose.msra.mxu0 0.0
        %3096 = vmatprep.subr.mxu0 0.0
        %3097 = vmatpush1.xpose.msra.mxu0 0.0
        %3098 = vmatprep.subr.mxu0 0.0
        %3099 = vmatpush1.xpose.msra.mxu0 0.0
        %3100 = vmatprep.subr.mxu0 0.0
        %3101 = vmatpush1.xpose.msra.mxu0 0.0
        %3102 = vmatprep.mubr.f32.mxu0 0.0
        %3103 = vmatmul.mubr.f32.gmra.mrb[0].mxu0 %v3030
        %v3104 = vpop.f32.mrb[0].mxu0
        %v3105 = vadd.f32 0.0, %v3104
        %v3106 = vpop.f32.mrb[0].mxu0
        %3107 = vdwg.mxu0
        %v3109 = vsel %vm2870, %v1689, 0
        %v3112 = vsel %vm2870, %v2141, 0
        %v3115 = vsel %vm2870, %v2277, 0
        %3117 = vmatprep.subr.mxu0 0.0
        %3118 = vmatpush1.xpose.msra.mxu0 %v3112
        %3119 = vmatprep.subr.mxu0 0.0
        %3120 = vmatpush1.xpose.msra.mxu0 %v3115
        %3121 = vmatprep.subr.mxu0 0.0
        %3122 = vmatpush1.xpose.msra.mxu0 0.0
        %3123 = vmatprep.subr.mxu0 0.0
        %3124 = vmatpush1.xpose.msra.mxu0 0.0
        %3125 = vmatprep.subr.mxu0 0.0
        %3126 = vmatpush1.xpose.msra.mxu0 0.0
        %3127 = vmatprep.subr.mxu0 0.0
        %3128 = vmatpush1.xpose.msra.mxu0 0.0
        %3129 = vmatprep.subr.mxu0 0.0
        %3130 = vmatpush1.xpose.msra.mxu0 0.0
        %3131 = vmatprep.subr.mxu0 0.0
        %3132 = vmatpush1.xpose.msra.mxu0 0.0
        %3133 = vmatprep.subr.mxu0 0.0
        %3134 = vmatpush1.xpose.msra.mxu0 0.0
        %3135 = vmatprep.subr.mxu0 0.0
        %3136 = vmatpush1.xpose.msra.mxu0 0.0
        %3137 = vmatprep.subr.mxu0 0.0
        %3138 = vmatpush1.xpose.msra.mxu0 0.0
        %3139 = vmatprep.subr.mxu0 0.0
        %3140 = vmatpush1.xpose.msra.mxu0 0.0
        %3141 = vmatprep.subr.mxu0 0.0
        %3142 = vmatpush1.xpose.msra.mxu0 0.0
        %3143 = vmatprep.subr.mxu0 0.0
        %3144 = vmatpush1.xpose.msra.mxu0 0.0
        %3145 = vmatprep.subr.mxu0 0.0
        %3146 = vmatpush1.xpose.msra.mxu0 0.0
        %3147 = vmatprep.subr.mxu0 0.0
        %3148 = vmatpush1.xpose.msra.mxu0 0.0
        %3149 = vmatprep.subr.mxu0 0.0
        %3150 = vmatpush1.xpose.msra.mxu0 0.0
        %3151 = vmatprep.subr.mxu0 0.0
        %3152 = vmatpush1.xpose.msra.mxu0 0.0
        %3153 = vmatprep.subr.mxu0 0.0
        %3154 = vmatpush1.xpose.msra.mxu0 0.0
        %3155 = vmatprep.subr.mxu0 0.0
        %3156 = vmatpush1.xpose.msra.mxu0 0.0
        %3157 = vmatprep.subr.mxu0 0.0
        %3158 = vmatpush1.xpose.msra.mxu0 0.0
        %3159 = vmatprep.subr.mxu0 0.0
        %3160 = vmatpush1.xpose.msra.mxu0 0.0
        %3161 = vmatprep.subr.mxu0 0.0
        %3162 = vmatpush1.xpose.msra.mxu0 0.0
        %3163 = vmatprep.subr.mxu0 0.0
        %3164 = vmatpush1.xpose.msra.mxu0 0.0
        %3165 = vmatprep.subr.mxu0 0.0
        %3166 = vmatpush1.xpose.msra.mxu0 0.0
        %3167 = vmatprep.subr.mxu0 0.0
        %3168 = vmatpush1.xpose.msra.mxu0 0.0
        %3169 = vmatprep.subr.mxu0 0.0
        %3170 = vmatpush1.xpose.msra.mxu0 0.0
        %3171 = vmatprep.subr.mxu0 0.0
        %3172 = vmatpush1.xpose.msra.mxu0 0.0
        %3173 = vmatprep.subr.mxu0 0.0
        %3174 = vmatpush1.xpose.msra.mxu0 0.0
        %3175 = vmatprep.subr.mxu0 0.0
        %3176 = vmatpush1.xpose.msra.mxu0 0.0
        %3177 = vmatprep.subr.mxu0 0.0
        %3178 = vmatpush1.xpose.msra.mxu0 0.0
        %3179 = vmatprep.subr.mxu0 0.0
        %3180 = vmatpush1.xpose.msra.mxu0 0.0
        %3181 = vmatprep.mubr.f32.mxu0 0.0
        %3182 = vmatmul.mubr.f32.gmra.mrb[0].mxu0 %v3109
        %v3183 = vpop.f32.mrb[0].mxu0
        %v3184 = vadd.f32 0.0, %v3183
        %v3185 = vpop.f32.mrb[0].mxu0
        %3186 = vdwg.mxu0
        %v3188 = vsel %vm2870, %v1690, 0
        %v3191 = vsel %vm2870, %v2142, 0
        %v3194 = vsel %vm2870, %v2278, 0
        %3196 = vmatprep.subr.mxu0 0.0
        %3197 = vmatpush1.xpose.msra.mxu0 %v3191
        %3198 = vmatprep.subr.mxu0 0.0
        %3199 = vmatpush1.xpose.msra.mxu0 %v3194
        %3200 = vmatprep.subr.mxu0 0.0
        %3201 = vmatpush1.xpose.msra.mxu0 0.0
        %3202 = vmatprep.subr.mxu0 0.0
        %3203 = vmatpush1.xpose.msra.mxu0 0.0
        %3204 = vmatprep.subr.mxu0 0.0
        %3205 = vmatpush1.xpose.msra.mxu0 0.0
        %3206 = vmatprep.subr.mxu0 0.0
        %3207 = vmatpush1.xpose.msra.mxu0 0.0
        %3208 = vmatprep.subr.mxu0 0.0
        %3209 = vmatpush1.xpose.msra.mxu0 0.0
        %3210 = vmatprep.subr.mxu0 0.0
        %3211 = vmatpush1.xpose.msra.mxu0 0.0
        %3212 = vmatprep.subr.mxu0 0.0
        %3213 = vmatpush1.xpose.msra.mxu0 0.0
        %3214 = vmatprep.subr.mxu0 0.0
        %3215 = vmatpush1.xpose.msra.mxu0 0.0
        %3216 = vmatprep.subr.mxu0 0.0
        %3217 = vmatpush1.xpose.msra.mxu0 0.0
        %3218 = vmatprep.subr.mxu0 0.0
        %3219 = vmatpush1.xpose.msra.mxu0 0.0
        %3220 = vmatprep.subr.mxu0 0.0
        %3221 = vmatpush1.xpose.msra.mxu0 0.0
        %3222 = vmatprep.subr.mxu0 0.0
        %3223 = vmatpush1.xpose.msra.mxu0 0.0
        %3224 = vmatprep.subr.mxu0 0.0
        %3225 = vmatpush1.xpose.msra.mxu0 0.0
        %3226 = vmatprep.subr.mxu0 0.0
        %3227 = vmatpush1.xpose.msra.mxu0 0.0
        %3228 = vmatprep.subr.mxu0 0.0
        %3229 = vmatpush1.xpose.msra.mxu0 0.0
        %3230 = vmatprep.subr.mxu0 0.0
        %3231 = vmatpush1.xpose.msra.mxu0 0.0
        %3232 = vmatprep.subr.mxu0 0.0
        %3233 = vmatpush1.xpose.msra.mxu0 0.0
        %3234 = vmatprep.subr.mxu0 0.0
        %3235 = vmatpush1.xpose.msra.mxu0 0.0
        %3236 = vmatprep.subr.mxu0 0.0
        %3237 = vmatpush1.xpose.msra.mxu0 0.0
        %3238 = vmatprep.subr.mxu0 0.0
        %3239 = vmatpush1.xpose.msra.mxu0 0.0
        %3240 = vmatprep.subr.mxu0 0.0
        %3241 = vmatpush1.xpose.msra.mxu0 0.0
        %3242 = vmatprep.subr.mxu0 0.0
        %3243 = vmatpush1.xpose.msra.mxu0 0.0
        %3244 = vmatprep.subr.mxu0 0.0
        %3245 = vmatpush1.xpose.msra.mxu0 0.0
        %3246 = vmatprep.subr.mxu0 0.0
        %3247 = vmatpush1.xpose.msra.mxu0 0.0
        %3248 = vmatprep.subr.mxu0 0.0
        %3249 = vmatpush1.xpose.msra.mxu0 0.0
        %3250 = vmatprep.subr.mxu0 0.0
        %3251 = vmatpush1.xpose.msra.mxu0 0.0
        %3252 = vmatprep.subr.mxu0 0.0
        %3253 = vmatpush1.xpose.msra.mxu0 0.0
        %3254 = vmatprep.subr.mxu0 0.0
        %3255 = vmatpush1.xpose.msra.mxu0 0.0
        %3256 = vmatprep.subr.mxu0 0.0
        %3257 = vmatpush1.xpose.msra.mxu0 0.0
        %3258 = vmatprep.subr.mxu0 0.0
        %3259 = vmatpush1.xpose.msra.mxu0 0.0
        %3260 = vmatprep.mubr.f32.mxu0 0.0
        %3261 = vmatmul.mubr.f32.gmra.mrb[0].mxu0 %v3188
        %v3262 = vpop.f32.mrb[0].mxu0
        %v3263 = vadd.f32 0.0, %v3262
        %v3264 = vpop.f32.mrb[0].mxu0
        %3265 = vdwg.mxu0
        %v3267 = vsel %vm2870, %v1691, 0
        %v3270 = vsel %vm2870, %v2143, 0
        %v3273 = vsel %vm2870, %v2279, 0
        %3275 = vmatprep.subr.mxu0 0.0
        %3276 = vmatpush1.xpose.msra.mxu0 %v3270
        %3277 = vmatprep.subr.mxu0 0.0
        %3278 = vmatpush1.xpose.msra.mxu0 %v3273
        %3279 = vmatprep.subr.mxu0 0.0
        %3280 = vmatpush1.xpose.msra.mxu0 0.0
        %3281 = vmatprep.subr.mxu0 0.0
        %3282 = vmatpush1.xpose.msra.mxu0 0.0
        %3283 = vmatprep.subr.mxu0 0.0
        %3284 = vmatpush1.xpose.msra.mxu0 0.0
        %3285 = vmatprep.subr.mxu0 0.0
        %3286 = vmatpush1.xpose.msra.mxu0 0.0
        %3287 = vmatprep.subr.mxu0 0.0
        %3288 = vmatpush1.xpose.msra.mxu0 0.0
        %3289 = vmatprep.subr.mxu0 0.0
        %3290 = vmatpush1.xpose.msra.mxu0 0.0
        %3291 = vmatprep.subr.mxu0 0.0
        %3292 = vmatpush1.xpose.msra.mxu0 0.0
        %3293 = vmatprep.subr.mxu0 0.0
        %3294 = vmatpush1.xpose.msra.mxu0 0.0
        %3295 = vmatprep.subr.mxu0 0.0
        %3296 = vmatpush1.xpose.msra.mxu0 0.0
        %3297 = vmatprep.subr.mxu0 0.0
        %3298 = vmatpush1.xpose.msra.mxu0 0.0
        %3299 = vmatprep.subr.mxu0 0.0
        %3300 = vmatpush1.xpose.msra.mxu0 0.0
        %3301 = vmatprep.subr.mxu0 0.0
        %3302 = vmatpush1.xpose.msra.mxu0 0.0
        %3303 = vmatprep.subr.mxu0 0.0
        %3304 = vmatpush1.xpose.msra.mxu0 0.0
        %3305 = vmatprep.subr.mxu0 0.0
        %3306 = vmatpush1.xpose.msra.mxu0 0.0
        %3307 = vmatprep.subr.mxu0 0.0
        %3308 = vmatpush1.xpose.msra.mxu0 0.0
        %3309 = vmatprep.subr.mxu0 0.0
        %3310 = vmatpush1.xpose.msra.mxu0 0.0
        %3311 = vmatprep.subr.mxu0 0.0
        %3312 = vmatpush1.xpose.msra.mxu0 0.0
        %3313 = vmatprep.subr.mxu0 0.0
        %3314 = vmatpush1.xpose.msra.mxu0 0.0
        %3315 = vmatprep.subr.mxu0 0.0
        %3316 = vmatpush1.xpose.msra.mxu0 0.0
        %3317 = vmatprep.subr.mxu0 0.0
        %3318 = vmatpush1.xpose.msra.mxu0 0.0
        %3319 = vmatprep.subr.mxu0 0.0
        %3320 = vmatpush1.xpose.msra.mxu0 0.0
        %3321 = vmatprep.subr.mxu0 0.0
        %3322 = vmatpush1.xpose.msra.mxu0 0.0
        %3323 = vmatprep.subr.mxu0 0.0
        %3324 = vmatpush1.xpose.msra.mxu0 0.0
        %3325 = vmatprep.subr.mxu0 0.0
        %3326 = vmatpush1.xpose.msra.mxu0 0.0
        %3327 = vmatprep.subr.mxu0 0.0
        %3328 = vmatpush1.xpose.msra.mxu0 0.0
        %3329 = vmatprep.subr.mxu0 0.0
        %3330 = vmatpush1.xpose.msra.mxu0 0.0
        %3331 = vmatprep.subr.mxu0 0.0
        %3332 = vmatpush1.xpose.msra.mxu0 0.0
        %3333 = vmatprep.subr.mxu0 0.0
        %3334 = vmatpush1.xpose.msra.mxu0 0.0
        %3335 = vmatprep.subr.mxu0 0.0
        %3336 = vmatpush1.xpose.msra.mxu0 0.0
        %3337 = vmatprep.subr.mxu0 0.0
        %3338 = vmatpush1.xpose.msra.mxu0 0.0
        %3339 = vmatprep.mubr.f32.mxu0 0.0
        %3340 = vmatmul.mubr.f32.gmra.mrb[0].mxu0 %v3267
        %v3341 = vpop.f32.mrb[0].mxu0
        %v3342 = vadd.f32 0.0, %v3341
        %v3343 = vpop.f32.mrb[0].mxu0
        %3344 = vdwg.mxu0
        %v3346 = vsel %vm2870, %v1692, 0
        %v3349 = vsel %vm2870, %v2144, 0
        %v3352 = vsel %vm2870, %v2280, 0
        %3354 = vmatprep.subr.mxu0 0.0
        %3355 = vmatpush1.xpose.msra.mxu0 %v3349
        %3356 = vmatprep.subr.mxu0 0.0
        %3357 = vmatpush1.xpose.msra.mxu0 %v3352
        %3358 = vmatprep.subr.mxu0 0.0
        %3359 = vmatpush1.xpose.msra.mxu0 0.0
        %3360 = vmatprep.subr.mxu0 0.0
        %3361 = vmatpush1.xpose.msra.mxu0 0.0
        %3362 = vmatprep.subr.mxu0 0.0
        %3363 = vmatpush1.xpose.msra.mxu0 0.0
        %3364 = vmatprep.subr.mxu0 0.0
        %3365 = vmatpush1.xpose.msra.mxu0 0.0
        %3366 = vmatprep.subr.mxu0 0.0
        %3367 = vmatpush1.xpose.msra.mxu0 0.0
        %3368 = vmatprep.subr.mxu0 0.0
        %3369 = vmatpush1.xpose.msra.mxu0 0.0
        %3370 = vmatprep.subr.mxu0 0.0
        %3371 = vmatpush1.xpose.msra.mxu0 0.0
        %3372 = vmatprep.subr.mxu0 0.0
        %3373 = vmatpush1.xpose.msra.mxu0 0.0
        %3374 = vmatprep.subr.mxu0 0.0
        %3375 = vmatpush1.xpose.msra.mxu0 0.0
        %3376 = vmatprep.subr.mxu0 0.0
        %3377 = vmatpush1.xpose.msra.mxu0 0.0
        %3378 = vmatprep.subr.mxu0 0.0
        %3379 = vmatpush1.xpose.msra.mxu0 0.0
        %3380 = vmatprep.subr.mxu0 0.0
        %3381 = vmatpush1.xpose.msra.mxu0 0.0
        %3382 = vmatprep.subr.mxu0 0.0
        %3383 = vmatpush1.xpose.msra.mxu0 0.0
        %3384 = vmatprep.subr.mxu0 0.0
        %3385 = vmatpush1.xpose.msra.mxu0 0.0
        %3386 = vmatprep.subr.mxu0 0.0
        %3387 = vmatpush1.xpose.msra.mxu0 0.0
        %3388 = vmatprep.subr.mxu0 0.0
        %3389 = vmatpush1.xpose.msra.mxu0 0.0
        %3390 = vmatprep.subr.mxu0 0.0
        %3391 = vmatpush1.xpose.msra.mxu0 0.0
        %3392 = vmatprep.subr.mxu0 0.0
        %3393 = vmatpush1.xpose.msra.mxu0 0.0
        %3394 = vmatprep.subr.mxu0 0.0
        %3395 = vmatpush1.xpose.msra.mxu0 0.0
        %3396 = vmatprep.subr.mxu0 0.0
        %3397 = vmatpush1.xpose.msra.mxu0 0.0
        %3398 = vmatprep.subr.mxu0 0.0
        %3399 = vmatpush1.xpose.msra.mxu0 0.0
        %3400 = vmatprep.subr.mxu0 0.0
        %3401 = vmatpush1.xpose.msra.mxu0 0.0
        %3402 = vmatprep.subr.mxu0 0.0
        %3403 = vmatpush1.xpose.msra.mxu0 0.0
        %3404 = vmatprep.subr.mxu0 0.0
        %3405 = vmatpush1.xpose.msra.mxu0 0.0
        %3406 = vmatprep.subr.mxu0 0.0
        %3407 = vmatpush1.xpose.msra.mxu0 0.0
        %3408 = vmatprep.subr.mxu0 0.0
        %3409 = vmatpush1.xpose.msra.mxu0 0.0
        %3410 = vmatprep.subr.mxu0 0.0
        %3411 = vmatpush1.xpose.msra.mxu0 0.0
        %3412 = vmatprep.subr.mxu0 0.0
        %3413 = vmatpush1.xpose.msra.mxu0 0.0
        %3414 = vmatprep.subr.mxu0 0.0
        %3415 = vmatpush1.xpose.msra.mxu0 0.0
        %3416 = vmatprep.subr.mxu0 0.0
        %3417 = vmatpush1.xpose.msra.mxu0 0.0
        %3418 = vmatprep.mubr.f32.mxu0 0.0
        %3419 = vmatmul.mubr.f32.gmra.mrb[0].mxu0 %v3346
        %v3420 = vpop.f32.mrb[0].mxu0
        %v3421 = vadd.f32 0.0, %v3420
        %v3422 = vpop.f32.mrb[0].mxu0
        %3423 = vdwg.mxu0
        %v3425 = vsel %vm2870, %v1693, 0
        %v3428 = vsel %vm2870, %v2145, 0
        %v3431 = vsel %vm2870, %v2281, 0
        %3433 = vmatprep.subr.mxu0 0.0
        %3434 = vmatpush1.xpose.msra.mxu0 %v3428
        %3435 = vmatprep.subr.mxu0 0.0
        %3436 = vmatpush1.xpose.msra.mxu0 %v3431
        %3437 = vmatprep.subr.mxu0 0.0
        %3438 = vmatpush1.xpose.msra.mxu0 0.0
        %3439 = vmatprep.subr.mxu0 0.0
        %3440 = vmatpush1.xpose.msra.mxu0 0.0
        %3441 = vmatprep.subr.mxu0 0.0
        %3442 = vmatpush1.xpose.msra.mxu0 0.0
        %3443 = vmatprep.subr.mxu0 0.0
        %3444 = vmatpush1.xpose.msra.mxu0 0.0
        %3445 = vmatprep.subr.mxu0 0.0
        %3446 = vmatpush1.xpose.msra.mxu0 0.0
        %3447 = vmatprep.subr.mxu0 0.0
        %3448 = vmatpush1.xpose.msra.mxu0 0.0
        %3449 = vmatprep.subr.mxu0 0.0
        %3450 = vmatpush1.xpose.msra.mxu0 0.0
        %3451 = vmatprep.subr.mxu0 0.0
        %3452 = vmatpush1.xpose.msra.mxu0 0.0
        %3453 = vmatprep.subr.mxu0 0.0
        %3454 = vmatpush1.xpose.msra.mxu0 0.0
        %3455 = vmatprep.subr.mxu0 0.0
        %3456 = vmatpush1.xpose.msra.mxu0 0.0
        %3457 = vmatprep.subr.mxu0 0.0
        %3458 = vmatpush1.xpose.msra.mxu0 0.0
        %3459 = vmatprep.subr.mxu0 0.0
        %3460 = vmatpush1.xpose.msra.mxu0 0.0
        %3461 = vmatprep.subr.mxu0 0.0
        %3462 = vmatpush1.xpose.msra.mxu0 0.0
        %3463 = vmatprep.subr.mxu0 0.0
        %3464 = vmatpush1.xpose.msra.mxu0 0.0
        %3465 = vmatprep.subr.mxu0 0.0
        %3466 = vmatpush1.xpose.msra.mxu0 0.0
        %3467 = vmatprep.subr.mxu0 0.0
        %3468 = vmatpush1.xpose.msra.mxu0 0.0
        %3469 = vmatprep.subr.mxu0 0.0
        %3470 = vmatpush1.xpose.msra.mxu0 0.0
        %3471 = vmatprep.subr.mxu0 0.0
        %3472 = vmatpush1.xpose.msra.mxu0 0.0
        %3473 = vmatprep.subr.mxu0 0.0
        %3474 = vmatpush1.xpose.msra.mxu0 0.0
        %3475 = vmatprep.subr.mxu0 0.0
        %3476 = vmatpush1.xpose.msra.mxu0 0.0
        %3477 = vmatprep.subr.mxu0 0.0
        %3478 = vmatpush1.xpose.msra.mxu0 0.0
        %3479 = vmatprep.subr.mxu0 0.0
        %3480 = vmatpush1.xpose.msra.mxu0 0.0
        %3481 = vmatprep.subr.mxu0 0.0
        %3482 = vmatpush1.xpose.msra.mxu0 0.0
        %3483 = vmatprep.subr.mxu0 0.0
        %3484 = vmatpush1.xpose.msra.mxu0 0.0
        %3485 = vmatprep.subr.mxu0 0.0
        %3486 = vmatpush1.xpose.msra.mxu0 0.0
        %3487 = vmatprep.subr.mxu0 0.0
        %3488 = vmatpush1.xpose.msra.mxu0 0.0
        %3489 = vmatprep.subr.mxu0 0.0
        %3490 = vmatpush1.xpose.msra.mxu0 0.0
        %3491 = vmatprep.subr.mxu0 0.0
        %3492 = vmatpush1.xpose.msra.mxu0 0.0
        %3493 = vmatprep.subr.mxu0 0.0
        %3494 = vmatpush1.xpose.msra.mxu0 0.0
        %3495 = vmatprep.subr.mxu0 0.0
        %3496 = vmatpush1.xpose.msra.mxu0 0.0
        %3497 = vmatprep.mubr.f32.mxu0 0.0
        %3498 = vmatmul.mubr.f32.gmra.mrb[0].mxu0 %v3425
        %v3499 = vpop.f32.mrb[0].mxu0
        %v3500 = vadd.f32 0.0, %v3499
        %v3501 = vpop.f32.mrb[0].mxu0
        %3502 = vdwg.mxu0
        %v3503 = vsel %vm2870, %v2947, -inf
        %3504 = vmax.xlane.f32.xlu0 %v3503
        %v3505 = vpop.xlane.xlu0 %3504
        %v3506 = vsel %vm2870, %v3026, -inf
        %3507 = vmax.xlane.f32.xlu0 %v3506
        %v3508 = vpop.xlane.xlu0 %3507
        %v3509 = vsel %vm2870, %v3105, -inf
        %3510 = vmax.xlane.f32.xlu0 %v3509
        %v3511 = vpop.xlane.xlu0 %3510
        %v3512 = vsel %vm2870, %v3184, -inf
        %3513 = vmax.xlane.f32.xlu0 %v3512
        %v3514 = vpop.xlane.xlu0 %3513
        %v3515 = vsel %vm2870, %v3263, -inf
        %3516 = vmax.xlane.f32.xlu0 %v3515
        %v3517 = vpop.xlane.xlu0 %3516
        %v3518 = vsel %vm2870, %v3342, -inf
        %3519 = vmax.xlane.f32.xlu0 %v3518
        %v3520 = vpop.xlane.xlu0 %3519
        %v3521 = vsel %vm2870, %v3421, -inf
        %3522 = vmax.xlane.f32.xlu0 %v3521
        %v3523 = vpop.xlane.xlu0 %3522
        %v3524 = vsel %vm2870, %v3500, -inf
        %3525 = vmax.xlane.f32.xlu0 %v3524
        %v3526 = vpop.xlane.xlu0 %3525
        %v3527 = vsub.f32 %v2947, %v3505
        %v3528 = vsub.f32 %v3026, %v3508
        %v3529 = vsub.f32 %v3105, %v3511
        %v3530 = vsub.f32 %v3184, %v3514
        %v3531 = vsub.f32 %v3263, %v3517
        %v3532 = vsub.f32 %v3342, %v3520
        %v3533 = vsub.f32 %v3421, %v3523
        %v3534 = vsub.f32 %v3500, %v3526
        %v3535 = vmul.f32 %v3527, 1.442695
        %v3536 = vpow.pop %v3535
        %v3537 = vmul.f32 %v3528, 1.442695
        %v3538 = vpow.pop %v3537
        %v3539 = vmul.f32 %v3529, 1.442695
        %v3540 = vpow.pop %v3539
        %v3541 = vmul.f32 %v3530, 1.442695
        %v3542 = vpow.pop %v3541
        %v3543 = vmul.f32 %v3531, 1.442695
        %v3544 = vpow.pop %v3543
        %v3545 = vmul.f32 %v3532, 1.442695
        %v3546 = vpow.pop %v3545
        %v3547 = vmul.f32 %v3533, 1.442695
        %v3548 = vpow.pop %v3547
        %v3549 = vmul.f32 %v3534, 1.442695
        %v3550 = vpow.pop %v3549
        %v3551 = vsel %vm2870, %v3536, 0.0
        %3552 = vadd.xlane.f32.xlu0 %v3551
        %v3553 = vpop.xlane.xlu0 %3552
        %v3554 = vsel %vm2870, %v3538, 0.0
        %3555 = vadd.xlane.f32.xlu0 %v3554
        %v3556 = vpop.xlane.xlu0 %3555
        %v3557 = vsel %vm2870, %v3540, 0.0
        %3558 = vadd.xlane.f32.xlu0 %v3557
        %v3559 = vpop.xlane.xlu0 %3558
        %v3560 = vsel %vm2870, %v3542, 0.0
        %3561 = vadd.xlane.f32.xlu0 %v3560
        %v3562 = vpop.xlane.xlu0 %3561
        %v3563 = vsel %vm2870, %v3544, 0.0
        %3564 = vadd.xlane.f32.xlu0 %v3563
        %v3565 = vpop.xlane.xlu0 %3564
        %v3566 = vsel %vm2870, %v3546, 0.0
        %3567 = vadd.xlane.f32.xlu0 %v3566
        %v3568 = vpop.xlane.xlu0 %3567
        %v3569 = vsel %vm2870, %v3548, 0.0
        %3570 = vadd.xlane.f32.xlu0 %v3569
        %v3571 = vpop.xlane.xlu0 %3570
        %v3572 = vsel %vm2870, %v3550, 0.0
        %3573 = vadd.xlane.f32.xlu0 %v3572
        %v3574 = vpop.xlane.xlu0 %3573
        %v3575 = vrcp.pop %v3553
        %v3576 = vrcp.pop %v3556
        %v3577 = vrcp.pop %v3559
        %v3578 = vrcp.pop %v3562
        %v3579 = vrcp.pop %v3565
        %v3580 = vrcp.pop %v3568
        %v3581 = vrcp.pop %v3571
        %v3582 = vrcp.pop %v3574
        %v3583 = vmul.f32 %v3536, %v3575
        %v3584 = vmul.f32 %v3538, %v3576
        %v3585 = vmul.f32 %v3540, %v3577
        %v3586 = vmul.f32 %v3542, %v3578
        %v3587 = vmul.f32 %v3544, %v3579
        %v3588 = vmul.f32 %v3546, %v3580
        %v3589 = vmul.f32 %v3548, %v3581
        %v3590 = vmul.f32 %v3550, %v3582
        %v3592 = vsel %vm2870, %v3583, 0
        %3594 = vmatprep.subr.mxu0 0.0
        %3595 = vmatpush1.msra.mxu0 %v2726
        %3596 = vmatprep.subr.mxu0 0.0
        %3597 = vmatpush1.msra.mxu0 %v2862
        %3598 = vmatprep.subr.mxu0 0.0
        %3599 = vmatpush1.msra.mxu0 0.0
        %3600 = vmatprep.subr.mxu0 0.0
        %3601 = vmatpush1.msra.mxu0 0.0
        %3602 = vmatprep.subr.mxu0 0.0
        %3603 = vmatpush1.msra.mxu0 0.0
        %3604 = vmatprep.subr.mxu0 0.0
        %3605 = vmatpush1.msra.mxu0 0.0
        %3606 = vmatprep.subr.mxu0 0.0
        %3607 = vmatpush1.msra.mxu0 0.0
        %3608 = vmatprep.subr.mxu0 0.0
        %3609 = vmatpush1.msra.mxu0 0.0
        %3610 = vmatprep.subr.mxu0 0.0
        %3611 = vmatpush1.msra.mxu0 0.0
        %3612 = vmatprep.subr.mxu0 0.0
        %3613 = vmatpush1.msra.mxu0 0.0
        %3614 = vmatprep.subr.mxu0 0.0
        %3615 = vmatpush1.msra.mxu0 0.0
        %3616 = vmatprep.subr.mxu0 0.0
        %3617 = vmatpush1.msra.mxu0 0.0
        %3618 = vmatprep.subr.mxu0 0.0
        %3619 = vmatpush1.msra.mxu0 0.0
        %3620 = vmatprep.subr.mxu0 0.0
        %3621 = vmatpush1.msra.mxu0 0.0
        %3622 = vmatprep.subr.mxu0 0.0
        %3623 = vmatpush1.msra.mxu0 0.0
        %3624 = vmatprep.subr.mxu0 0.0
        %3625 = vmatpush1.msra.mxu0 0.0
        %3626 = vmatprep.subr.mxu0 0.0
        %3627 = vmatpush1.msra.mxu0 0.0
        %3628 = vmatprep.subr.mxu0 0.0
        %3629 = vmatpush1.msra.mxu0 0.0
        %3630 = vmatprep.subr.mxu0 0.0
        %3631 = vmatpush1.msra.mxu0 0.0
        %3632 = vmatprep.subr.mxu0 0.0
        %3633 = vmatpush1.msra.mxu0 0.0
        %3634 = vmatprep.subr.mxu0 0.0
        %3635 = vmatpush1.msra.mxu0 0.0
        %3636 = vmatprep.subr.mxu0 0.0
        %3637 = vmatpush1.msra.mxu0 0.0
        %3638 = vmatprep.subr.mxu0 0.0
        %3639 = vmatpush1.msra.mxu0 0.0
        %3640 = vmatprep.subr.mxu0 0.0
        %3641 = vmatpush1.msra.mxu0 0.0
        %3642 = vmatprep.subr.mxu0 0.0
        %3643 = vmatpush1.msra.mxu0 0.0
        %3644 = vmatprep.subr.mxu0 0.0
        %3645 = vmatpush1.msra.mxu0 0.0
        %3646 = vmatprep.subr.mxu0 0.0
        %3647 = vmatpush1.msra.mxu0 0.0
        %3648 = vmatprep.subr.mxu0 0.0
        %3649 = vmatpush1.msra.mxu0 0.0
        %3650 = vmatprep.subr.mxu0 0.0
        %3651 = vmatpush1.msra.mxu0 0.0
        %3652 = vmatprep.subr.mxu0 0.0
        %3653 = vmatpush1.msra.mxu0 0.0
        %3654 = vmatprep.subr.mxu0 0.0
        %3655 = vmatpush1.msra.mxu0 0.0
        %3656 = vmatprep.subr.mxu0 0.0
        %3657 = vmatpush1.msra.mxu0 0.0
        %3658 = vmatprep.mubr.f32.mxu0 0.0
        %3659 = vmatmul.mubr.f32.gmra.mrb[0].mxu0 %v3592
        %v3660 = vpop.f32.mrb[0].mxu0
        %v3661 = vadd.f32 0.0, %v3660
        %v3662 = vpop.f32.mrb[0].mxu0
        %3663 = vdwg.mxu0
        %v3665 = vsel %vm2870, %v3584, 0
        %3667 = vmatprep.subr.mxu0 0.0
        %3668 = vmatpush1.msra.mxu0 %v2727
        %3669 = vmatprep.subr.mxu0 0.0
        %3670 = vmatpush1.msra.mxu0 %v2863
        %3671 = vmatprep.subr.mxu0 0.0
        %3672 = vmatpush1.msra.mxu0 0.0
        %3673 = vmatprep.subr.mxu0 0.0
        %3674 = vmatpush1.msra.mxu0 0.0
        %3675 = vmatprep.subr.mxu0 0.0
        %3676 = vmatpush1.msra.mxu0 0.0
        %3677 = vmatprep.subr.mxu0 0.0
        %3678 = vmatpush1.msra.mxu0 0.0
        %3679 = vmatprep.subr.mxu0 0.0
        %3680 = vmatpush1.msra.mxu0 0.0
        %3681 = vmatprep.subr.mxu0 0.0
        %3682 = vmatpush1.msra.mxu0 0.0
        %3683 = vmatprep.subr.mxu0 0.0
        %3684 = vmatpush1.msra.mxu0 0.0
        %3685 = vmatprep.subr.mxu0 0.0
        %3686 = vmatpush1.msra.mxu0 0.0
        %3687 = vmatprep.subr.mxu0 0.0
        %3688 = vmatpush1.msra.mxu0 0.0
        %3689 = vmatprep.subr.mxu0 0.0
        %3690 = vmatpush1.msra.mxu0 0.0
        %3691 = vmatprep.subr.mxu0 0.0
        %3692 = vmatpush1.msra.mxu0 0.0
        %3693 = vmatprep.subr.mxu0 0.0
        %3694 = vmatpush1.msra.mxu0 0.0
        %3695 = vmatprep.subr.mxu0 0.0
        %3696 = vmatpush1.msra.mxu0 0.0
        %3697 = vmatprep.subr.mxu0 0.0
        %3698 = vmatpush1.msra.mxu0 0.0
        %3699 = vmatprep.subr.mxu0 0.0
        %3700 = vmatpush1.msra.mxu0 0.0
        %3701 = vmatprep.subr.mxu0 0.0
        %3702 = vmatpush1.msra.mxu0 0.0
        %3703 = vmatprep.subr.mxu0 0.0
        %3704 = vmatpush1.msra.mxu0 0.0
        %3705 = vmatprep.subr.mxu0 0.0
        %3706 = vmatpush1.msra.mxu0 0.0
        %3707 = vmatprep.subr.mxu0 0.0
        %3708 = vmatpush1.msra.mxu0 0.0
        %3709 = vmatprep.subr.mxu0 0.0
        %3710 = vmatpush1.msra.mxu0 0.0
        %3711 = vmatprep.subr.mxu0 0.0
        %3712 = vmatpush1.msra.mxu0 0.0
        %3713 = vmatprep.subr.mxu0 0.0
        %3714 = vmatpush1.msra.mxu0 0.0
        %3715 = vmatprep.subr.mxu0 0.0
        %3716 = vmatpush1.msra.mxu0 0.0
        %3717 = vmatprep.subr.mxu0 0.0
        %3718 = vmatpush1.msra.mxu0 0.0
        %3719 = vmatprep.subr.mxu0 0.0
        %3720 = vmatpush1.msra.mxu0 0.0
        %3721 = vmatprep.subr.mxu0 0.0
        %3722 = vmatpush1.msra.mxu0 0.0
        %3723 = vmatprep.subr.mxu0 0.0
        %3724 = vmatpush1.msra.mxu0 0.0
        %3725 = vmatprep.subr.mxu0 0.0
        %3726 = vmatpush1.msra.mxu0 0.0
        %3727 = vmatprep.subr.mxu0 0.0
        %3728 = vmatpush1.msra.mxu0 0.0
        %3729 = vmatprep.subr.mxu0 0.0
        %3730 = vmatpush1.msra.mxu0 0.0
        %3731 = vmatprep.mubr.f32.mxu0 0.0
        %3732 = vmatmul.mubr.f32.gmra.mrb[0].mxu0 %v3665
        %v3733 = vpop.f32.mrb[0].mxu0
        %v3734 = vadd.f32 0.0, %v3733
        %v3735 = vpop.f32.mrb[0].mxu0
        %3736 = vdwg.mxu0
        %v3738 = vsel %vm2870, %v3585, 0
        %3740 = vmatprep.subr.mxu0 0.0
        %3741 = vmatpush1.msra.mxu0 %v2728
        %3742 = vmatprep.subr.mxu0 0.0
        %3743 = vmatpush1.msra.mxu0 %v2864
        %3744 = vmatprep.subr.mxu0 0.0
        %3745 = vmatpush1.msra.mxu0 0.0
        %3746 = vmatprep.subr.mxu0 0.0
        %3747 = vmatpush1.msra.mxu0 0.0
        %3748 = vmatprep.subr.mxu0 0.0
        %3749 = vmatpush1.msra.mxu0 0.0
        %3750 = vmatprep.subr.mxu0 0.0
        %3751 = vmatpush1.msra.mxu0 0.0
        %3752 = vmatprep.subr.mxu0 0.0
        %3753 = vmatpush1.msra.mxu0 0.0
        %3754 = vmatprep.subr.mxu0 0.0
        %3755 = vmatpush1.msra.mxu0 0.0
        %3756 = vmatprep.subr.mxu0 0.0
        %3757 = vmatpush1.msra.mxu0 0.0
        %3758 = vmatprep.subr.mxu0 0.0
        %3759 = vmatpush1.msra.mxu0 0.0
        %3760 = vmatprep.subr.mxu0 0.0
        %3761 = vmatpush1.msra.mxu0 0.0
        %3762 = vmatprep.subr.mxu0 0.0
        %3763 = vmatpush1.msra.mxu0 0.0
        %3764 = vmatprep.subr.mxu0 0.0
        %3765 = vmatpush1.msra.mxu0 0.0
        %3766 = vmatprep.subr.mxu0 0.0
        %3767 = vmatpush1.msra.mxu0 0.0
        %3768 = vmatprep.subr.mxu0 0.0
        %3769 = vmatpush1.msra.mxu0 0.0
        %3770 = vmatprep.subr.mxu0 0.0
        %3771 = vmatpush1.msra.mxu0 0.0
        %3772 = vmatprep.subr.mxu0 0.0
        %3773 = vmatpush1.msra.mxu0 0.0
        %3774 = vmatprep.subr.mxu0 0.0
        %3775 = vmatpush1.msra.mxu0 0.0
        %3776 = vmatprep.subr.mxu0 0.0
        %3777 = vmatpush1.msra.mxu0 0.0
        %3778 = vmatprep.subr.mxu0 0.0
        %3779 = vmatpush1.msra.mxu0 0.0
        %3780 = vmatprep.subr.mxu0 0.0
        %3781 = vmatpush1.msra.mxu0 0.0
        %3782 = vmatprep.subr.mxu0 0.0
        %3783 = vmatpush1.msra.mxu0 0.0
        %3784 = vmatprep.subr.mxu0 0.0
        %3785 = vmatpush1.msra.mxu0 0.0
        %3786 = vmatprep.subr.mxu0 0.0
        %3787 = vmatpush1.msra.mxu0 0.0
        %3788 = vmatprep.subr.mxu0 0.0
        %3789 = vmatpush1.msra.mxu0 0.0
        %3790 = vmatprep.subr.mxu0 0.0
        %3791 = vmatpush1.msra.mxu0 0.0
        %3792 = vmatprep.subr.mxu0 0.0
        %3793 = vmatpush1.msra.mxu0 0.0
        %3794 = vmatprep.subr.mxu0 0.0
        %3795 = vmatpush1.msra.mxu0 0.0
        %3796 = vmatprep.subr.mxu0 0.0
        %3797 = vmatpush1.msra.mxu0 0.0
        %3798 = vmatprep.subr.mxu0 0.0
        %3799 = vmatpush1.msra.mxu0 0.0
        %3800 = vmatprep.subr.mxu0 0.0
        %3801 = vmatpush1.msra.mxu0 0.0
        %3802 = vmatprep.subr.mxu0 0.0
        %3803 = vmatpush1.msra.mxu0 0.0
        %3804 = vmatprep.mubr.f32.mxu0 0.0
        %3805 = vmatmul.mubr.f32.gmra.mrb[0].mxu0 %v3738
        %v3806 = vpop.f32.mrb[0].mxu0
        %v3807 = vadd.f32 0.0, %v3806
        %v3808 = vpop.f32.mrb[0].mxu0
        %3809 = vdwg.mxu0
        %v3811 = vsel %vm2870, %v3586, 0
        %3813 = vmatprep.subr.mxu0 0.0
        %3814 = vmatpush1.msra.mxu0 %v2729
        %3815 = vmatprep.subr.mxu0 0.0
        %3816 = vmatpush1.msra.mxu0 %v2865
        %3817 = vmatprep.subr.mxu0 0.0
        %3818 = vmatpush1.msra.mxu0 0.0
        %3819 = vmatprep.subr.mxu0 0.0
        %3820 = vmatpush1.msra.mxu0 0.0
        %3821 = vmatprep.subr.mxu0 0.0
        %3822 = vmatpush1.msra.mxu0 0.0
        %3823 = vmatprep.subr.mxu0 0.0
        %3824 = vmatpush1.msra.mxu0 0.0
        %3825 = vmatprep.subr.mxu0 0.0
        %3826 = vmatpush1.msra.mxu0 0.0
        %3827 = vmatprep.subr.mxu0 0.0
        %3828 = vmatpush1.msra.mxu0 0.0
        %3829 = vmatprep.subr.mxu0 0.0
        %3830 = vmatpush1.msra.mxu0 0.0
        %3831 = vmatprep.subr.mxu0 0.0
        %3832 = vmatpush1.msra.mxu0 0.0
        %3833 = vmatprep.subr.mxu0 0.0
        %3834 = vmatpush1.msra.mxu0 0.0
        %3835 = vmatprep.subr.mxu0 0.0
        %3836 = vmatpush1.msra.mxu0 0.0
        %3837 = vmatprep.subr.mxu0 0.0
        %3838 = vmatpush1.msra.mxu0 0.0
        %3839 = vmatprep.subr.mxu0 0.0
        %3840 = vmatpush1.msra.mxu0 0.0
        %3841 = vmatprep.subr.mxu0 0.0
        %3842 = vmatpush1.msra.mxu0 0.0
        %3843 = vmatprep.subr.mxu0 0.0
        %3844 = vmatpush1.msra.mxu0 0.0
        %3845 = vmatprep.subr.mxu0 0.0
        %3846 = vmatpush1.msra.mxu0 0.0
        %3847 = vmatprep.subr.mxu0 0.0
        %3848 = vmatpush1.msra.mxu0 0.0
        %3849 = vmatprep.subr.mxu0 0.0
        %3850 = vmatpush1.msra.mxu0 0.0
        %3851 = vmatprep.subr.mxu0 0.0
        %3852 = vmatpush1.msra.mxu0 0.0
        %3853 = vmatprep.subr.mxu0 0.0
        %3854 = vmatpush1.msra.mxu0 0.0
        %3855 = vmatprep.subr.mxu0 0.0
        %3856 = vmatpush1.msra.mxu0 0.0
        %3857 = vmatprep.subr.mxu0 0.0
        %3858 = vmatpush1.msra.mxu0 0.0
        %3859 = vmatprep.subr.mxu0 0.0
        %3860 = vmatpush1.msra.mxu0 0.0
        %3861 = vmatprep.subr.mxu0 0.0
        %3862 = vmatpush1.msra.mxu0 0.0
        %3863 = vmatprep.subr.mxu0 0.0
        %3864 = vmatpush1.msra.mxu0 0.0
        %3865 = vmatprep.subr.mxu0 0.0
        %3866 = vmatpush1.msra.mxu0 0.0
        %3867 = vmatprep.subr.mxu0 0.0
        %3868 = vmatpush1.msra.mxu0 0.0
        %3869 = vmatprep.subr.mxu0 0.0
        %3870 = vmatpush1.msra.mxu0 0.0
        %3871 = vmatprep.subr.mxu0 0.0
        %3872 = vmatpush1.msra.mxu0 0.0
        %3873 = vmatprep.subr.mxu0 0.0
        %3874 = vmatpush1.msra.mxu0 0.0
        %3875 = vmatprep.subr.mxu0 0.0
        %3876 = vmatpush1.msra.mxu0 0.0
        %3877 = vmatprep.mubr.f32.mxu0 0.0
        %3878 = vmatmul.mubr.f32.gmra.mrb[0].mxu0 %v3811
        %v3879 = vpop.f32.mrb[0].mxu0
        %v3880 = vadd.f32 0.0, %v3879
        %v3881 = vpop.f32.mrb[0].mxu0
        %3882 = vdwg.mxu0
        %v3884 = vsel %vm2870, %v3587, 0
        %3886 = vmatprep.subr.mxu0 0.0
        %3887 = vmatpush1.msra.mxu0 %v2730
        %3888 = vmatprep.subr.mxu0 0.0
        %3889 = vmatpush1.msra.mxu0 %v2866
        %3890 = vmatprep.subr.mxu0 0.0
        %3891 = vmatpush1.msra.mxu0 0.0
        %3892 = vmatprep.subr.mxu0 0.0
        %3893 = vmatpush1.msra.mxu0 0.0
        %3894 = vmatprep.subr.mxu0 0.0
        %3895 = vmatpush1.msra.mxu0 0.0
        %3896 = vmatprep.subr.mxu0 0.0
        %3897 = vmatpush1.msra.mxu0 0.0
        %3898 = vmatprep.subr.mxu0 0.0
        %3899 = vmatpush1.msra.mxu0 0.0
        %3900 = vmatprep.subr.mxu0 0.0
        %3901 = vmatpush1.msra.mxu0 0.0
        %3902 = vmatprep.subr.mxu0 0.0
        %3903 = vmatpush1.msra.mxu0 0.0
        %3904 = vmatprep.subr.mxu0 0.0
        %3905 = vmatpush1.msra.mxu0 0.0
        %3906 = vmatprep.subr.mxu0 0.0
        %3907 = vmatpush1.msra.mxu0 0.0
        %3908 = vmatprep.subr.mxu0 0.0
        %3909 = vmatpush1.msra.mxu0 0.0
        %3910 = vmatprep.subr.mxu0 0.0
        %3911 = vmatpush1.msra.mxu0 0.0
        %3912 = vmatprep.subr.mxu0 0.0
        %3913 = vmatpush1.msra.mxu0 0.0
        %3914 = vmatprep.subr.mxu0 0.0
        %3915 = vmatpush1.msra.mxu0 0.0
        %3916 = vmatprep.subr.mxu0 0.0
        %3917 = vmatpush1.msra.mxu0 0.0
        %3918 = vmatprep.subr.mxu0 0.0
        %3919 = vmatpush1.msra.mxu0 0.0
        %3920 = vmatprep.subr.mxu0 0.0
        %3921 = vmatpush1.msra.mxu0 0.0
        %3922 = vmatprep.subr.mxu0 0.0
        %3923 = vmatpush1.msra.mxu0 0.0
        %3924 = vmatprep.subr.mxu0 0.0
        %3925 = vmatpush1.msra.mxu0 0.0
        %3926 = vmatprep.subr.mxu0 0.0
        %3927 = vmatpush1.msra.mxu0 0.0
        %3928 = vmatprep.subr.mxu0 0.0
        %3929 = vmatpush1.msra.mxu0 0.0
        %3930 = vmatprep.subr.mxu0 0.0
        %3931 = vmatpush1.msra.mxu0 0.0
        %3932 = vmatprep.subr.mxu0 0.0
        %3933 = vmatpush1.msra.mxu0 0.0
        %3934 = vmatprep.subr.mxu0 0.0
        %3935 = vmatpush1.msra.mxu0 0.0
        %3936 = vmatprep.subr.mxu0 0.0
        %3937 = vmatpush1.msra.mxu0 0.0
        %3938 = vmatprep.subr.mxu0 0.0
        %3939 = vmatpush1.msra.mxu0 0.0
        %3940 = vmatprep.subr.mxu0 0.0
        %3941 = vmatpush1.msra.mxu0 0.0
        %3942 = vmatprep.subr.mxu0 0.0
        %3943 = vmatpush1.msra.mxu0 0.0
        %3944 = vmatprep.subr.mxu0 0.0
        %3945 = vmatpush1.msra.mxu0 0.0
        %3946 = vmatprep.subr.mxu0 0.0
        %3947 = vmatpush1.msra.mxu0 0.0
        %3948 = vmatprep.subr.mxu0 0.0
        %3949 = vmatpush1.msra.mxu0 0.0
        %3950 = vmatprep.mubr.f32.mxu0 0.0
        %3951 = vmatmul.mubr.f32.gmra.mrb[0].mxu0 %v3884
        %v3952 = vpop.f32.mrb[0].mxu0
        %v3953 = vadd.f32 0.0, %v3952
        %v3954 = vpop.f32.mrb[0].mxu0
        %3955 = vdwg.mxu0
        %v3957 = vsel %vm2870, %v3588, 0
        %3959 = vmatprep.subr.mxu0 0.0
        %3960 = vmatpush1.msra.mxu0 %v2731
        %3961 = vmatprep.subr.mxu0 0.0
        %3962 = vmatpush1.msra.mxu0 %v2867
        %3963 = vmatprep.subr.mxu0 0.0
        %3964 = vmatpush1.msra.mxu0 0.0
        %3965 = vmatprep.subr.mxu0 0.0
        %3966 = vmatpush1.msra.mxu0 0.0
        %3967 = vmatprep.subr.mxu0 0.0
        %3968 = vmatpush1.msra.mxu0 0.0
        %3969 = vmatprep.subr.mxu0 0.0
        %3970 = vmatpush1.msra.mxu0 0.0
        %3971 = vmatprep.subr.mxu0 0.0
        %3972 = vmatpush1.msra.mxu0 0.0
        %3973 = vmatprep.subr.mxu0 0.0
        %3974 = vmatpush1.msra.mxu0 0.0
        %3975 = vmatprep.subr.mxu0 0.0
        %3976 = vmatpush1.msra.mxu0 0.0
        %3977 = vmatprep.subr.mxu0 0.0
        %3978 = vmatpush1.msra.mxu0 0.0
        %3979 = vmatprep.subr.mxu0 0.0
        %3980 = vmatpush1.msra.mxu0 0.0
        %3981 = vmatprep.subr.mxu0 0.0
        %3982 = vmatpush1.msra.mxu0 0.0
        %3983 = vmatprep.subr.mxu0 0.0
        %3984 = vmatpush1.msra.mxu0 0.0
        %3985 = vmatprep.subr.mxu0 0.0
        %3986 = vmatpush1.msra.mxu0 0.0
        %3987 = vmatprep.subr.mxu0 0.0
        %3988 = vmatpush1.msra.mxu0 0.0
        %3989 = vmatprep.subr.mxu0 0.0
        %3990 = vmatpush1.msra.mxu0 0.0
        %3991 = vmatprep.subr.mxu0 0.0
        %3992 = vmatpush1.msra.mxu0 0.0
        %3993 = vmatprep.subr.mxu0 0.0
        %3994 = vmatpush1.msra.mxu0 0.0
        %3995 = vmatprep.subr.mxu0 0.0
        %3996 = vmatpush1.msra.mxu0 0.0
        %3997 = vmatprep.subr.mxu0 0.0
        %3998 = vmatpush1.msra.mxu0 0.0
        %3999 = vmatprep.subr.mxu0 0.0
        %4000 = vmatpush1.msra.mxu0 0.0
        %4001 = vmatprep.subr.mxu0 0.0
        %4002 = vmatpush1.msra.mxu0 0.0
        %4003 = vmatprep.subr.mxu0 0.0
        %4004 = vmatpush1.msra.mxu0 0.0
        %4005 = vmatprep.subr.mxu0 0.0
        %4006 = vmatpush1.msra.mxu0 0.0
        %4007 = vmatprep.subr.mxu0 0.0
        %4008 = vmatpush1.msra.mxu0 0.0
        %4009 = vmatprep.subr.mxu0 0.0
        %4010 = vmatpush1.msra.mxu0 0.0
        %4011 = vmatprep.subr.mxu0 0.0
        %4012 = vmatpush1.msra.mxu0 0.0
        %4013 = vmatprep.subr.mxu0 0.0
        %4014 = vmatpush1.msra.mxu0 0.0
        %4015 = vmatprep.subr.mxu0 0.0
        %4016 = vmatpush1.msra.mxu0 0.0
        %4017 = vmatprep.subr.mxu0 0.0
        %4018 = vmatpush1.msra.mxu0 0.0
        %4019 = vmatprep.subr.mxu0 0.0
        %4020 = vmatpush1.msra.mxu0 0.0
        %4021 = vmatprep.subr.mxu0 0.0
        %4022 = vmatpush1.msra.mxu0 0.0
        %4023 = vmatprep.mubr.f32.mxu0 0.0
        %4024 = vmatmul.mubr.f32.gmra.mrb[0].mxu0 %v3957
        %v4025 = vpop.f32.mrb[0].mxu0
        %v4026 = vadd.f32 0.0, %v4025
        %v4027 = vpop.f32.mrb[0].mxu0
        %4028 = vdwg.mxu0
        %v4030 = vsel %vm2870, %v3589, 0
        %4032 = vmatprep.subr.mxu0 0.0
        %4033 = vmatpush1.msra.mxu0 %v2732
        %4034 = vmatprep.subr.mxu0 0.0
        %4035 = vmatpush1.msra.mxu0 %v2868
        %4036 = vmatprep.subr.mxu0 0.0
        %4037 = vmatpush1.msra.mxu0 0.0
        %4038 = vmatprep.subr.mxu0 0.0
        %4039 = vmatpush1.msra.mxu0 0.0
        %4040 = vmatprep.subr.mxu0 0.0
        %4041 = vmatpush1.msra.mxu0 0.0
        %4042 = vmatprep.subr.mxu0 0.0
        %4043 = vmatpush1.msra.mxu0 0.0
        %4044 = vmatprep.subr.mxu0 0.0
        %4045 = vmatpush1.msra.mxu0 0.0
        %4046 = vmatprep.subr.mxu0 0.0
        %4047 = vmatpush1.msra.mxu0 0.0
        %4048 = vmatprep.subr.mxu0 0.0
        %4049 = vmatpush1.msra.mxu0 0.0
        %4050 = vmatprep.subr.mxu0 0.0
        %4051 = vmatpush1.msra.mxu0 0.0
        %4052 = vmatprep.subr.mxu0 0.0
        %4053 = vmatpush1.msra.mxu0 0.0
        %4054 = vmatprep.subr.mxu0 0.0
        %4055 = vmatpush1.msra.mxu0 0.0
        %4056 = vmatprep.subr.mxu0 0.0
        %4057 = vmatpush1.msra.mxu0 0.0
        %4058 = vmatprep.subr.mxu0 0.0
        %4059 = vmatpush1.msra.mxu0 0.0
        %4060 = vmatprep.subr.mxu0 0.0
        %4061 = vmatpush1.msra.mxu0 0.0
        %4062 = vmatprep.subr.mxu0 0.0
        %4063 = vmatpush1.msra.mxu0 0.0
        %4064 = vmatprep.subr.mxu0 0.0
        %4065 = vmatpush1.msra.mxu0 0.0
        %4066 = vmatprep.subr.mxu0 0.0
        %4067 = vmatpush1.msra.mxu0 0.0
        %4068 = vmatprep.subr.mxu0 0.0
        %4069 = vmatpush1.msra.mxu0 0.0
        %4070 = vmatprep.subr.mxu0 0.0
        %4071 = vmatpush1.msra.mxu0 0.0
        %4072 = vmatprep.subr.mxu0 0.0
        %4073 = vmatpush1.msra.mxu0 0.0
        %4074 = vmatprep.subr.mxu0 0.0
        %4075 = vmatpush1.msra.mxu0 0.0
        %4076 = vmatprep.subr.mxu0 0.0
        %4077 = vmatpush1.msra.mxu0 0.0
        %4078 = vmatprep.subr.mxu0 0.0
        %4079 = vmatpush1.msra.mxu0 0.0
        %4080 = vmatprep.subr.mxu0 0.0
        %4081 = vmatpush1.msra.mxu0 0.0
        %4082 = vmatprep.subr.mxu0 0.0
        %4083 = vmatpush1.msra.mxu0 0.0
        %4084 = vmatprep.subr.mxu0 0.0
        %4085 = vmatpush1.msra.mxu0 0.0
        %4086 = vmatprep.subr.mxu0 0.0
        %4087 = vmatpush1.msra.mxu0 0.0
        %4088 = vmatprep.subr.mxu0 0.0
        %4089 = vmatpush1.msra.mxu0 0.0
        %4090 = vmatprep.subr.mxu0 0.0
        %4091 = vmatpush1.msra.mxu0 0.0
        %4092 = vmatprep.subr.mxu0 0.0
        %4093 = vmatpush1.msra.mxu0 0.0
        %4094 = vmatprep.subr.mxu0 0.0
        %4095 = vmatpush1.msra.mxu0 0.0
        %4096 = vmatprep.mubr.f32.mxu0 0.0
        %4097 = vmatmul.mubr.f32.gmra.mrb[0].mxu0 %v4030
        %v4098 = vpop.f32.mrb[0].mxu0
        %v4099 = vadd.f32 0.0, %v4098
        %v4100 = vpop.f32.mrb[0].mxu0
        %4101 = vdwg.mxu0
        %v4103 = vsel %vm2870, %v3590, 0
        %4105 = vmatprep.subr.mxu0 0.0
        %4106 = vmatpush1.msra.mxu0 %v2733
        %4107 = vmatprep.subr.mxu0 0.0
        %4108 = vmatpush1.msra.mxu0 %v2869
        %4109 = vmatprep.subr.mxu0 0.0
        %4110 = vmatpush1.msra.mxu0 0.0
        %4111 = vmatprep.subr.mxu0 0.0
        %4112 = vmatpush1.msra.mxu0 0.0
        %4113 = vmatprep.subr.mxu0 0.0
        %4114 = vmatpush1.msra.mxu0 0.0
        %4115 = vmatprep.subr.mxu0 0.0
        %4116 = vmatpush1.msra.mxu0 0.0
        %4117 = vmatprep.subr.mxu0 0.0
        %4118 = vmatpush1.msra.mxu0 0.0
        %4119 = vmatprep.subr.mxu0 0.0
        %4120 = vmatpush1.msra.mxu0 0.0
        %4121 = vmatprep.subr.mxu0 0.0
        %4122 = vmatpush1.msra.mxu0 0.0
        %4123 = vmatprep.subr.mxu0 0.0
        %4124 = vmatpush1.msra.mxu0 0.0
        %4125 = vmatprep.subr.mxu0 0.0
        %4126 = vmatpush1.msra.mxu0 0.0
        %4127 = vmatprep.subr.mxu0 0.0
        %4128 = vmatpush1.msra.mxu0 0.0
        %4129 = vmatprep.subr.mxu0 0.0
        %4130 = vmatpush1.msra.mxu0 0.0
        %4131 = vmatprep.subr.mxu0 0.0
        %4132 = vmatpush1.msra.mxu0 0.0
        %4133 = vmatprep.subr.mxu0 0.0
        %4134 = vmatpush1.msra.mxu0 0.0
        %4135 = vmatprep.subr.mxu0 0.0
        %4136 = vmatpush1.msra.mxu0 0.0
        %4137 = vmatprep.subr.mxu0 0.0
        %4138 = vmatpush1.msra.mxu0 0.0
        %4139 = vmatprep.subr.mxu0 0.0
        %4140 = vmatpush1.msra.mxu0 0.0
        %4141 = vmatprep.subr.mxu0 0.0
        %4142 = vmatpush1.msra.mxu0 0.0
        %4143 = vmatprep.subr.mxu0 0.0
        %4144 = vmatpush1.msra.mxu0 0.0
        %4145 = vmatprep.subr.mxu0 0.0
        %4146 = vmatpush1.msra.mxu0 0.0
        %4147 = vmatprep.subr.mxu0 0.0
        %4148 = vmatpush1.msra.mxu0 0.0
        %4149 = vmatprep.subr.mxu0 0.0
        %4150 = vmatpush1.msra.mxu0 0.0
        %4151 = vmatprep.subr.mxu0 0.0
        %4152 = vmatpush1.msra.mxu0 0.0
        %4153 = vmatprep.subr.mxu0 0.0
        %4154 = vmatpush1.msra.mxu0 0.0
        %4155 = vmatprep.subr.mxu0 0.0
        %4156 = vmatpush1.msra.mxu0 0.0
        %4157 = vmatprep.subr.mxu0 0.0
        %4158 = vmatpush1.msra.mxu0 0.0
        %4159 = vmatprep.subr.mxu0 0.0
        %4160 = vmatpush1.msra.mxu0 0.0
        %4161 = vmatprep.subr.mxu0 0.0
        %4162 = vmatpush1.msra.mxu0 0.0
        %4163 = vmatprep.subr.mxu0 0.0
        %4164 = vmatpush1.msra.mxu0 0.0
        %4165 = vmatprep.subr.mxu0 0.0
        %4166 = vmatpush1.msra.mxu0 0.0
        %4167 = vmatprep.subr.mxu0 0.0
        %4168 = vmatpush1.msra.mxu0 0.0
        %4169 = vmatprep.mubr.f32.mxu0 0.0
        %4170 = vmatmul.mubr.f32.gmra.mrb[0].mxu0 %v4103
        %v4171 = vpop.f32.mrb[0].mxu0
        %v4172 = vadd.f32 0.0, %v4171
        %v4173 = vpop.f32.mrb[0].mxu0
        %4174 = vdwg.mxu0
        %v4175 = vcombine.low %v3661, %v3807
        %v4176 = vcombine.high %v3661, %v3807
        %v4178 = vunpack.c.l.s4 1983009808
        %v4179 = vunpack.c.0.s8 %v4178
        %v4180 = vlaneseq
        %v4181 = vshrl.u32 %v4180, 7
        %v4182 = vsub.s32 %v4179, %v4181
        %v4183 = vrot.slane %v4175, %v4182
        %v4185 = vunpack.c.l.s4 1983009808
        %v4186 = vunpack.c.0.s8 %v4185
        %v4187 = vlaneseq
        %v4188 = vshrl.u32 %v4187, 7
        %v4189 = vsub.s32 %v4186, %v4188
        %v4190 = vrot.slane %v4176, %v4189
        %v4191 = vcombine.low %v3734, %v3880
        %v4192 = vcombine.high %v3734, %v3880
        %v4194 = vunpack.c.l.s4 1983009808
        %v4195 = vunpack.c.0.s8 %v4194
        %v4196 = vlaneseq
        %v4197 = vshrl.u32 %v4196, 7
        %v4198 = vsub.s32 %v4195, %v4197
        %v4199 = vrot.slane %v4191, %v4198
        %v4201 = vunpack.c.l.s4 1983009808
        %v4202 = vunpack.c.0.s8 %v4201
        %v4203 = vlaneseq
        %v4204 = vshrl.u32 %v4203, 7
        %v4205 = vsub.s32 %v4202, %v4204
        %v4206 = vrot.slane %v4192, %v4205
        %v4207 = vcombine.low %v3953, %v4099
        %v4208 = vcombine.high %v3953, %v4099
        %v4210 = vunpack.c.l.s4 1983009808
        %v4211 = vunpack.c.0.s8 %v4210
        %v4212 = vlaneseq
        %v4213 = vshrl.u32 %v4212, 7
        %v4214 = vsub.s32 %v4211, %v4213
        %v4215 = vrot.slane %v4207, %v4214
        %v4217 = vunpack.c.l.s4 1983009808
        %v4218 = vunpack.c.0.s8 %v4217
        %v4219 = vlaneseq
        %v4220 = vshrl.u32 %v4219, 7
        %v4221 = vsub.s32 %v4218, %v4220
        %v4222 = vrot.slane %v4208, %v4221
        %v4223 = vcombine.low %v4026, %v4172
        %v4224 = vcombine.high %v4026, %v4172
        %v4226 = vunpack.c.l.s4 1983009808
        %v4227 = vunpack.c.0.s8 %v4226
        %v4228 = vlaneseq
        %v4229 = vshrl.u32 %v4228, 7
        %v4230 = vsub.s32 %v4227, %v4229
        %v4231 = vrot.slane %v4223, %v4230
        %v4233 = vunpack.c.l.s4 1983009808
        %v4234 = vunpack.c.0.s8 %v4233
        %v4235 = vlaneseq
        %v4236 = vshrl.u32 %v4235, 7
        %v4237 = vsub.s32 %v4234, %v4236
        %v4238 = vrot.slane %v4224, %v4237
        %v4239 = vcombine.low %v4183, %v4199
        %v4240 = vcombine.high %v4183, %v4199
        %v4242 = vunpack.c.l.s4 1934713408
        %v4243 = vunpack.c.0.s8 %v4242
        %v4244 = vlaneseq
        %v4245 = vshrl.u32 %v4244, 7
        %v4246 = vsub.s32 %v4243, %v4245
        %v4247 = vrot.slane %v4239, %v4246
        %v4249 = vunpack.c.l.s4 1934713408
        %v4250 = vunpack.c.0.s8 %v4249
        %v4251 = vlaneseq
        %v4252 = vshrl.u32 %v4251, 7
        %v4253 = vsub.s32 %v4250, %v4252
        %v4254 = vrot.slane %v4240, %v4253
        %v4255 = vcombine.low %v4190, %v4206
        %v4256 = vcombine.high %v4190, %v4206
        %v4258 = vunpack.c.l.s4 1934713408
        %v4259 = vunpack.c.0.s8 %v4258
        %v4260 = vlaneseq
        %v4261 = vshrl.u32 %v4260, 7
        %v4262 = vsub.s32 %v4259, %v4261
        %v4263 = vrot.slane %v4255, %v4262
        %v4265 = vunpack.c.l.s4 1934713408
        %v4266 = vunpack.c.0.s8 %v4265
        %v4267 = vlaneseq
        %v4268 = vshrl.u32 %v4267, 7
        %v4269 = vsub.s32 %v4266, %v4268
        %v4270 = vrot.slane %v4256, %v4269
        %v4271 = vcombine.low %v4215, %v4231
        %v4272 = vcombine.high %v4215, %v4231
        %v4274 = vunpack.c.l.s4 1934713408
        %v4275 = vunpack.c.0.s8 %v4274
        %v4276 = vlaneseq
        %v4277 = vshrl.u32 %v4276, 7
        %v4278 = vsub.s32 %v4275, %v4277
        %v4279 = vrot.slane %v4271, %v4278
        %v4281 = vunpack.c.l.s4 1934713408
        %v4282 = vunpack.c.0.s8 %v4281
        %v4283 = vlaneseq
        %v4284 = vshrl.u32 %v4283, 7
        %v4285 = vsub.s32 %v4282, %v4284
        %v4286 = vrot.slane %v4272, %v4285
        %v4287 = vcombine.low %v4222, %v4238
        %v4288 = vcombine.high %v4222, %v4238
        %v4290 = vunpack.c.l.s4 1934713408
        %v4291 = vunpack.c.0.s8 %v4290
        %v4292 = vlaneseq
        %v4293 = vshrl.u32 %v4292, 7
        %v4294 = vsub.s32 %v4291, %v4293
        %v4295 = vrot.slane %v4287, %v4294
        %v4297 = vunpack.c.l.s4 1934713408
        %v4298 = vunpack.c.0.s8 %v4297
        %v4299 = vlaneseq
        %v4300 = vshrl.u32 %v4299, 7
        %v4301 = vsub.s32 %v4298, %v4300
        %v4302 = vrot.slane %v4288, %v4301
        %v4303 = vcombine.low %v4247, %v4279
        %v4304 = vcombine.high %v4247, %v4279
        %v4305 = vcombine.low %v4254, %v4286
        %v4306 = vcombine.high %v4254, %v4286
        %v4307 = vcombine.low %v4263, %v4295
        %v4308 = vcombine.high %v4263, %v4295
        %v4309 = vcombine.low %v4270, %v4302
        %v4310 = vcombine.high %v4270, %v4302
        %v4311 = vcombine.low %v4303, %v4305
        %v4312 = vcombine.high %v4303, %v4305
        %v4314 = vunpack.c.l.s4 1983009808
        %v4315 = vunpack.c.0.s8 %v4314
        %v4316 = vlaneseq
        %v4317 = vshrl.u32 %v4316, 7
        %v4318 = vsub.s32 %v4315, %v4317
        %v4319 = vrot.slane %v4311, %v4318
        %v4321 = vunpack.c.l.s4 1983009808
        %v4322 = vunpack.c.0.s8 %v4321
        %v4323 = vlaneseq
        %v4324 = vshrl.u32 %v4323, 7
        %v4325 = vsub.s32 %v4322, %v4324
        %v4326 = vrot.slane %v4312, %v4325
        %v4327 = vcombine.low %v4304, %v4306
        %v4328 = vcombine.high %v4304, %v4306
        %v4330 = vunpack.c.l.s4 1983009808
        %v4331 = vunpack.c.0.s8 %v4330
        %v4332 = vlaneseq
        %v4333 = vshrl.u32 %v4332, 7
        %v4334 = vsub.s32 %v4331, %v4333
        %v4335 = vrot.slane %v4327, %v4334
        %v4337 = vunpack.c.l.s4 1983009808
        %v4338 = vunpack.c.0.s8 %v4337
        %v4339 = vlaneseq
        %v4340 = vshrl.u32 %v4339, 7
        %v4341 = vsub.s32 %v4338, %v4340
        %v4342 = vrot.slane %v4328, %v4341
        %v4343 = vcombine.low %v4307, %v4309
        %v4344 = vcombine.high %v4307, %v4309
        %v4346 = vunpack.c.l.s4 1983009808
        %v4347 = vunpack.c.0.s8 %v4346
        %v4348 = vlaneseq
        %v4349 = vshrl.u32 %v4348, 7
        %v4350 = vsub.s32 %v4347, %v4349
        %v4351 = vrot.slane %v4343, %v4350
        %v4353 = vunpack.c.l.s4 1983009808
        %v4354 = vunpack.c.0.s8 %v4353
        %v4355 = vlaneseq
        %v4356 = vshrl.u32 %v4355, 7
        %v4357 = vsub.s32 %v4354, %v4356
        %v4358 = vrot.slane %v4344, %v4357
        %v4359 = vcombine.low %v4308, %v4310
        %v4360 = vcombine.high %v4308, %v4310
        %v4362 = vunpack.c.l.s4 1983009808
        %v4363 = vunpack.c.0.s8 %v4362
        %v4364 = vlaneseq
        %v4365 = vshrl.u32 %v4364, 7
        %v4366 = vsub.s32 %v4363, %v4365
        %v4367 = vrot.slane %v4359, %v4366
        %v4369 = vunpack.c.l.s4 1983009808
        %v4370 = vunpack.c.0.s8 %v4369
        %v4371 = vlaneseq
        %v4372 = vshrl.u32 %v4371, 7
        %v4373 = vsub.s32 %v4370, %v4372
        %v4374 = vrot.slane %v4360, %v4373
        %v4375 = vcombine.low %v4319, %v4335
        %v4376 = vcombine.high %v4319, %v4335
        %v4378 = vunpack.c.l.s4 1934713408
        %v4379 = vunpack.c.0.s8 %v4378
        %v4380 = vlaneseq
        %v4381 = vshrl.u32 %v4380, 7
        %v4382 = vsub.s32 %v4379, %v4381
        %v4383 = vrot.slane %v4375, %v4382
        %v4385 = vunpack.c.l.s4 1934713408
        %v4386 = vunpack.c.0.s8 %v4385
        %v4387 = vlaneseq
        %v4388 = vshrl.u32 %v4387, 7
        %v4389 = vsub.s32 %v4386, %v4388
        %v4390 = vrot.slane %v4376, %v4389
        %v4391 = vcombine.low %v4326, %v4342
        %v4392 = vcombine.high %v4326, %v4342
        %v4394 = vunpack.c.l.s4 1934713408
        %v4395 = vunpack.c.0.s8 %v4394
        %v4396 = vlaneseq
        %v4397 = vshrl.u32 %v4396, 7
        %v4398 = vsub.s32 %v4395, %v4397
        %v4399 = vrot.slane %v4391, %v4398
        %v4401 = vunpack.c.l.s4 1934713408
        %v4402 = vunpack.c.0.s8 %v4401
        %v4403 = vlaneseq
        %v4404 = vshrl.u32 %v4403, 7
        %v4405 = vsub.s32 %v4402, %v4404
        %v4406 = vrot.slane %v4392, %v4405
        %v4407 = vcombine.low %v4351, %v4367
        %v4408 = vcombine.high %v4351, %v4367
        %v4410 = vunpack.c.l.s4 1934713408
        %v4411 = vunpack.c.0.s8 %v4410
        %v4412 = vlaneseq
        %v4413 = vshrl.u32 %v4412, 7
        %v4414 = vsub.s32 %v4411, %v4413
        %v4415 = vrot.slane %v4407, %v4414
        %v4417 = vunpack.c.l.s4 1934713408
        %v4418 = vunpack.c.0.s8 %v4417
        %v4419 = vlaneseq
        %v4420 = vshrl.u32 %v4419, 7
        %v4421 = vsub.s32 %v4418, %v4420
        %v4422 = vrot.slane %v4408, %v4421
        %v4423 = vcombine.low %v4358, %v4374
        %v4424 = vcombine.high %v4358, %v4374
        %v4426 = vunpack.c.l.s4 1934713408
        %v4427 = vunpack.c.0.s8 %v4426
        %v4428 = vlaneseq
        %v4429 = vshrl.u32 %v4428, 7
        %v4430 = vsub.s32 %v4427, %v4429
        %v4431 = vrot.slane %v4423, %v4430
        %v4433 = vunpack.c.l.s4 1934713408
        %v4434 = vunpack.c.0.s8 %v4433
        %v4435 = vlaneseq
        %v4436 = vshrl.u32 %v4435, 7
        %v4437 = vsub.s32 %v4434, %v4436
        %v4438 = vrot.slane %v4424, %v4437
        %v4439 = vcombine.low %v4383, %v4415
        %v4440 = vcombine.high %v4383, %v4415
        %v4441 = vcombine.low %v4390, %v4422
        %v4442 = vcombine.high %v4390, %v4422
        %v4443 = vcombine.low %v4399, %v4431
        %v4444 = vcombine.high %v4399, %v4431
        %v4445 = vcombine.low %v4406, %v4438
        %v4446 = vcombine.high %v4406, %v4438
        %4448 = vrot.lane.b32.xlu0 %v4440, 16
        %v4449 = vpop.permute.xlu0 %4448
        %4452 = vrot.lane.b32.xlu0 %v4441, 32
        %v4453 = vpop.permute.xlu0 %4452
        %4456 = vrot.lane.b32.xlu0 %v4442, 48
        %v4457 = vpop.permute.xlu0 %4456
        %4460 = vrot.lane.b32.xlu0 %v4443, 64
        %v4461 = vpop.permute.xlu0 %4460
        %4464 = vrot.lane.b32.xlu0 %v4444, 80
        %v4465 = vpop.permute.xlu0 %4464
        %4468 = vrot.lane.b32.xlu0 %v4445, 96
        %v4469 = vpop.permute.xlu0 %4468
        %4472 = vrot.lane.b32.xlu0 %v4446, 112
        %v4473 = vpop.permute.xlu0 %4472
        %v4475 = vsel %vm2870, %v4439, %v4449
        %vm4476 = vcmask 261120
        %v4477 = vsel %vm4476, %v4475, %v4453
        %vm4478 = vcmask 392192
        %v4479 = vsel %vm4478, %v4477, %v4457
        %vm4480 = vcmask 523264
        %v4481 = vsel %vm4480, %v4479, %v4461
        %vm4482 = vcmask 654336
        %v4483 = vsel %vm4482, %v4481, %v4465
        %vm4484 = vcmask 785408
        %v4485 = vsel %vm4484, %v4483, %v4469
        %vm4486 = vcmask 916480
        %v4487 = vsel %vm4486, %v4485, %v4473
        %v4488 = vld [vmem:[#allocation14] sm:$0xff]
        %v4489 = vld [vmem:[#allocation14 + $0x8] sm:$0xff]
        %v4490 = vld [vmem:[#allocation14 + $0x10] sm:$0xff]
        %v4491 = vld [vmem:[#allocation14 + $0x18] sm:$0xff]
        %v4492 = vld [vmem:[#allocation14 + $0x20] sm:$0xff]
        %v4493 = vld [vmem:[#allocation14 + $0x28] sm:$0xff]
        %v4494 = vld [vmem:[#allocation14 + $0x30] sm:$0xff]
        %v4495 = vld [vmem:[#allocation14 + $0x38] sm:$0xff]
        %v4496 = vld [vmem:[#allocation14 + $0x40] sm:$0xff]
        %v4497 = vld [vmem:[#allocation14 + $0x48] sm:$0xff]
        %v4498 = vld [vmem:[#allocation14 + $0x50] sm:$0xff]
        %v4499 = vld [vmem:[#allocation14 + $0x58] sm:$0xff]
        %v4500 = vld [vmem:[#allocation14 + $0x60] sm:$0xff]
        %v4501 = vld [vmem:[#allocation14 + $0x68] sm:$0xff]
        %v4502 = vld [vmem:[#allocation14 + $0x70] sm:$0xff]
        %v4503 = vld [vmem:[#allocation14 + $0x78] sm:$0xff]
        %v4504 = vld [vmem:[%s15] sm:$0x1]
        %v4506 = vlaneseq
        %v4507 = vshrl.u32 %v4506, 7
        %v4508 = vsub.s32 0, %v4507
        %v4509 = vrot.slane %v4504, %v4508
        %4511 = vmatprep.subr.mxu0 0.0
        %4512 = vmatpush1.msra.mxu0 %v4488
        %4513 = vmatprep.subr.mxu0 0.0
        %4514 = vmatpush1.msra.mxu0 %v4489
        %4515 = vmatprep.subr.mxu0 0.0
        %4516 = vmatpush1.msra.mxu0 %v4490
        %4517 = vmatprep.subr.mxu0 0.0
        %4518 = vmatpush1.msra.mxu0 %v4491
        %4519 = vmatprep.subr.mxu0 0.0
        %4520 = vmatpush1.msra.mxu0 %v4492
        %4521 = vmatprep.subr.mxu0 0.0
        %4522 = vmatpush1.msra.mxu0 %v4493
        %4523 = vmatprep.subr.mxu0 0.0
        %4524 = vmatpush1.msra.mxu0 %v4494
        %4525 = vmatprep.subr.mxu0 0.0
        %4526 = vmatpush1.msra.mxu0 %v4495
        %4527 = vmatprep.subr.mxu0 0.0
        %4528 = vmatpush1.msra.mxu0 %v4496
        %4529 = vmatprep.subr.mxu0 0.0
        %4530 = vmatpush1.msra.mxu0 %v4497
        %4531 = vmatprep.subr.mxu0 0.0
        %4532 = vmatpush1.msra.mxu0 %v4498
        %4533 = vmatprep.subr.mxu0 0.0
        %4534 = vmatpush1.msra.mxu0 %v4499
        %4535 = vmatprep.subr.mxu0 0.0
        %4536 = vmatpush1.msra.mxu0 %v4500
        %4537 = vmatprep.subr.mxu0 0.0
        %4538 = vmatpush1.msra.mxu0 %v4501
        %4539 = vmatprep.subr.mxu0 0.0
        %4540 = vmatpush1.msra.mxu0 %v4502
        %4541 = vmatprep.subr.mxu0 0.0
        %4542 = vmatpush1.msra.mxu0 %v4503
        %4543 = vmatprep.subr.mxu0 0.0
        %4544 = vmatpush1.msra.mxu0 0.0
        %4545 = vmatprep.subr.mxu0 0.0
        %4546 = vmatpush1.msra.mxu0 0.0
        %4547 = vmatprep.subr.mxu0 0.0
        %4548 = vmatpush1.msra.mxu0 0.0
        %4549 = vmatprep.subr.mxu0 0.0
        %4550 = vmatpush1.msra.mxu0 0.0
        %4551 = vmatprep.subr.mxu0 0.0
        %4552 = vmatpush1.msra.mxu0 0.0
        %4553 = vmatprep.subr.mxu0 0.0
        %4554 = vmatpush1.msra.mxu0 0.0
        %4555 = vmatprep.subr.mxu0 0.0
        %4556 = vmatpush1.msra.mxu0 0.0
        %4557 = vmatprep.subr.mxu0 0.0
        %4558 = vmatpush1.msra.mxu0 0.0
        %4559 = vmatprep.subr.mxu0 0.0
        %4560 = vmatpush1.msra.mxu0 0.0
        %4561 = vmatprep.subr.mxu0 0.0
        %4562 = vmatpush1.msra.mxu0 0.0
        %4563 = vmatprep.subr.mxu0 0.0
        %4564 = vmatpush1.msra.mxu0 0.0
        %4565 = vmatprep.subr.mxu0 0.0
        %4566 = vmatpush1.msra.mxu0 0.0
        %4567 = vmatprep.subr.mxu0 0.0
        %4568 = vmatpush1.msra.mxu0 0.0
        %4569 = vmatprep.subr.mxu0 0.0
        %4570 = vmatpush1.msra.mxu0 0.0
        %4571 = vmatprep.subr.mxu0 0.0
        %4572 = vmatpush1.msra.mxu0 0.0
        %4573 = vmatprep.subr.mxu0 0.0
        %4574 = vmatpush1.msra.mxu0 0.0
        %4575 = vmatprep.mubr.f32.mxu0 0.0
        %4576 = vmatmul.mubr.f32.gmra.mrb[0].mxu0 %v4487
        %v4577 = vpop.f32.mrb[0].mxu0
        %v4578 = vadd.f32 %v4509, %v4577
        %v4579 = vpop.f32.mrb[0].mxu0
        %4580 = vdwg.mxu0
        %v4581 = vadd.f32 %v1132, %v4578
        %v4582 = vld [vmem:[%s16] sm:$0x1]
        %v4583 = vld [vmem:[%s17] sm:$0x1]
        %4584 = vadd.xlane.f32.xlu0 %v4581
        %v4585 = vpop.xlane.xlu0 %4584
        %v4586 = vmul.f32 %v4585, %v1079
        %v4587 = vsub.f32 %v4581, %v4586
        %v4588 = vmul.f32 %v4587, %v4587
        %4589 = vadd.xlane.f32.xlu0 %v4588
        %v4590 = vpop.xlane.xlu0 %4589
        %v4591 = vmul.f32 %v4590, %v1079
        %v4592 = vadd.f32 %v4591, 1e-05
        %v4593 = vrsqrt.pop %v4592
        %v4594 = vmul.f32 %v4587, %v4593
        %v4596 = vlaneseq
        %v4597 = vshrl.u32 %v4596, 7
        %v4598 = vsub.s32 0, %v4597
        %v4599 = vrot.slane %v4582, %v4598
        %v4601 = vmul.f32 %v4594, %v4599
        %v4603 = vlaneseq
        %v4604 = vshrl.u32 %v4603, 7
        %v4605 = vsub.s32 0, %v4604
        %v4606 = vrot.slane %v4583, %v4605
        %v4608 = vadd.f32 %v4601, %v4606
        %v4609 = vld [vmem:[#allocation16] sm:$0xff]
        %v4610 = vld [vmem:[#allocation16 + $0x8] sm:$0xff]
        %v4611 = vld [vmem:[#allocation16 + $0x10] sm:$0xff]
        %v4612 = vld [vmem:[#allocation16 + $0x18] sm:$0xff]
        %v4613 = vld [vmem:[#allocation16 + $0x20] sm:$0xff]
        %v4614 = vld [vmem:[#allocation16 + $0x28] sm:$0xff]
        %v4615 = vld [vmem:[#allocation16 + $0x30] sm:$0xff]
        %v4616 = vld [vmem:[#allocation16 + $0x38] sm:$0xff]
        %v4617 = vld [vmem:[#allocation16 + $0x40] sm:$0xff]
        %v4618 = vld [vmem:[#allocation16 + $0x48] sm:$0xff]
        %v4619 = vld [vmem:[#allocation16 + $0x50] sm:$0xff]
        %v4620 = vld [vmem:[#allocation16 + $0x58] sm:$0xff]
        %v4621 = vld [vmem:[#allocation16 + $0x60] sm:$0xff]
        %v4622 = vld [vmem:[#allocation16 + $0x68] sm:$0xff]
        %v4623 = vld [vmem:[#allocation16 + $0x70] sm:$0xff]
        %v4624 = vld [vmem:[#allocation16 + $0x78] sm:$0xff]
        %v4625 = vld [vmem:[#allocation16 + $0x80] sm:$0xff]
        %v4626 = vld [vmem:[#allocation16 + $0x88] sm:$0xff]
        %v4627 = vld [vmem:[#allocation16 + $0x90] sm:$0xff]
        %v4628 = vld [vmem:[#allocation16 + $0x98] sm:$0xff]
        %v4629 = vld [vmem:[#allocation16 + $0xa0] sm:$0xff]
        %v4630 = vld [vmem:[#allocation16 + $0xa8] sm:$0xff]
        %v4631 = vld [vmem:[#allocation16 + $0xb0] sm:$0xff]
        %v4632 = vld [vmem:[#allocation16 + $0xb8] sm:$0xff]
        %v4633 = vld [vmem:[#allocation16 + $0xc0] sm:$0xff]
        %v4634 = vld [vmem:[#allocation16 + $0xc8] sm:$0xff]
        %v4635 = vld [vmem:[#allocation16 + $0xd0] sm:$0xff]
        %v4636 = vld [vmem:[#allocation16 + $0xd8] sm:$0xff]
        %v4637 = vld [vmem:[#allocation16 + $0xe0] sm:$0xff]
        %v4638 = vld [vmem:[#allocation16 + $0xe8] sm:$0xff]
        %v4639 = vld [vmem:[#allocation16 + $0xf0] sm:$0xff]
        %v4640 = vld [vmem:[#allocation16 + $0xf8] sm:$0xff]
        %v4641 = vld [vmem:[%s19] sm:$0x3]
        %v4643 = vlaneseq
        %v4644 = vshrl.u32 %v4643, 7
        %v4645 = vsub.s32 0, %v4644
        %v4646 = vrot.slane %v4641, %v4645
        %v4647 = vlaneseq
        %v4648 = vshrl.u32 %v4647, 7
        %v4649 = vsub.s32 1, %v4648
        %v4650 = vrot.slane %v4641, %v4649
        %4653 = vmatprep.subr.mxu0 %v4610
        %4654 = vmatpush1.msra.mxu0 %v4609
        %4655 = vmatprep.subr.mxu0 %v4612
        %4656 = vmatpush1.msra.mxu0 %v4611
        %4657 = vmatprep.subr.mxu0 %v4614
        %4658 = vmatpush1.msra.mxu0 %v4613
        %4659 = vmatprep.subr.mxu0 %v4616
        %4660 = vmatpush1.msra.mxu0 %v4615
        %4661 = vmatprep.subr.mxu0 %v4618
        %4662 = vmatpush1.msra.mxu0 %v4617
        %4663 = vmatprep.subr.mxu0 %v4620
        %4664 = vmatpush1.msra.mxu0 %v4619
        %4665 = vmatprep.subr.mxu0 %v4622
        %4666 = vmatpush1.msra.mxu0 %v4621
        %4667 = vmatprep.subr.mxu0 %v4624
        %4668 = vmatpush1.msra.mxu0 %v4623
        %4669 = vmatprep.subr.mxu0 %v4626
        %4670 = vmatpush1.msra.mxu0 %v4625
        %4671 = vmatprep.subr.mxu0 %v4628
        %4672 = vmatpush1.msra.mxu0 %v4627
        %4673 = vmatprep.subr.mxu0 %v4630
        %4674 = vmatpush1.msra.mxu0 %v4629
        %4675 = vmatprep.subr.mxu0 %v4632
        %4676 = vmatpush1.msra.mxu0 %v4631
        %4677 = vmatprep.subr.mxu0 %v4634
        %4678 = vmatpush1.msra.mxu0 %v4633
        %4679 = vmatprep.subr.mxu0 %v4636
        %4680 = vmatpush1.msra.mxu0 %v4635
        %4681 = vmatprep.subr.mxu0 %v4638
        %4682 = vmatpush1.msra.mxu0 %v4637
        %4683 = vmatprep.subr.mxu0 %v4640
        %4684 = vmatpush1.msra.mxu0 %v4639
        %4685 = vmatprep.subr.mxu0 0.0
        %4686 = vmatpush1.msra.mxu0 0.0
        %4687 = vmatprep.subr.mxu0 0.0
        %4688 = vmatpush1.msra.mxu0 0.0
        %4689 = vmatprep.subr.mxu0 0.0
        %4690 = vmatpush1.msra.mxu0 0.0
        %4691 = vmatprep.subr.mxu0 0.0
        %4692 = vmatpush1.msra.mxu0 0.0
        %4693 = vmatprep.subr.mxu0 0.0
        %4694 = vmatpush1.msra.mxu0 0.0
        %4695 = vmatprep.subr.mxu0 0.0
        %4696 = vmatpush1.msra.mxu0 0.0
        %4697 = vmatprep.subr.mxu0 0.0
        %4698 = vmatpush1.msra.mxu0 0.0
        %4699 = vmatprep.subr.mxu0 0.0
        %4700 = vmatpush1.msra.mxu0 0.0
        %4701 = vmatprep.subr.mxu0 0.0
        %4702 = vmatpush1.msra.mxu0 0.0
        %4703 = vmatprep.subr.mxu0 0.0
        %4704 = vmatpush1.msra.mxu0 0.0
        %4705 = vmatprep.subr.mxu0 0.0
        %4706 = vmatpush1.msra.mxu0 0.0
        %4707 = vmatprep.subr.mxu0 0.0
        %4708 = vmatpush1.msra.mxu0 0.0
        %4709 = vmatprep.subr.mxu0 0.0
        %4710 = vmatpush1.msra.mxu0 0.0
        %4711 = vmatprep.subr.mxu0 0.0
        %4712 = vmatpush1.msra.mxu0 0.0
        %4713 = vmatprep.subr.mxu0 0.0
        %4714 = vmatpush1.msra.mxu0 0.0
        %4715 = vmatprep.subr.mxu0 0.0
        %4716 = vmatpush1.msra.mxu0 0.0
        %4717 = vmatprep.mubr.f32.mxu0 0.0
        %4718 = vmatmul.mubr.f32.gmra.mrb[0].mxu0 %v4608
        %v4719 = vpop.f32.mrb[0].mxu0
        %v4720 = vadd.f32 %v4646, %v4719
        %v4721 = vpop.f32.mrb[0].mxu0
        %v4722 = vadd.f32 %v4650, %v4721
        %4723 = vdwg.mxu0
        %v4724 = vmul.f32 %v4720, 0.5
        %v4725 = vmul.f32 %v4722, 0.5
        %v4726 = vmul.f32 %v4720, 0.044715
        %v4727 = vmul.f32 %v4722, 0.044715
        %v4728 = vmul.f32 %v4726, %v4720
        %v4729 = vmul.f32 %v4727, %v4722
        %v4730 = vmul.f32 %v4728, %v4720
        %v4731 = vmul.f32 %v4729, %v4722
        %v4732 = vadd.f32 %v4720, %v4730
        %v4733 = vadd.f32 %v4722, %v4731
        %v4734 = vmul.f32 %v4732, 0.7978846
        %v4735 = vmul.f32 %v4733, 0.7978846
        %v4736 = vtanh.pop %v4734
        %v4737 = vtanh.pop %v4735
        %v4738 = vadd.f32 %v4736, 1.0
        %v4739 = vadd.f32 %v4737, 1.0
        %v4740 = vmul.f32 %v4724, %v4738
        %v4741 = vmul.f32 %v4725, %v4739
        %v4742 = vld [vmem:[#allocation17] sm:$0xff]
        %v4743 = vld [vmem:[#allocation17 + $0x8] sm:$0xff]
        %v4744 = vld [vmem:[#allocation17 + $0x10] sm:$0xff]
        %v4745 = vld [vmem:[#allocation17 + $0x18] sm:$0xff]
        %v4746 = vld [vmem:[#allocation17 + $0x20] sm:$0xff]
        %v4747 = vld [vmem:[#allocation17 + $0x28] sm:$0xff]
        %v4748 = vld [vmem:[#allocation17 + $0x30] sm:$0xff]
        %v4749 = vld [vmem:[#allocation17 + $0x38] sm:$0xff]
        %v4750 = vld [vmem:[#allocation17 + $0x40] sm:$0xff]
        %v4751 = vld [vmem:[#allocation17 + $0x48] sm:$0xff]
        %v4752 = vld [vmem:[#allocation17 + $0x50] sm:$0xff]
        %v4753 = vld [vmem:[#allocation17 + $0x58] sm:$0xff]
        %v4754 = vld [vmem:[#allocation17 + $0x60] sm:$0xff]
        %v4755 = vld [vmem:[#allocation17 + $0x68] sm:$0xff]
        %v4756 = vld [vmem:[#allocation17 + $0x70] sm:$0xff]
        %v4757 = vld [vmem:[#allocation17 + $0x78] sm:$0xff]
        %v4758 = vld [vmem:[#allocation17 + $0x80] sm:$0xff]
        %v4759 = vld [vmem:[#allocation17 + $0x88] sm:$0xff]
        %v4760 = vld [vmem:[#allocation17 + $0x90] sm:$0xff]
        %v4761 = vld [vmem:[#allocation17 + $0x98] sm:$0xff]
        %v4762 = vld [vmem:[#allocation17 + $0xa0] sm:$0xff]
        %v4763 = vld [vmem:[#allocation17 + $0xa8] sm:$0xff]
        %v4764 = vld [vmem:[#allocation17 + $0xb0] sm:$0xff]
        %v4765 = vld [vmem:[#allocation17 + $0xb8] sm:$0xff]
        %v4766 = vld [vmem:[#allocation17 + $0xc0] sm:$0xff]
        %v4767 = vld [vmem:[#allocation17 + $0xc8] sm:$0xff]
        %v4768 = vld [vmem:[#allocation17 + $0xd0] sm:$0xff]
        %v4769 = vld [vmem:[#allocation17 + $0xd8] sm:$0xff]
        %v4770 = vld [vmem:[#allocation17 + $0xe0] sm:$0xff]
        %v4771 = vld [vmem:[#allocation17 + $0xe8] sm:$0xff]
        %v4772 = vld [vmem:[#allocation17 + $0xf0] sm:$0xff]
        %v4773 = vld [vmem:[#allocation17 + $0xf8] sm:$0xff]
        %v4774 = vld [vmem:[%s21] sm:$0x1]
        %v4776 = vlaneseq
        %v4777 = vshrl.u32 %v4776, 7
        %v4778 = vsub.s32 0, %v4777
        %v4779 = vrot.slane %v4774, %v4778
        %4781 = vmatprep.subr.mxu0 0.0
        %4782 = vmatpush1.msra.mxu0 %v4742
        %4783 = vmatprep.subr.mxu0 0.0
        %4784 = vmatpush1.msra.mxu0 %v4743
        %4785 = vmatprep.subr.mxu0 0.0
        %4786 = vmatpush1.msra.mxu0 %v4744
        %4787 = vmatprep.subr.mxu0 0.0
        %4788 = vmatpush1.msra.mxu0 %v4745
        %4789 = vmatprep.subr.mxu0 0.0
        %4790 = vmatpush1.msra.mxu0 %v4746
        %4791 = vmatprep.subr.mxu0 0.0
        %4792 = vmatpush1.msra.mxu0 %v4747
        %4793 = vmatprep.subr.mxu0 0.0
        %4794 = vmatpush1.msra.mxu0 %v4748
        %4795 = vmatprep.subr.mxu0 0.0
        %4796 = vmatpush1.msra.mxu0 %v4749
        %4797 = vmatprep.subr.mxu0 0.0
        %4798 = vmatpush1.msra.mxu0 %v4750
        %4799 = vmatprep.subr.mxu0 0.0
        %4800 = vmatpush1.msra.mxu0 %v4751
        %4801 = vmatprep.subr.mxu0 0.0
        %4802 = vmatpush1.msra.mxu0 %v4752
        %4803 = vmatprep.subr.mxu0 0.0
        %4804 = vmatpush1.msra.mxu0 %v4753
        %4805 = vmatprep.subr.mxu0 0.0
        %4806 = vmatpush1.msra.mxu0 %v4754
        %4807 = vmatprep.subr.mxu0 0.0
        %4808 = vmatpush1.msra.mxu0 %v4755
        %4809 = vmatprep.subr.mxu0 0.0
        %4810 = vmatpush1.msra.mxu0 %v4756
        %4811 = vmatprep.subr.mxu0 0.0
        %4812 = vmatpush1.msra.mxu0 %v4757
        %4813 = vmatprep.subr.mxu0 0.0
        %4814 = vmatpush1.msra.mxu0 %v4758
        %4815 = vmatprep.subr.mxu0 0.0
        %4816 = vmatpush1.msra.mxu0 %v4759
        %4817 = vmatprep.subr.mxu0 0.0
        %4818 = vmatpush1.msra.mxu0 %v4760
        %4819 = vmatprep.subr.mxu0 0.0
        %4820 = vmatpush1.msra.mxu0 %v4761
        %4821 = vmatprep.subr.mxu0 0.0
        %4822 = vmatpush1.msra.mxu0 %v4762
        %4823 = vmatprep.subr.mxu0 0.0
        %4824 = vmatpush1.msra.mxu0 %v4763
        %4825 = vmatprep.subr.mxu0 0.0
        %4826 = vmatpush1.msra.mxu0 %v4764
        %4827 = vmatprep.subr.mxu0 0.0
        %4828 = vmatpush1.msra.mxu0 %v4765
        %4829 = vmatprep.subr.mxu0 0.0
        %4830 = vmatpush1.msra.mxu0 %v4766
        %4831 = vmatprep.subr.mxu0 0.0
        %4832 = vmatpush1.msra.mxu0 %v4767
        %4833 = vmatprep.subr.mxu0 0.0
        %4834 = vmatpush1.msra.mxu0 %v4768
        %4835 = vmatprep.subr.mxu0 0.0
        %4836 = vmatpush1.msra.mxu0 %v4769
        %4837 = vmatprep.subr.mxu0 0.0
        %4838 = vmatpush1.msra.mxu0 %v4770
        %4839 = vmatprep.subr.mxu0 0.0
        %4840 = vmatpush1.msra.mxu0 %v4771
        %4841 = vmatprep.subr.mxu0 0.0
        %4842 = vmatpush1.msra.mxu0 %v4772
        %4843 = vmatprep.subr.mxu0 0.0
        %4844 = vmatpush1.msra.mxu0 %v4773
        %4845 = vmatprep.mubr.f32.mxu0 %v4741
        %4846 = vmatmul.mubr.f32.gmra.mrb[0].mxu0 %v4740
        %v4847 = vpop.f32.mrb[0].mxu0
        %v4848 = vadd.f32 %v4779, %v4847
        %v4849 = vpop.f32.mrb[0].mxu0
        %4850 = vdwg.mxu0
        %v4851 = vadd.f32 %v4581, %v4848
        %4852 = vst [vmem:[%s877] sm:$0xff] %v4851
        %s4853 = sand.u32 %s531, 1
        %s4854 = scalar_lea.sflag [#allocation4], %s4853
        %s4855 = sand.u32 %s531, 1
        %s4856 = smul.addr %s4855, 8
        %s4857 = scalar_lea.vmem [#allocation19], %s4856
        // Predicated region
        $region149: #{tpu_custom_call.1} parent=107 // pred_check
          %p4858 = pneg %p541
        $region150: #{tpu_custom_call.1} parent=107 // pred_check_branch
          %4860 = sbr.rel (%p4858) target = $region152
        $region151: #{tpu_custom_call.1} parent=107 // pred_region
          %s4862 = ssub.s32 128, 128
          %4863 = vsyncadd %s4854, %s4862
          %s4864 = smul.addr %s46, 128
          %s4865 = scalar_lea.hbm %s22, %s4864
          %s4867 = sshll.u32 %s4857, 4
          %s4868 = int_to_ptr.vmem [resolvable:$true] %s4867
          %4870 = dma.vmem_to_hbm [thread:$0]  %s4868, 128, %s4865, %s4854
        $region152: #{tpu_custom_call.1} parent=107 // pred_fallthru
          _
      $region108: #{tpu_custom_call.1} parent=5 // pred_fallthru
        _
      %p4871 = scmp.le.s32.totalorder 2, %s41
      // Predicated region
      $region153: #{tpu_custom_call.1} parent=5 // pred_check
        %p4872 = pneg %p4871
      $region154: #{tpu_custom_call.1} parent=5 // pred_check_branch
        %4874 = sbr.rel (%p4872) target = $region156
      $region155: #{tpu_custom_call.1} parent=5 // pred_region
        %s4875 = ssub.s32 %s41, 2
        // Predicated region
        $region157: #{tpu_custom_call.1} parent=155 // pred_check
          %p4876 = pneg %p547
        $region158: #{tpu_custom_call.1} parent=155 // pred_check_branch
          %4878 = sbr.rel (%p4876) target = $region160
        $region159: #{tpu_custom_call.1} parent=155 // pred_region
          %s4879 = sand.u32 %s532, 1
          %s4880 = scalar_lea.sflag [#allocation4], %s4879
          %s4881 = sand.u32 %s532, 1
          %s4882 = smul.addr %s4881, 8
          %s4883 = scalar_lea.vmem [#allocation19], %s4882
          %4884 = dma.done %s4880, 128
        $region160: #{tpu_custom_call.1} parent=155 // pred_fallthru
          _
      $region156: #{tpu_custom_call.1} parent=5 // pred_fallthru
        _
    $region6: #{tpu_custom_call.1} parent=1 // loop_footer
      %s45 = sadd.s32 1, %s41
    $region7: #{tpu_custom_call.1} parent=1 // loop_footer_branch
      %40 = sbr.rel target = $region3
    $region8: #{tpu_custom_call.1} parent=1 // loop_exit
      _
    %4885 = vsyncpa [#allocation3], 1
    %s4886 = scalar_lea.sflag [#allocation3], 1
    %4887 = vsyncpa %s4886, 1
    %4888 = vsyncpa [#allocation6], 1
    %s4889 = scalar_lea.sflag [#allocation6], 1
    %4890 = vsyncpa %s4889, 1
    %4891 = vsyncpa [#allocation9], 1
    %4892 = vsyncpa [#allocation12], 1
    %4893 = vsyncpa [#allocation15], 1
    %4894 = vsyncpa [#allocation18], 1
    %4895 = vsyncpa [#allocation4], 1
    %s4896 = scalar_lea.sflag [#allocation4], 1
    %4897 = vsyncpa %s4896, 1

</llo_original>
